<compile_context>
chip_gen: v7x
topology: tpu7x:2x2x1
jax: 0.10.0
libtpu: 0.0.40
codegen_flags: <defaults>
</compile_context>

<pallas_src>
import math
import functools

import jax
import jax.numpy as jnp
from jax.experimental import pallas as pl
from jax.experimental.pallas import tpu as pltpu


def _round_up(x, m):
    return ((x + m - 1) // m) * m


# ---------------------------------------------------------------------------
# Kernel: one LSTM layer over a chunk of Tt timesteps per grid step.
# ---------------------------------------------------------------------------
def _lstm_layer_kernel(x_ref, wih_ref, whh_ref, b_ref, h0_ref, c0_ref,
                       y_ref, hN_ref, cN_ref,
                       xg_scr, h_scr, c_scr,
                       *, tt, t_actual, needs_mask):
    Bp, Hp = h_scr.shape
    Dp = x_ref.shape[2]
    chunk = pl.program_id(0)

    @pl.when(chunk == 0)
    def _():
        h_scr[...] = h0_ref[...]
        c_scr[...] = c0_ref[...]

    # ---- Hoisted input projection for the whole time chunk (one big MXU matmul) ----
    # (Tt, Bp, Dp) -> (Tt*Bp, Dp) @ (Dp, 4Hp) + bias  -> f32 scratch (Tt*Bp, 4Hp)
    xb = x_ref[...].reshape(tt * Bp, Dp)                       # bf16
    xg = jnp.dot(xb, wih_ref[...], preferred_element_type=jnp.float32)
    xg_scr[...] = xg + b_ref[...]

    # ---- Sequential recurrence over the chunk (only h @ W_hh^T on the critical path) ----
    def step(s, carry):
        h, c = carry                                           # f32 (Bp, Hp)
        row = pl.multiple_of(s * Bp, Bp)
        gates = xg_scr[pl.ds(row, Bp), :] + jnp.dot(
            h.astype(jnp.bfloat16), whh_ref[...],
            preferred_element_type=jnp.float32)                # (Bp, 4Hp) f32

        ingate     = jax.nn.sigmoid(gates[:, 0 * Hp:1 * Hp])
        forgetgate = jax.nn.sigmoid(gates[:, 1 * Hp:2 * Hp])
        cellgate   = jnp.tanh(gates[:, 2 * Hp:3 * Hp])
        outgate    = jax.nn.sigmoid(gates[:, 3 * Hp:4 * Hp])

        c_new = forgetgate * c + ingate * cellgate
        h_new = outgate * jnp.tanh(c_new)

        if needs_mask:
            # Freeze the carried state on padded (t >= T) timesteps.
            m = ((chunk * tt + s) < t_actual).astype(jnp.float32)
            h_new = m * h_new + (1.0 - m) * h
            c_new = m * c_new + (1.0 - m) * c

        y_ref[s] = h_new.astype(y_ref.dtype)                   # lane-dense (Bp, Hp) store
        return (h_new, c_new)

    h_fin, c_fin = jax.lax.fori_loop(
        0, tt, step, (h_scr[...], c_scr[...]), unroll=True)

    h_scr[...] = h_fin
    c_scr[...] = c_fin

    @pl.when(chunk == pl.num_programs(0) - 1)
    def _():
        hN_ref[...] = h_fin
        cN_ref[...] = c_fin


def lstm_layer_pallas(x_p, wihT, whhT, b2d, h0_p, c0_p, *, t_actual, tt):
    """One LSTM layer over a (padded) sequence.

    x_p   : (T_pad, B_pad, D_pad) bf16
    wihT  : (D_pad, 4*H_pad)      bf16   (transposed, gate-padded)
    whhT  : (H_pad, 4*H_pad)      bf16
    b2d   : (1, 4*H_pad)          f32
    h0_p, c0_p : (B_pad, H_pad)   f32
    returns y_p (T_pad, B_pad, H_pad) bf16, hN, cN (B_pad, H_pad) f32
    """
    T_pad, Bp, Dp = x_p.shape
    Hp = h0_p.shape[1]
    assert T_pad % tt == 0
    n_chunks = T_pad // tt
    needs_mask = (T_pad != t_actual)

    kernel = functools.partial(
        _lstm_layer_kernel, tt=tt, t_actual=t_actual, needs_mask=needs_mask)

    out_shapes = (
        jax.ShapeDtypeStruct((T_pad, Bp, Hp), jnp.bfloat16),   # y (bf16 inter-layer)
        jax.ShapeDtypeStruct((Bp, Hp), jnp.float32),           # h_final
        jax.ShapeDtypeStruct((Bp, Hp), jnp.float32),           # c_final
    )

    grid_spec = pltpu.PrefetchScalarGridSpec(
        num_scalar_prefetch=0,
        grid=(n_chunks,),
        in_specs=[
            pl.BlockSpec((tt, Bp, Dp), lambda c: (c, 0, 0)),     # x chunk
            pl.BlockSpec((Dp, 4 * Hp), lambda c: (0, 0)),        # W_ih^T (resident)
            pl.BlockSpec((Hp, 4 * Hp), lambda c: (0, 0)),        # W_hh^T (resident)
            pl.BlockSpec((1, 4 * Hp), lambda c: (0, 0)),         # bias
            pl.BlockSpec((Bp, Hp), lambda c: (0, 0)),            # h0
            pl.BlockSpec((Bp, Hp), lambda c: (0, 0)),            # c0
        ],
        out_specs=[
            pl.BlockSpec((tt, Bp, Hp), lambda c: (c, 0, 0)),     # y chunk
            pl.BlockSpec((Bp, Hp), lambda c: (0, 0)),            # h_final
            pl.BlockSpec((Bp, Hp), lambda c: (0, 0)),            # c_final
        ],
        scratch_shapes=[
            pltpu.VMEM((tt * Bp, 4 * Hp), jnp.float32),          # hoisted x-projection
            pltpu.VMEM((Bp, Hp), jnp.float32),                   # h carry
            pltpu.VMEM((Bp, Hp), jnp.float32),                   # c carry
        ],
    )

    y, hN, cN = pl.pallas_call(
        kernel,
        out_shape=out_shapes,
        grid_spec=grid_spec,
        compiler_params=pltpu.CompilerParams(
            dimension_semantics=("arbitrary",)),
    )(x_p, wihT, whhT, b2d, h0_p, c0_p)
    return y, hN, cN


# ---------------------------------------------------------------------------
# Parameter init (mimics LSTMCell.reset_parameters) and one-time preparation.
# ---------------------------------------------------------------------------
def init_lstm_params(key, input_size, hidden_size, n_layers):
    sig_gain = 1.0
    tanh_gain = 5.0 / 3.0
    params = []
    for i in range(n_layers):
        d = input_size if i == 0 else hidden_size
        key, k1, k2, k3 = jax.random.split(key, 4)
        std_hh = math.sqrt(1.0 / hidden_size) / math.sqrt(2.0) * sig_gain
        std_ih = math.sqrt(2.0 / (d + hidden_size)) / math.sqrt(2.0) * sig_gain
        w_hh = std_hh * jax.random.normal(k1, (4 * hidden_size, hidden_size),
                                          dtype=jnp.float32)
        w_ih = std_ih * jax.random.normal(k2, (4 * hidden_size, d),
                                          dtype=jnp.float32)
        a = jax.random.normal(k3, (hidden_size, hidden_size), dtype=jnp.float32)
        q, r = jnp.linalg.qr(a)
        q = q * jnp.sign(jnp.diag(r))[None, :]
        w_hh = w_hh.at[2 * hidden_size:3 * hidden_size].set(
            q * (tanh_gain / math.sqrt(2.0)))
        w_ih = w_ih.at[2 * hidden_size:3 * hidden_size].multiply(
            tanh_gain / sig_gain)
        bias = jnp.zeros((4 * hidden_size,), jnp.float32)
        bias = bias.at[hidden_size:2 * hidden_size].set(1.0)
        params.append((w_ih, w_hh, bias))
    return params


def _pad_gate_cols(w, H, Hp):
    """(K, 4H) -> (K, 4*Hp), zero-padding each gate block independently."""
    K = w.shape[0]
    w4 = w.reshape(K, 4, H)
    w4 = jnp.pad(w4, ((0, 0), (0, 0), (0, Hp - H)))
    return w4.reshape(K, 4 * Hp)


def prepare_lstm_params(params, hidden_size):
    """Transpose / gate-pad / cast weights ONCE (not per forward call)."""
    H = hidden_size
    Hp = _round_up(H, 128)
    prepared = []
    for w_ih, w_hh, bias in params:
        d = w_ih.shape[1]
        Dp = _round_up(d, 128)
        wihT = _pad_gate_cols(jnp.transpose(w_ih).astype(jnp.float32), H, Hp)
        wihT = jnp.pad(wihT, ((0, Dp - d), (0, 0))).astype(jnp.bfloat16)
        whhT = _pad_gate_cols(jnp.transpose(w_hh).astype(jnp.float32), H, Hp)
        whhT = jnp.pad(whhT, ((0, Hp - H), (0, 0))).astype(jnp.bfloat16)
        b2d = jnp.pad(bias.astype(jnp.float32).reshape(4, H),
                      ((0, 0), (0, Hp - H))).reshape(1, 4 * Hp)
        prepared.append((wihT, whhT, b2d))
    return prepared


# ---------------------------------------------------------------------------
# Stacked forward (dropout=0.0 path of the module).
# ---------------------------------------------------------------------------
def lstm_forward(x, prepared_params, hidden_size, state=None, batch_first=False,
                 time_chunk=16):
    """x: (T, B, D) if not batch_first else (B, T, D). Returns (outputs, [(h,c)...])."""
    if batch_first:
        x = jnp.swapaxes(x, 0, 1)                 # -> (T, B, D)
    T, B, D = x.shape
    H = hidden_size
    Hp = _round_up(H, 128)
    Bp = _round_up(B, 8)
    Dp = _round_up(D, 128)
    tt = max(1, min(time_chunk, T))
    T_pad = _round_up(T, tt)

    x_p = jnp.pad(x.astype(jnp.float32),
                  ((0, T_pad - T), (0, Bp - B), (0, Dp - D))).astype(jnp.bfloat16)

    if state is None:
        state = [(jnp.zeros((B, H), jnp.float32), jnp.zeros((B, H), jnp.float32))
                 for _ in prepared_params]

    layer_in = x_p
    new_state = []
    for (wihT, whhT, b2d), (h0, c0) in zip(prepared_params, state):
        h0p = jnp.pad(h0.astype(jnp.float32), ((0, Bp - B), (0, Hp - H)))
        c0p = jnp.pad(c0.astype(jnp.float32), ((0, Bp - B), (0, Hp - H)))
        y_p, hN, cN = lstm_layer_pallas(layer_in, wihT, whhT, b2d, h0p, c0p,
                                        t_actual=T, tt=tt)
        new_state.append((hN[:B, :H], cN[:B, :H]))
        layer_in = y_p                            # bf16 padded, fed directly to next layer

    out = layer_in[:T, :B, :H].astype(jnp.float32)
    if batch_first:
        out = jnp.swapaxes(out, 0, 1)
    return out, new_state


# ---------------------------------------------------------------------------
# Pure-JAX references for the correctness check.
# ---------------------------------------------------------------------------
def _reference_forward(x, params, hidden_size, state, bf16_matmul=False):
    H = hidden_size

    def cell(carry, x_t, w_ih, w_hh, bias):
        h, c = carry
        if bf16_matmul:
            gi = jnp.dot(x_t.astype(jnp.bfloat16),
                         w_ih.T.astype(jnp.bfloat16),
                         preferred_element_type=jnp.float32)
            gh = jnp.dot(h.astype(jnp.bfloat16),
                         w_hh.T.astype(jnp.bfloat16),
                         preferred_element_type=jnp.float32)
            gates = (gi + bias) + gh
        else:
            gates = x_t @ w_ih.T + h @ w_hh.T + bias
        i = jax.nn.sigmoid(gates[:, 0 * H:1 * H])
        f = jax.nn.sigmoid(gates[:, 1 * H:2 * H])
        g = jnp.tanh(gates[:, 2 * H:3 * H])
        o = jax.nn.sigmoid(gates[:, 3 * H:4 * H])
        c_new = f * c + i * g
        h_new = o * jnp.tanh(c_new)
        return (h_new, c_new), h_new

    layer_in = x
    new_state = []
    for (w_ih, w_hh, bias), (h0, c0) in zip(params, state):
        step = functools.partial(cell, w_ih=w_ih, w_hh=w_hh, bias=bias)
        (hN, cN), ys = jax.lax.scan(step, (h0, c0), layer_in)
        if bf16_matmul:
            # Inter-layer activations are bf16 in the kernel path.
            ys = ys.astype(jnp.bfloat16).astype(jnp.float32)
        layer_in = ys
        new_state.append((hN, cN))
    return layer_in, new_state


if __name__ == "__main__":
    # Small shapes consistent with the module: seq=8, batch=2, input=16, hidden=32, layers=2
    T, B, D, H, L = 8, 2, 16, 32, 2
    key = jax.random.PRNGKey(0)
    kx, kp = jax.random.split(key)
    x = jax.random.normal(kx, (T, B, D), dtype=jnp.float32)
    params = init_lstm_params(kp, D, H, L)
    prepared = prepare_lstm_params(params, H)     # transpose/pad/bf16-cast once

    out, state = lstm_forward(x, prepared, H, state=None, batch_first=False)
    out = jax.block_until_ready(out)
    state = jax.tree_util.tree_map(jax.block_until_ready, state)

    zero_state = [(jnp.zeros((B, H), jnp.float32), jnp.zeros((B, H), jnp.float32))
                  for _ in range(L)]

    # Check 1 (kernel logic): against a reference using the same bf16-matmul / f32-state
    # precision policy -> should match closely.
    ref_out, ref_state = _reference_forward(x, params, H, zero_state, bf16_matmul=True)
    assert out.shape == (T, B, H)
    assert jnp.allclose(out, ref_out, atol=1e-2, rtol=1e-2)
    for (h, c), (rh, rc) in zip(state, ref_state):
        assert h.shape == (B, H) and c.shape == (B, H)
        assert jnp.allclose(h, rh, atol=1e-2, rtol=1e-2)
        assert jnp.allclose(c, rc, atol=1e-2, rtol=1e-2)

    # Check 2 (overall semantics): against the full-f32 reference; looser tolerance
    # accounts for bf16 matmul operands accumulated over T steps and L layers.
    ref_out32, ref_state32 = _reference_forward(x, params, H, zero_state, bf16_matmul=False)
    assert jnp.allclose(out, ref_out32, atol=7e-2, rtol=7e-2)
    for (h, c), (rh, rc) in zip(state, ref_state32):
        assert jnp.allclose(h, rh, atol=7e-2, rtol=7e-2)
        assert jnp.allclose(c, rc, atol=7e-2, rtol=7e-2)

    print("KERNEL_OK")
</pallas_src>

<mosaic_0001>
module attributes {stable_mosaic.version = 11 : i64} {
  func.func @_lstm_layer_kernel(%arg0: i32, %arg1: memref<8x8x128xbf16, #tpu.memory_space<vmem>>, %arg2: memref<128x512xbf16, #tpu.memory_space<vmem>>, %arg3: memref<128x512xbf16, #tpu.memory_space<vmem>>, %arg4: memref<1x512xf32, #tpu.memory_space<vmem>>, %arg5: memref<8x128xf32, #tpu.memory_space<vmem>>, %arg6: memref<8x128xf32, #tpu.memory_space<vmem>>, %arg7: memref<8x8x128xbf16, #tpu.memory_space<vmem>>, %arg8: memref<8x128xf32, #tpu.memory_space<vmem>>, %arg9: memref<8x128xf32, #tpu.memory_space<vmem>>, %arg10: memref<64x512xf32, #tpu.memory_space<vmem>>, %arg11: memref<8x128xf32, #tpu.memory_space<vmem>>, %arg12: memref<8x128xf32, #tpu.memory_space<vmem>>) attributes {dimension_semantics = [#tpu.dimension_semantics<arbitrary>], iteration_bounds = array<i64: 1>, scalar_prefetch = 0 : i64, scratch_operands = 3 : i64, tpu.core_type = #tpu.core_type<tc>, window_params = [{transform_indices = @transform_0, window_bounds = array<i64: 8, 8, 128>}, {pipeline_mode = #tpu.pipeline_mode<synchronous>, transform_indices = @transform_1, window_bounds = array<i64: 128, 512>}, {pipeline_mode = #tpu.pipeline_mode<synchronous>, transform_indices = @transform_2, window_bounds = array<i64: 128, 512>}, {pipeline_mode = #tpu.pipeline_mode<synchronous>, transform_indices = @transform_3, window_bounds = array<i64: 1, 512>}, {pipeline_mode = #tpu.pipeline_mode<synchronous>, transform_indices = @transform_4, window_bounds = array<i64: 8, 128>}, {pipeline_mode = #tpu.pipeline_mode<synchronous>, transform_indices = @transform_5, window_bounds = array<i64: 8, 128>}, {transform_indices = @transform_6, window_bounds = array<i64: 8, 8, 128>}, {pipeline_mode = #tpu.pipeline_mode<synchronous>, transform_indices = @transform_7, window_bounds = array<i64: 8, 128>}, {pipeline_mode = #tpu.pipeline_mode<synchronous>, transform_indices = @transform_8, window_bounds = array<i64: 8, 128>}]} {
    %c0_i32 = arith.constant 0 : i32
    %0 = arith.cmpi eq, %arg0, %c0_i32 : i32
    %1 = arith.extui %0 : i1 to i32
    %c0_i32_0 = arith.constant 0 : i32
    %2 = arith.cmpi ne, %1, %c0_i32_0 : i32
    scf.if %2 {
      %c0_100 = arith.constant 0 : index
      %c0_101 = arith.constant 0 : index
      %322 = vector.load %arg5[%c0_100, %c0_101] : memref<8x128xf32, #tpu.memory_space<vmem>>, vector<8x128xf32>
      %c0_102 = arith.constant 0 : index
      %c0_103 = arith.constant 0 : index
      %323 = vector.load %arg11[%c0_102, %c0_103] : memref<8x128xf32, #tpu.memory_space<vmem>>, vector<8x128xf32>
      tpu.vector_store %arg11[%c0_102, %c0_103], %322 {strides = array<i32>} : memref<8x128xf32, #tpu.memory_space<vmem>>, vector<8x128xf32>,
      %c0_104 = arith.constant 0 : index
      %c0_105 = arith.constant 0 : index
      %324 = vector.load %arg6[%c0_104, %c0_105] : memref<8x128xf32, #tpu.memory_space<vmem>>, vector<8x128xf32>
      %c0_106 = arith.constant 0 : index
      %c0_107 = arith.constant 0 : index
      %325 = vector.load %arg12[%c0_106, %c0_107] : memref<8x128xf32, #tpu.memory_space<vmem>>, vector<8x128xf32>
      tpu.vector_store %arg12[%c0_106, %c0_107], %324 {strides = array<i32>} : memref<8x128xf32, #tpu.memory_space<vmem>>, vector<8x128xf32>,
    } else {
    }
    %c0 = arith.constant 0 : index
    %c0_1 = arith.constant 0 : index
    %c0_2 = arith.constant 0 : index
    %3 = vector.load %arg1[%c0, %c0_1, %c0_2] : memref<8x8x128xbf16, #tpu.memory_space<vmem>>, vector<8x8x128xbf16>
    %4 = vector.shape_cast %3 : vector<8x8x128xbf16> to vector<64x128xbf16>
    %c0_3 = arith.constant 0 : index
    %c0_4 = arith.constant 0 : index
    %5 = vector.load %arg2[%c0_3, %c0_4] : memref<128x512xbf16, #tpu.memory_space<vmem>>, vector<128x512xbf16>
    %cst = arith.constant dense<0.000000e+00> : vector<64x512xf32>
    %6 = tpu.matmul %4, %5, %cst {dimension_numbers = #tpu.dot_dimension_numbers<[1], [0], [0], [1], [0, 0, 1, 1], [], []>} : vector<64x128xbf16>, vector<128x512xbf16>, vector<64x512xf32> -> vector<64x512xf32>
    %c0_5 = arith.constant 0 : index
    %c0_6 = arith.constant 0 : index
    %7 = vector.load %arg4[%c0_5, %c0_6] : memref<1x512xf32, #tpu.memory_space<vmem>>, vector<1x512xf32>
    %8 = vector.broadcast %7 : vector<1x512xf32> to vector<64x512xf32>
    %9 = arith.addf %6, %8 : vector<64x512xf32>
    %c0_7 = arith.constant 0 : index
    %c0_8 = arith.constant 0 : index
    %10 = vector.load %arg10[%c0_7, %c0_8] : memref<64x512xf32, #tpu.memory_space<vmem>>, vector<64x512xf32>
    tpu.vector_store %arg10[%c0_7, %c0_8], %9 {strides = array<i32>} : memref<64x512xf32, #tpu.memory_space<vmem>>, vector<64x512xf32>,
    %c0_9 = arith.constant 0 : index
    %c0_10 = arith.constant 0 : index
    %11 = vector.load %arg11[%c0_9, %c0_10] : memref<8x128xf32, #tpu.memory_space<vmem>>, vector<8x128xf32>
    %c0_11 = arith.constant 0 : index
    %c0_12 = arith.constant 0 : index
    %12 = vector.load %arg12[%c0_11, %c0_12] : memref<8x128xf32, #tpu.memory_space<vmem>>, vector<8x128xf32>
    %c0_i32_13 = arith.constant 0 : i32
    %c8_i32 = arith.constant 8 : i32
    %13 = arith.muli %c0_i32_13, %c8_i32 : i32
    %14 = tpu.assume_multiple %13, 8 : i32
    %15 = arith.index_cast %14 : i32 to index
    %c0_14 = arith.constant 0 : index
    %16 = vector.load %arg10[%15, %c0_14] : memref<64x512xf32, #tpu.memory_space<vmem>>, vector<8x512xf32>
    %17 = arith.truncf %11 : vector<8x128xf32> to vector<8x128xbf16>
    %c0_15 = arith.constant 0 : index
    %c0_16 = arith.constant 0 : index
    %18 = vector.load %arg3[%c0_15, %c0_16] : memref<128x512xbf16, #tpu.memory_space<vmem>>, vector<128x512xbf16>
    %cst_17 = arith.constant dense<0.000000e+00> : vector<8x512xf32>
    %19 = tpu.matmul %17, %18, %cst_17 {dimension_numbers = #tpu.dot_dimension_numbers<[1], [0], [0], [1], [0, 0, 1, 1], [], []>} : vector<8x128xbf16>, vector<128x512xbf16>, vector<8x512xf32> -> vector<8x512xf32>
    %20 = arith.addf %16, %19 : vector<8x512xf32>
    %21 = vector.extract_strided_slice %20 {offsets = [0, 0], sizes = [8, 128], strides = [1, 1]} : vector<8x512xf32> to vector<8x128xf32>
    %22 = arith.negf %21 : vector<8x128xf32>
    %23 = math.exp %22 : vector<8x128xf32>
    %cst_18 = arith.constant 1.000000e+00 : f32
    %24 = vector.broadcast %cst_18 : f32 to vector<8x128xf32>
    %25 = arith.addf %24, %23 : vector<8x128xf32>
    %26 = arith.divf %24, %25 : vector<8x128xf32>
    %27 = vector.extract_strided_slice %20 {offsets = [0, 128], sizes = [8, 128], strides = [1, 1]} : vector<8x512xf32> to vector<8x128xf32>
    %28 = arith.negf %27 : vector<8x128xf32>
    %29 = math.exp %28 : vector<8x128xf32>
    %cst_19 = arith.constant 1.000000e+00 : f32
    %30 = vector.broadcast %cst_19 : f32 to vector<8x128xf32>
    %31 = arith.addf %30, %29 : vector<8x128xf32>
    %32 = arith.divf %30, %31 : vector<8x128xf32>
    %33 = vector.extract_strided_slice %20 {offsets = [0, 256], sizes = [8, 128], strides = [1, 1]} : vector<8x512xf32> to vector<8x128xf32>
    %34 = math.tanh %33 : vector<8x128xf32>
    %35 = vector.extract_strided_slice %20 {offsets = [0, 384], sizes = [8, 128], strides = [1, 1]} : vector<8x512xf32> to vector<8x128xf32>
    %36 = arith.negf %35 : vector<8x128xf32>
    %37 = math.exp %36 : vector<8x128xf32>
    %cst_20 = arith.constant 1.000000e+00 : f32
    %38 = vector.broadcast %cst_20 : f32 to vector<8x128xf32>
    %39 = arith.addf %38, %37 : vector<8x128xf32>
    %40 = arith.divf %38, %39 : vector<8x128xf32>
    %41 = arith.mulf %32, %12 : vector<8x128xf32>
    %42 = arith.mulf %26, %34 : vector<8x128xf32>
    %43 = arith.addf %41, %42 : vector<8x128xf32>
    %44 = math.tanh %43 : vector<8x128xf32>
    %45 = arith.mulf %40, %44 : vector<8x128xf32>
    %46 = arith.truncf %45 : vector<8x128xf32> to vector<8x128xbf16>
    %47 = arith.index_cast %c0_i32_13 : i32 to index
    %c0_21 = arith.constant 0 : index
    %c0_22 = arith.constant 0 : index
    %48 = vector.load %arg7[%47, %c0_21, %c0_22] : memref<8x8x128xbf16, #tpu.memory_space<vmem>>, vector<1x8x128xbf16>
    %49 = vector.shape_cast %48 : vector<1x8x128xbf16> to vector<8x128xbf16>
    %50 = vector.shape_cast %46 : vector<8x128xbf16> to vector<1x8x128xbf16>
    tpu.vector_store %arg7[%47, %c0_21, %c0_22], %50 {strides = array<i32>} : memref<8x8x128xbf16, #tpu.memory_space<vmem>>, vector<1x8x128xbf16>,
    %c1_i32 = arith.constant 1 : i32
    %c8_i32_23 = arith.constant 8 : i32
    %51 = arith.muli %c1_i32, %c8_i32_23 : i32
    %52 = tpu.assume_multiple %51, 8 : i32
    %53 = arith.index_cast %52 : i32 to index
    %c0_24 = arith.constant 0 : index
    %54 = vector.load %arg10[%53, %c0_24] : memref<64x512xf32, #tpu.memory_space<vmem>>, vector<8x512xf32>
    %55 = arith.truncf %45 : vector<8x128xf32> to vector<8x128xbf16>
    %c0_25 = arith.constant 0 : index
    %c0_26 = arith.constant 0 : index
    %56 = vector.load %arg3[%c0_25, %c0_26] : memref<128x512xbf16, #tpu.memory_space<vmem>>, vector<128x512xbf16>
    %cst_27 = arith.constant dense<0.000000e+00> : vector<8x512xf32>
    %57 = tpu.matmul %55, %56, %cst_27 {dimension_numbers = #tpu.dot_dimension_numbers<[1], [0], [0], [1], [0, 0, 1, 1], [], []>} : vector<8x128xbf16>, vector<128x512xbf16>, vector<8x512xf32> -> vector<8x512xf32>
    %58 = arith.addf %54, %57 : vector<8x512xf32>
    %59 = vector.extract_strided_slice %58 {offsets = [0, 0], sizes = [8, 128], strides = [1, 1]} : vector<8x512xf32> to vector<8x128xf32>
    %60 = arith.negf %59 : vector<8x128xf32>
    %61 = math.exp %60 : vector<8x128xf32>
    %cst_28 = arith.constant 1.000000e+00 : f32
    %62 = vector.broadcast %cst_28 : f32 to vector<8x128xf32>
    %63 = arith.addf %62, %61 : vector<8x128xf32>
    %64 = arith.divf %62, %63 : vector<8x128xf32>
    %65 = vector.extract_strided_slice %58 {offsets = [0, 128], sizes = [8, 128], strides = [1, 1]} : vector<8x512xf32> to vector<8x128xf32>
    %66 = arith.negf %65 : vector<8x128xf32>
    %67 = math.exp %66 : vector<8x128xf32>
    %cst_29 = arith.constant 1.000000e+00 : f32
    %68 = vector.broadcast %cst_29 : f32 to vector<8x128xf32>
    %69 = arith.addf %68, %67 : vector<8x128xf32>
    %70 = arith.divf %68, %69 : vector<8x128xf32>
    %71 = vector.extract_strided_slice %58 {offsets = [0, 256], sizes = [8, 128], strides = [1, 1]} : vector<8x512xf32> to vector<8x128xf32>
    %72 = math.tanh %71 : vector<8x128xf32>
    %73 = vector.extract_strided_slice %58 {offsets = [0, 384], sizes = [8, 128], strides = [1, 1]} : vector<8x512xf32> to vector<8x128xf32>
    %74 = arith.negf %73 : vector<8x128xf32>
    %75 = math.exp %74 : vector<8x128xf32>
    %cst_30 = arith.constant 1.000000e+00 : f32
    %76 = vector.broadcast %cst_30 : f32 to vector<8x128xf32>
    %77 = arith.addf %76, %75 : vector<8x128xf32>
    %78 = arith.divf %76, %77 : vector<8x128xf32>
    %79 = arith.mulf %70, %43 : vector<8x128xf32>
    %80 = arith.mulf %64, %72 : vector<8x128xf32>
    %81 = arith.addf %79, %80 : vector<8x128xf32>
    %82 = math.tanh %81 : vector<8x128xf32>
    %83 = arith.mulf %78, %82 : vector<8x128xf32>
    %84 = arith.truncf %83 : vector<8x128xf32> to vector<8x128xbf16>
    %85 = arith.index_cast %c1_i32 : i32 to index
    %c0_31 = arith.constant 0 : index
    %c0_32 = arith.constant 0 : index
    %86 = vector.load %arg7[%85, %c0_31, %c0_32] : memref<8x8x128xbf16, #tpu.memory_space<vmem>>, vector<1x8x128xbf16>
    %87 = vector.shape_cast %86 : vector<1x8x128xbf16> to vector<8x128xbf16>
    %88 = vector.shape_cast %84 : vector<8x128xbf16> to vector<1x8x128xbf16>
    tpu.vector_store %arg7[%85, %c0_31, %c0_32], %88 {strides = array<i32>} : memref<8x8x128xbf16, #tpu.memory_space<vmem>>, vector<1x8x128xbf16>,
    %c2_i32 = arith.constant 2 : i32
    %c8_i32_33 = arith.constant 8 : i32
    %89 = arith.muli %c2_i32, %c8_i32_33 : i32
    %90 = tpu.assume_multiple %89, 8 : i32
    %91 = arith.index_cast %90 : i32 to index
    %c0_34 = arith.constant 0 : index
    %92 = vector.load %arg10[%91, %c0_34] : memref<64x512xf32, #tpu.memory_space<vmem>>, vector<8x512xf32>
    %93 = arith.truncf %83 : vector<8x128xf32> to vector<8x128xbf16>
    %c0_35 = arith.constant 0 : index
    %c0_36 = arith.constant 0 : index
    %94 = vector.load %arg3[%c0_35, %c0_36] : memref<128x512xbf16, #tpu.memory_space<vmem>>, vector<128x512xbf16>
    %cst_37 = arith.constant dense<0.000000e+00> : vector<8x512xf32>
    %95 = tpu.matmul %93, %94, %cst_37 {dimension_numbers = #tpu.dot_dimension_numbers<[1], [0], [0], [1], [0, 0, 1, 1], [], []>} : vector<8x128xbf16>, vector<128x512xbf16>, vector<8x512xf32> -> vector<8x512xf32>
    %96 = arith.addf %92, %95 : vector<8x512xf32>
    %97 = vector.extract_strided_slice %96 {offsets = [0, 0], sizes = [8, 128], strides = [1, 1]} : vector<8x512xf32> to vector<8x128xf32>
    %98 = arith.negf %97 : vector<8x128xf32>
    %99 = math.exp %98 : vector<8x128xf32>
    %cst_38 = arith.constant 1.000000e+00 : f32
    %100 = vector.broadcast %cst_38 : f32 to vector<8x128xf32>
    %101 = arith.addf %100, %99 : vector<8x128xf32>
    %102 = arith.divf %100, %101 : vector<8x128xf32>
    %103 = vector.extract_strided_slice %96 {offsets = [0, 128], sizes = [8, 128], strides = [1, 1]} : vector<8x512xf32> to vector<8x128xf32>
    %104 = arith.negf %103 : vector<8x128xf32>
    %105 = math.exp %104 : vector<8x128xf32>
    %cst_39 = arith.constant 1.000000e+00 : f32
    %106 = vector.broadcast %cst_39 : f32 to vector<8x128xf32>
    %107 = arith.addf %106, %105 : vector<8x128xf32>
    %108 = arith.divf %106, %107 : vector<8x128xf32>
    %109 = vector.extract_strided_slice %96 {offsets = [0, 256], sizes = [8, 128], strides = [1, 1]} : vector<8x512xf32> to vector<8x128xf32>
    %110 = math.tanh %109 : vector<8x128xf32>
    %111 = vector.extract_strided_slice %96 {offsets = [0, 384], sizes = [8, 128], strides = [1, 1]} : vector<8x512xf32> to vector<8x128xf32>
    %112 = arith.negf %111 : vector<8x128xf32>
    %113 = math.exp %112 : vector<8x128xf32>
    %cst_40 = arith.constant 1.000000e+00 : f32
    %114 = vector.broadcast %cst_40 : f32 to vector<8x128xf32>
    %115 = arith.addf %114, %113 : vector<8x128xf32>
    %116 = arith.divf %114, %115 : vector<8x128xf32>
    %117 = arith.mulf %108, %81 : vector<8x128xf32>
    %118 = arith.mulf %102, %110 : vector<8x128xf32>
    %119 = arith.addf %117, %118 : vector<8x128xf32>
    %120 = math.tanh %119 : vector<8x128xf32>
    %121 = arith.mulf %116, %120 : vector<8x128xf32>
    %122 = arith.truncf %121 : vector<8x128xf32> to vector<8x128xbf16>
    %123 = arith.index_cast %c2_i32 : i32 to index
    %c0_41 = arith.constant 0 : index
    %c0_42 = arith.constant 0 : index
    %124 = vector.load %arg7[%123, %c0_41, %c0_42] : memref<8x8x128xbf16, #tpu.memory_space<vmem>>, vector<1x8x128xbf16>
    %125 = vector.shape_cast %124 : vector<1x8x128xbf16> to vector<8x128xbf16>
    %126 = vector.shape_cast %122 : vector<8x128xbf16> to vector<1x8x128xbf16>
    tpu.vector_store %arg7[%123, %c0_41, %c0_42], %126 {strides = array<i32>} : memref<8x8x128xbf16, #tpu.memory_space<vmem>>, vector<1x8x128xbf16>,
    %c3_i32 = arith.constant 3 : i32
    %c8_i32_43 = arith.constant 8 : i32
    %127 = arith.muli %c3_i32, %c8_i32_43 : i32
    %128 = tpu.assume_multiple %127, 8 : i32
    %129 = arith.index_cast %128 : i32 to index
    %c0_44 = arith.constant 0 : index
    %130 = vector.load %arg10[%129, %c0_44] : memref<64x512xf32, #tpu.memory_space<vmem>>, vector<8x512xf32>
    %131 = arith.truncf %121 : vector<8x128xf32> to vector<8x128xbf16>
    %c0_45 = arith.constant 0 : index
    %c0_46 = arith.constant 0 : index
    %132 = vector.load %arg3[%c0_45, %c0_46] : memref<128x512xbf16, #tpu.memory_space<vmem>>, vector<128x512xbf16>
    %cst_47 = arith.constant dense<0.000000e+00> : vector<8x512xf32>
    %133 = tpu.matmul %131, %132, %cst_47 {dimension_numbers = #tpu.dot_dimension_numbers<[1], [0], [0], [1], [0, 0, 1, 1], [], []>} : vector<8x128xbf16>, vector<128x512xbf16>, vector<8x512xf32> -> vector<8x512xf32>
    %134 = arith.addf %130, %133 : vector<8x512xf32>
    %135 = vector.extract_strided_slice %134 {offsets = [0, 0], sizes = [8, 128], strides = [1, 1]} : vector<8x512xf32> to vector<8x128xf32>
    %136 = arith.negf %135 : vector<8x128xf32>
    %137 = math.exp %136 : vector<8x128xf32>
    %cst_48 = arith.constant 1.000000e+00 : f32
    %138 = vector.broadcast %cst_48 : f32 to vector<8x128xf32>
    %139 = arith.addf %138, %137 : vector<8x128xf32>
    %140 = arith.divf %138, %139 : vector<8x128xf32>
    %141 = vector.extract_strided_slice %134 {offsets = [0, 128], sizes = [8, 128], strides = [1, 1]} : vector<8x512xf32> to vector<8x128xf32>
    %142 = arith.negf %141 : vector<8x128xf32>
    %143 = math.exp %142 : vector<8x128xf32>
    %cst_49 = arith.constant 1.000000e+00 : f32
    %144 = vector.broadcast %cst_49 : f32 to vector<8x128xf32>
    %145 = arith.addf %144, %143 : vector<8x128xf32>
    %146 = arith.divf %144, %145 : vector<8x128xf32>
    %147 = vector.extract_strided_slice %134 {offsets = [0, 256], sizes = [8, 128], strides = [1, 1]} : vector<8x512xf32> to vector<8x128xf32>
    %148 = math.tanh %147 : vector<8x128xf32>
    %149 = vector.extract_strided_slice %134 {offsets = [0, 384], sizes = [8, 128], strides = [1, 1]} : vector<8x512xf32> to vector<8x128xf32>
    %150 = arith.negf %149 : vector<8x128xf32>
    %151 = math.exp %150 : vector<8x128xf32>
    %cst_50 = arith.constant 1.000000e+00 : f32
    %152 = vector.broadcast %cst_50 : f32 to vector<8x128xf32>
    %153 = arith.addf %152, %151 : vector<8x128xf32>
    %154 = arith.divf %152, %153 : vector<8x128xf32>
    %155 = arith.mulf %146, %119 : vector<8x128xf32>
    %156 = arith.mulf %140, %148 : vector<8x128xf32>
    %157 = arith.addf %155, %156 : vector<8x128xf32>
    %158 = math.tanh %157 : vector<8x128xf32>
    %159 = arith.mulf %154, %158 : vector<8x128xf32>
    %160 = arith.truncf %159 : vector<8x128xf32> to vector<8x128xbf16>
    %161 = arith.index_cast %c3_i32 : i32 to index
    %c0_51 = arith.constant 0 : index
    %c0_52 = arith.constant 0 : index
    %162 = vector.load %arg7[%161, %c0_51, %c0_52] : memref<8x8x128xbf16, #tpu.memory_space<vmem>>, vector<1x8x128xbf16>
    %163 = vector.shape_cast %162 : vector<1x8x128xbf16> to vector<8x128xbf16>
    %164 = vector.shape_cast %160 : vector<8x128xbf16> to vector<1x8x128xbf16>
    tpu.vector_store %arg7[%161, %c0_51, %c0_52], %164 {strides = array<i32>} : memref<8x8x128xbf16, #tpu.memory_space<vmem>>, vector<1x8x128xbf16>,
    %c4_i32 = arith.constant 4 : i32
    %c8_i32_53 = arith.constant 8 : i32
    %165 = arith.muli %c4_i32, %c8_i32_53 : i32
    %166 = tpu.assume_multiple %165, 8 : i32
    %167 = arith.index_cast %166 : i32 to index
    %c0_54 = arith.constant 0 : index
    %168 = vector.load %arg10[%167, %c0_54] : memref<64x512xf32, #tpu.memory_space<vmem>>, vector<8x512xf32>
    %169 = arith.truncf %159 : vector<8x128xf32> to vector<8x128xbf16>
    %c0_55 = arith.constant 0 : index
    %c0_56 = arith.constant 0 : index
    %170 = vector.load %arg3[%c0_55, %c0_56] : memref<128x512xbf16, #tpu.memory_space<vmem>>, vector<128x512xbf16>
    %cst_57 = arith.constant dense<0.000000e+00> : vector<8x512xf32>
    %171 = tpu.matmul %169, %170, %cst_57 {dimension_numbers = #tpu.dot_dimension_numbers<[1], [0], [0], [1], [0, 0, 1, 1], [], []>} : vector<8x128xbf16>, vector<128x512xbf16>, vector<8x512xf32> -> vector<8x512xf32>
    %172 = arith.addf %168, %171 : vector<8x512xf32>
    %173 = vector.extract_strided_slice %172 {offsets = [0, 0], sizes = [8, 128], strides = [1, 1]} : vector<8x512xf32> to vector<8x128xf32>
    %174 = arith.negf %173 : vector<8x128xf32>
    %175 = math.exp %174 : vector<8x128xf32>
    %cst_58 = arith.constant 1.000000e+00 : f32
    %176 = vector.broadcast %cst_58 : f32 to vector<8x128xf32>
    %177 = arith.addf %176, %175 : vector<8x128xf32>
    %178 = arith.divf %176, %177 : vector<8x128xf32>
    %179 = vector.extract_strided_slice %172 {offsets = [0, 128], sizes = [8, 128], strides = [1, 1]} : vector<8x512xf32> to vector<8x128xf32>
    %180 = arith.negf %179 : vector<8x128xf32>
    %181 = math.exp %180 : vector<8x128xf32>
    %cst_59 = arith.constant 1.000000e+00 : f32
    %182 = vector.broadcast %cst_59 : f32 to vector<8x128xf32>
    %183 = arith.addf %182, %181 : vector<8x128xf32>
    %184 = arith.divf %182, %183 : vector<8x128xf32>
    %185 = vector.extract_strided_slice %172 {offsets = [0, 256], sizes = [8, 128], strides = [1, 1]} : vector<8x512xf32> to vector<8x128xf32>
    %186 = math.tanh %185 : vector<8x128xf32>
    %187 = vector.extract_strided_slice %172 {offsets = [0, 384], sizes = [8, 128], strides = [1, 1]} : vector<8x512xf32> to vector<8x128xf32>
    %188 = arith.negf %187 : vector<8x128xf32>
    %189 = math.exp %188 : vector<8x128xf32>
    %cst_60 = arith.constant 1.000000e+00 : f32
    %190 = vector.broadcast %cst_60 : f32 to vector<8x128xf32>
    %191 = arith.addf %190, %189 : vector<8x128xf32>
    %192 = arith.divf %190, %191 : vector<8x128xf32>
    %193 = arith.mulf %184, %157 : vector<8x128xf32>
    %194 = arith.mulf %178, %186 : vector<8x128xf32>
    %195 = arith.addf %193, %194 : vector<8x128xf32>
    %196 = math.tanh %195 : vector<8x128xf32>
    %197 = arith.mulf %192, %196 : vector<8x128xf32>
    %198 = arith.truncf %197 : vector<8x128xf32> to vector<8x128xbf16>
    %199 = arith.index_cast %c4_i32 : i32 to index
    %c0_61 = arith.constant 0 : index
    %c0_62 = arith.constant 0 : index
    %200 = vector.load %arg7[%199, %c0_61, %c0_62] : memref<8x8x128xbf16, #tpu.memory_space<vmem>>, vector<1x8x128xbf16>
    %201 = vector.shape_cast %200 : vector<1x8x128xbf16> to vector<8x128xbf16>
    %202 = vector.shape_cast %198 : vector<8x128xbf16> to vector<1x8x128xbf16>
    tpu.vector_store %arg7[%199, %c0_61, %c0_62], %202 {strides = array<i32>} : memref<8x8x128xbf16, #tpu.memory_space<vmem>>, vector<1x8x128xbf16>,
    %c5_i32 = arith.constant 5 : i32
    %c8_i32_63 = arith.constant 8 : i32
    %203 = arith.muli %c5_i32, %c8_i32_63 : i32
    %204 = tpu.assume_multiple %203, 8 : i32
    %205 = arith.index_cast %204 : i32 to index
    %c0_64 = arith.constant 0 : index
    %206 = vector.load %arg10[%205, %c0_64] : memref<64x512xf32, #tpu.memory_space<vmem>>, vector<8x512xf32>
    %207 = arith.truncf %197 : vector<8x128xf32> to vector<8x128xbf16>
    %c0_65 = arith.constant 0 : index
    %c0_66 = arith.constant 0 : index
    %208 = vector.load %arg3[%c0_65, %c0_66] : memref<128x512xbf16, #tpu.memory_space<vmem>>, vector<128x512xbf16>
    %cst_67 = arith.constant dense<0.000000e+00> : vector<8x512xf32>
    %209 = tpu.matmul %207, %208, %cst_67 {dimension_numbers = #tpu.dot_dimension_numbers<[1], [0], [0], [1], [0, 0, 1, 1], [], []>} : vector<8x128xbf16>, vector<128x512xbf16>, vector<8x512xf32> -> vector<8x512xf32>
    %210 = arith.addf %206, %209 : vector<8x512xf32>
    %211 = vector.extract_strided_slice %210 {offsets = [0, 0], sizes = [8, 128], strides = [1, 1]} : vector<8x512xf32> to vector<8x128xf32>
    %212 = arith.negf %211 : vector<8x128xf32>
    %213 = math.exp %212 : vector<8x128xf32>
    %cst_68 = arith.constant 1.000000e+00 : f32
    %214 = vector.broadcast %cst_68 : f32 to vector<8x128xf32>
    %215 = arith.addf %214, %213 : vector<8x128xf32>
    %216 = arith.divf %214, %215 : vector<8x128xf32>
    %217 = vector.extract_strided_slice %210 {offsets = [0, 128], sizes = [8, 128], strides = [1, 1]} : vector<8x512xf32> to vector<8x128xf32>
    %218 = arith.negf %217 : vector<8x128xf32>
    %219 = math.exp %218 : vector<8x128xf32>
    %cst_69 = arith.constant 1.000000e+00 : f32
    %220 = vector.broadcast %cst_69 : f32 to vector<8x128xf32>
    %221 = arith.addf %220, %219 : vector<8x128xf32>
    %222 = arith.divf %220, %221 : vector<8x128xf32>
    %223 = vector.extract_strided_slice %210 {offsets = [0, 256], sizes = [8, 128], strides = [1, 1]} : vector<8x512xf32> to vector<8x128xf32>
    %224 = math.tanh %223 : vector<8x128xf32>
    %225 = vector.extract_strided_slice %210 {offsets = [0, 384], sizes = [8, 128], strides = [1, 1]} : vector<8x512xf32> to vector<8x128xf32>
    %226 = arith.negf %225 : vector<8x128xf32>
    %227 = math.exp %226 : vector<8x128xf32>
    %cst_70 = arith.constant 1.000000e+00 : f32
    %228 = vector.broadcast %cst_70 : f32 to vector<8x128xf32>
    %229 = arith.addf %228, %227 : vector<8x128xf32>
    %230 = arith.divf %228, %229 : vector<8x128xf32>
    %231 = arith.mulf %222, %195 : vector<8x128xf32>
    %232 = arith.mulf %216, %224 : vector<8x128xf32>
    %233 = arith.addf %231, %232 : vector<8x128xf32>
    %234 = math.tanh %233 : vector<8x128xf32>
    %235 = arith.mulf %230, %234 : vector<8x128xf32>
    %236 = arith.truncf %235 : vector<8x128xf32> to vector<8x128xbf16>
    %237 = arith.index_cast %c5_i32 : i32 to index
    %c0_71 = arith.constant 0 : index
    %c0_72 = arith.constant 0 : index
    %238 = vector.load %arg7[%237, %c0_71, %c0_72] : memref<8x8x128xbf16, #tpu.memory_space<vmem>>, vector<1x8x128xbf16>
    %239 = vector.shape_cast %238 : vector<1x8x128xbf16> to vector<8x128xbf16>
    %240 = vector.shape_cast %236 : vector<8x128xbf16> to vector<1x8x128xbf16>
    tpu.vector_store %arg7[%237, %c0_71, %c0_72], %240 {strides = array<i32>} : memref<8x8x128xbf16, #tpu.memory_space<vmem>>, vector<1x8x128xbf16>,
    %c6_i32 = arith.constant 6 : i32
    %c8_i32_73 = arith.constant 8 : i32
    %241 = arith.muli %c6_i32, %c8_i32_73 : i32
    %242 = tpu.assume_multiple %241, 8 : i32
    %243 = arith.index_cast %242 : i32 to index
    %c0_74 = arith.constant 0 : index
    %244 = vector.load %arg10[%243, %c0_74] : memref<64x512xf32, #tpu.memory_space<vmem>>, vector<8x512xf32>
    %245 = arith.truncf %235 : vector<8x128xf32> to vector<8x128xbf16>
    %c0_75 = arith.constant 0 : index
    %c0_76 = arith.constant 0 : index
    %246 = vector.load %arg3[%c0_75, %c0_76] : memref<128x512xbf16, #tpu.memory_space<vmem>>, vector<128x512xbf16>
    %cst_77 = arith.constant dense<0.000000e+00> : vector<8x512xf32>
    %247 = tpu.matmul %245, %246, %cst_77 {dimension_numbers = #tpu.dot_dimension_numbers<[1], [0], [0], [1], [0, 0, 1, 1], [], []>} : vector<8x128xbf16>, vector<128x512xbf16>, vector<8x512xf32> -> vector<8x512xf32>
    %248 = arith.addf %244, %247 : vector<8x512xf32>
    %249 = vector.extract_strided_slice %248 {offsets = [0, 0], sizes = [8, 128], strides = [1, 1]} : vector<8x512xf32> to vector<8x128xf32>
    %250 = arith.negf %249 : vector<8x128xf32>
    %251 = math.exp %250 : vector<8x128xf32>
    %cst_78 = arith.constant 1.000000e+00 : f32
    %252 = vector.broadcast %cst_78 : f32 to vector<8x128xf32>
    %253 = arith.addf %252, %251 : vector<8x128xf32>
    %254 = arith.divf %252, %253 : vector<8x128xf32>
    %255 = vector.extract_strided_slice %248 {offsets = [0, 128], sizes = [8, 128], strides = [1, 1]} : vector<8x512xf32> to vector<8x128xf32>
    %256 = arith.negf %255 : vector<8x128xf32>
    %257 = math.exp %256 : vector<8x128xf32>
    %cst_79 = arith.constant 1.000000e+00 : f32
    %258 = vector.broadcast %cst_79 : f32 to vector<8x128xf32>
    %259 = arith.addf %258, %257 : vector<8x128xf32>
    %260 = arith.divf %258, %259 : vector<8x128xf32>
    %261 = vector.extract_strided_slice %248 {offsets = [0, 256], sizes = [8, 128], strides = [1, 1]} : vector<8x512xf32> to vector<8x128xf32>
    %262 = math.tanh %261 : vector<8x128xf32>
    %263 = vector.extract_strided_slice %248 {offsets = [0, 384], sizes = [8, 128], strides = [1, 1]} : vector<8x512xf32> to vector<8x128xf32>
    %264 = arith.negf %263 : vector<8x128xf32>
    %265 = math.exp %264 : vector<8x128xf32>
    %cst_80 = arith.constant 1.000000e+00 : f32
    %266 = vector.broadcast %cst_80 : f32 to vector<8x128xf32>
    %267 = arith.addf %266, %265 : vector<8x128xf32>
    %268 = arith.divf %266, %267 : vector<8x128xf32>
    %269 = arith.mulf %260, %233 : vector<8x128xf32>
    %270 = arith.mulf %254, %262 : vector<8x128xf32>
    %271 = arith.addf %269, %270 : vector<8x128xf32>
    %272 = math.tanh %271 : vector<8x128xf32>
    %273 = arith.mulf %268, %272 : vector<8x128xf32>
    %274 = arith.truncf %273 : vector<8x128xf32> to vector<8x128xbf16>
    %275 = arith.index_cast %c6_i32 : i32 to index
    %c0_81 = arith.constant 0 : index
    %c0_82 = arith.constant 0 : index
    %276 = vector.load %arg7[%275, %c0_81, %c0_82] : memref<8x8x128xbf16, #tpu.memory_space<vmem>>, vector<1x8x128xbf16>
    %277 = vector.shape_cast %276 : vector<1x8x128xbf16> to vector<8x128xbf16>
    %278 = vector.shape_cast %274 : vector<8x128xbf16> to vector<1x8x128xbf16>
    tpu.vector_store %arg7[%275, %c0_81, %c0_82], %278 {strides = array<i32>} : memref<8x8x128xbf16, #tpu.memory_space<vmem>>, vector<1x8x128xbf16>,
    %c7_i32 = arith.constant 7 : i32
    %c8_i32_83 = arith.constant 8 : i32
    %279 = arith.muli %c7_i32, %c8_i32_83 : i32
    %280 = tpu.assume_multiple %279, 8 : i32
    %281 = arith.index_cast %280 : i32 to index
    %c0_84 = arith.constant 0 : index
    %282 = vector.load %arg10[%281, %c0_84] : memref<64x512xf32, #tpu.memory_space<vmem>>, vector<8x512xf32>
    %283 = arith.truncf %273 : vector<8x128xf32> to vector<8x128xbf16>
    %c0_85 = arith.constant 0 : index
    %c0_86 = arith.constant 0 : index
    %284 = vector.load %arg3[%c0_85, %c0_86] : memref<128x512xbf16, #tpu.memory_space<vmem>>, vector<128x512xbf16>
    %cst_87 = arith.constant dense<0.000000e+00> : vector<8x512xf32>
    %285 = tpu.matmul %283, %284, %cst_87 {dimension_numbers = #tpu.dot_dimension_numbers<[1], [0], [0], [1], [0, 0, 1, 1], [], []>} : vector<8x128xbf16>, vector<128x512xbf16>, vector<8x512xf32> -> vector<8x512xf32>
    %286 = arith.addf %282, %285 : vector<8x512xf32>
    %287 = vector.extract_strided_slice %286 {offsets = [0, 0], sizes = [8, 128], strides = [1, 1]} : vector<8x512xf32> to vector<8x128xf32>
    %288 = arith.negf %287 : vector<8x128xf32>
    %289 = math.exp %288 : vector<8x128xf32>
    %cst_88 = arith.constant 1.000000e+00 : f32
    %290 = vector.broadcast %cst_88 : f32 to vector<8x128xf32>
    %291 = arith.addf %290, %289 : vector<8x128xf32>
    %292 = arith.divf %290, %291 : vector<8x128xf32>
    %293 = vector.extract_strided_slice %286 {offsets = [0, 128], sizes = [8, 128], strides = [1, 1]} : vector<8x512xf32> to vector<8x128xf32>
    %294 = arith.negf %293 : vector<8x128xf32>
    %295 = math.exp %294 : vector<8x128xf32>
    %cst_89 = arith.constant 1.000000e+00 : f32
    %296 = vector.broadcast %cst_89 : f32 to vector<8x128xf32>
    %297 = arith.addf %296, %295 : vector<8x128xf32>
    %298 = arith.divf %296, %297 : vector<8x128xf32>
    %299 = vector.extract_strided_slice %286 {offsets = [0, 256], sizes = [8, 128], strides = [1, 1]} : vector<8x512xf32> to vector<8x128xf32>
    %300 = math.tanh %299 : vector<8x128xf32>
    %301 = vector.extract_strided_slice %286 {offsets = [0, 384], sizes = [8, 128], strides = [1, 1]} : vector<8x512xf32> to vector<8x128xf32>
    %302 = arith.negf %301 : vector<8x128xf32>
    %303 = math.exp %302 : vector<8x128xf32>
    %cst_90 = arith.constant 1.000000e+00 : f32
    %304 = vector.broadcast %cst_90 : f32 to vector<8x128xf32>
    %305 = arith.addf %304, %303 : vector<8x128xf32>
    %306 = arith.divf %304, %305 : vector<8x128xf32>
    %307 = arith.mulf %298, %271 : vector<8x128xf32>
    %308 = arith.mulf %292, %300 : vector<8x128xf32>
    %309 = arith.addf %307, %308 : vector<8x128xf32>
    %310 = math.tanh %309 : vector<8x128xf32>
    %311 = arith.mulf %306, %310 : vector<8x128xf32>
    %312 = arith.truncf %311 : vector<8x128xf32> to vector<8x128xbf16>
    %313 = arith.index_cast %c7_i32 : i32 to index
    %c0_91 = arith.constant 0 : index
    %c0_92 = arith.constant 0 : index
    %314 = vector.load %arg7[%313, %c0_91, %c0_92] : memref<8x8x128xbf16, #tpu.memory_space<vmem>>, vector<1x8x128xbf16>
    %315 = vector.shape_cast %314 : vector<1x8x128xbf16> to vector<8x128xbf16>
    %316 = vector.shape_cast %312 : vector<8x128xbf16> to vector<1x8x128xbf16>
    tpu.vector_store %arg7[%313, %c0_91, %c0_92], %316 {strides = array<i32>} : memref<8x8x128xbf16, #tpu.memory_space<vmem>>, vector<1x8x128xbf16>,
    %c8_i32_93 = arith.constant 8 : i32
    %c0_94 = arith.constant 0 : index
    %c0_95 = arith.constant 0 : index
    %317 = vector.load %arg11[%c0_94, %c0_95] : memref<8x128xf32, #tpu.memory_space<vmem>>, vector<8x128xf32>
    tpu.vector_store %arg11[%c0_94, %c0_95], %311 {strides = array<i32>} : memref<8x128xf32, #tpu.memory_space<vmem>>, vector<8x128xf32>,
    %c0_96 = arith.constant 0 : index
    %c0_97 = arith.constant 0 : index
    %318 = vector.load %arg12[%c0_96, %c0_97] : memref<8x128xf32, #tpu.memory_space<vmem>>, vector<8x128xf32>
    tpu.vector_store %arg12[%c0_96, %c0_97], %309 {strides = array<i32>} : memref<8x128xf32, #tpu.memory_space<vmem>>, vector<8x128xf32>,
    %c0_i32_98 = arith.constant 0 : i32
    %319 = arith.cmpi eq, %arg0, %c0_i32_98 : i32
    %320 = arith.extui %319 : i1 to i32
    %c0_i32_99 = arith.constant 0 : i32
    %321 = arith.cmpi ne, %320, %c0_i32_99 : i32
    scf.if %321 {
      %c0_100 = arith.constant 0 : index
      %c0_101 = arith.constant 0 : index
      %322 = vector.load %arg8[%c0_100, %c0_101] : memref<8x128xf32, #tpu.memory_space<vmem>>, vector<8x128xf32>
      tpu.vector_store %arg8[%c0_100, %c0_101], %311 {strides = array<i32>} : memref<8x128xf32, #tpu.memory_space<vmem>>, vector<8x128xf32>,
      %c0_102 = arith.constant 0 : index
      %c0_103 = arith.constant 0 : index
      %323 = vector.load %arg9[%c0_102, %c0_103] : memref<8x128xf32, #tpu.memory_space<vmem>>, vector<8x128xf32>
      tpu.vector_store %arg9[%c0_102, %c0_103], %309 {strides = array<i32>} : memref<8x128xf32, #tpu.memory_space<vmem>>, vector<8x128xf32>,
    } else {
    }
    return
  }
  func.func @transform_0(%arg0: i32) -> (i32, i32, i32) {
    %c0_i32 = arith.constant 0 : i32
    %c0_i32_0 = arith.constant 0 : i32
    %c0_i32_1 = arith.constant 0 : i32
    return %arg0, %c0_i32, %c0_i32_0 : i32, i32, i32
  }
  func.func @transform_1(%arg0: i32) -> (i32, i32) {
    %c0_i32 = arith.constant 0 : i32
    %c0_i32_0 = arith.constant 0 : i32
    %c0_i32_1 = arith.constant 0 : i32
    return %c0_i32, %c0_i32_0 : i32, i32
  }
  func.func @transform_2(%arg0: i32) -> (i32, i32) {
    %c0_i32 = arith.constant 0 : i32
    %c0_i32_0 = arith.constant 0 : i32
    %c0_i32_1 = arith.constant 0 : i32
    return %c0_i32, %c0_i32_0 : i32, i32
  }
  func.func @transform_3(%arg0: i32) -> (i32, i32) {
    %c0_i32 = arith.constant 0 : i32
    %c0_i32_0 = arith.constant 0 : i32
    %c0_i32_1 = arith.constant 0 : i32
    return %c0_i32, %c0_i32_0 : i32, i32
  }
  func.func @transform_4(%arg0: i32) -> (i32, i32) {
    %c0_i32 = arith.constant 0 : i32
    %c0_i32_0 = arith.constant 0 : i32
    %c0_i32_1 = arith.constant 0 : i32
    return %c0_i32, %c0_i32_0 : i32, i32
  }
  func.func @transform_5(%arg0: i32) -> (i32, i32) {
    %c0_i32 = arith.constant 0 : i32
    %c0_i32_0 = arith.constant 0 : i32
    %c0_i32_1 = arith.constant 0 : i32
    return %c0_i32, %c0_i32_0 : i32, i32
  }
  func.func @transform_6(%arg0: i32) -> (i32, i32, i32) {
    %c0_i32 = arith.constant 0 : i32
    %c0_i32_0 = arith.constant 0 : i32
    %c0_i32_1 = arith.constant 0 : i32
    return %arg0, %c0_i32, %c0_i32_0 : i32, i32, i32
  }
  func.func @transform_7(%arg0: i32) -> (i32, i32) {
    %c0_i32 = arith.constant 0 : i32
    %c0_i32_0 = arith.constant 0 : i32
    %c0_i32_1 = arith.constant 0 : i32
    return %c0_i32, %c0_i32_0 : i32, i32
  }
  func.func @transform_8(%arg0: i32) -> (i32, i32) {
    %c0_i32 = arith.constant 0 : i32
    %c0_i32_0 = arith.constant 0 : i32
    %c0_i32_1 = arith.constant 0 : i32
    return %c0_i32, %c0_i32_0 : i32, i32
  }
}

</mosaic_0001>

<llo_original>
// kernel: tpu_custom_call.1
$region0: #{tpu_custom_call.1}
  #allocation0 [shape = 'u32[]', space=smem, size = 0x4, offset = 0x4, fixed_abs, tag = 'smem constant byte address 0x4 - core index']
  #allocation1 [shape = 'u32[144,128]{1,0:T(1,128)}', space=vmem, size = 0x12000, scoped, tag = 'internal scratch']
  #allocation2 [shape = 'f32[64,512]{1,0:T(8,128)}', space=vmem, size = 0x20000, scoped, tag = 'scratch operand']
  #allocation3 [shape = 'f32[8,128]{1,0:T(8,128)}', space=vmem, size = 0x1000, scoped, tag = 'scratch operand']
  #allocation4 [shape = 'f32[8,128]{1,0:T(8,128)}', space=vmem, size = 0x1000, scoped, tag = 'scratch operand']
  %s0 = inlined_call_operand.hbm [shape: bf16[8,8,128], index: 0, kind: input, shape index: {}]
  %s1 = inlined_call_operand.hbm [shape: bf16[128,512], index: 1, kind: input, shape index: {}]
  %s2 = inlined_call_operand.hbm [shape: bf16[128,512], index: 2, kind: input, shape index: {}]
  %s3 = inlined_call_operand.hbm [shape: f32[1,512], index: 3, kind: input, shape index: {}]
  %s4 = inlined_call_operand.vmem [shape: f32[8,128], index: 4, kind: input, shape index: {}]
  %s5 = inlined_call_operand.vmem [shape: f32[8,128], index: 5, kind: input, shape index: {}]
  %s6 = inlined_call_operand.hbm [shape: bf16[8,8,128], index: 6, kind: output, shape index: {0}]
  %s7 = inlined_call_operand.hbm [shape: f32[8,128], index: 7, kind: output, shape index: {1}]
  %s8 = inlined_call_operand.hbm [shape: f32[8,128], index: 8, kind: output, shape index: {2}]
  %9 = xla_tuple %s6, %s7, %s8
  %s10 = sld [smem:[#allocation0]]
  $region74: #{tpu_custom_call.1} parent=0
    _
  %s12 = ssub.s32 1, %s10
  %s13 = scalar_select 0, %s12, %s10
  $region1: #{tpu_custom_call.1} parent=0
    #allocation5 [shape = 'u8[16384]{0}', space=vmem, size = 0x4000, scoped, tag = 'input window, operand 0, single buffered']
    #allocation6 [shape = 's32[1]{0}', space=sflag, size = 0x4, scoped, tag = 'scoped memory for tpu_custom_call.1']
    #allocation7 [shape = 's32[1]{0}', space=sflag, size = 0x4, scoped, tag = 'scoped memory for tpu_custom_call.1']
    #allocation8 [shape = 'u8[131072]{0}', space=vmem, size = 0x20000, scoped, tag = 'input window, operand 1, single buffered']
    #allocation9 [shape = 's32[1]{0}', space=sflag, size = 0x4, scoped, tag = 'scoped memory for tpu_custom_call.1']
    #allocation10 [shape = 'u8[131072]{0}', space=vmem, size = 0x20000, scoped, tag = 'input window, operand 2, single buffered']
    #allocation11 [shape = 'u8[2048]{0}', space=vmem, size = 0x800, scoped, tag = 'input window, operand 3, single buffered']
    #allocation12 [shape = 's32[1]{0}', space=sflag, size = 0x4, scoped, tag = 'scoped memory for tpu_custom_call.1']
    #allocation13 [shape = 'u8[16384]{0}', space=vmem, size = 0x4000, scoped, tag = 'output window, operand 0, single buffered']
    #allocation14 [shape = 'u8[4096]{0}', space=vmem, size = 0x1000, scoped, tag = 'output window, operand 1, single buffered']
    #allocation15 [shape = 's32[1]{0}', space=sflag, size = 0x4, scoped, tag = 'scoped memory for tpu_custom_call.1']
    #allocation16 [shape = 'u8[4096]{0}', space=vmem, size = 0x1000, scoped, tag = 'output window, operand 2, single buffered']
    %14 = vsyncpa [#allocation6], 0
    %15 = vsyncpa [#allocation9], 0
    %16 = vsyncpa [#allocation12], 0
    %17 = vsyncpa [#allocation7], 0
    %18 = vsyncpa [#allocation15], 0
    // Predicated region
    $region2: #{tpu_custom_call.1} parent=1 // pred_check
      _
    $region3: #{tpu_custom_call.1} parent=1 // pred_check_branch
      %20 = sbr.rel (0) target = $region5
    $region4: #{tpu_custom_call.1} parent=1 // pred_region
      %s22 = ssub.s32 512, 512
      %23 = vsyncadd [#allocation6], %s22
      %s24 = sshll.u32 [#allocation5], 4
      %s25 = int_to_ptr.vmem [resolvable:$true] %s24
      %30 = dma.hbm_to_vmem [thread:$0]  %s0, 512, %s25, [#allocation6], 64, 64, 4
    $region5: #{tpu_custom_call.1} parent=1 // pred_fallthru
      _
    // Predicated region
    $region6: #{tpu_custom_call.1} parent=1 // pred_check
      _
    $region7: #{tpu_custom_call.1} parent=1 // pred_check_branch
      %32 = sbr.rel (0) target = $region9
    $region8: #{tpu_custom_call.1} parent=1 // pred_region
      %s34 = ssub.s32 4096, 4096
      %35 = vsyncadd [#allocation9], %s34
      %s36 = sshll.u32 [#allocation8], 4
      %s37 = int_to_ptr.vmem [resolvable:$true] %s36
      %42 = dma.hbm_to_vmem [thread:$0]  %s1, 4096, %s37, [#allocation9], 256, 256, 16
    $region9: #{tpu_custom_call.1} parent=1 // pred_fallthru
      _
    // Predicated region
    $region10: #{tpu_custom_call.1} parent=1 // pred_check
      _
    $region11: #{tpu_custom_call.1} parent=1 // pred_check_branch
      %44 = sbr.rel (0) target = $region13
    $region12: #{tpu_custom_call.1} parent=1 // pred_region
      %s46 = ssub.s32 4096, 4096
      %47 = vsyncadd [#allocation9], %s46
      %s48 = sshll.u32 [#allocation10], 4
      %s49 = int_to_ptr.vmem [resolvable:$true] %s48
      %54 = dma.hbm_to_vmem [thread:$0]  %s2, 4096, %s49, [#allocation9], 256, 256, 16
    $region13: #{tpu_custom_call.1} parent=1 // pred_fallthru
      _
    // Predicated region
    $region14: #{tpu_custom_call.1} parent=1 // pred_check
      _
    $region15: #{tpu_custom_call.1} parent=1 // pred_check_branch
      %56 = sbr.rel (0) target = $region17
    $region16: #{tpu_custom_call.1} parent=1 // pred_region
      %s58 = ssub.s32 64, 64
      %59 = vsyncadd [#allocation12], %s58
      %s61 = sshll.u32 [#allocation11], 4
      %s62 = int_to_ptr.vmem [resolvable:$true] %s61
      %64 = dma.hbm_to_vmem [thread:$0]  %s3, 64, %s62, [#allocation12]
    $region17: #{tpu_custom_call.1} parent=1 // pred_fallthru
      _
    // Predicated region
    $region18: #{tpu_custom_call.1} parent=1 // pred_check
      _
    $region19: #{tpu_custom_call.1} parent=1 // pred_check_branch
      %66 = sbr.rel (0) target = $region21
    $region20: #{tpu_custom_call.1} parent=1 // pred_region
      _
    $region21: #{tpu_custom_call.1} parent=1 // pred_fallthru
      _
    // Predicated region
    $region22: #{tpu_custom_call.1} parent=1 // pred_check
      _
    $region23: #{tpu_custom_call.1} parent=1 // pred_check_branch
      %68 = sbr.rel (0) target = $region25
    $region24: #{tpu_custom_call.1} parent=1 // pred_region
      _
    $region25: #{tpu_custom_call.1} parent=1 // pred_fallthru
      _
    // Predicated region
    $region26: #{tpu_custom_call.1} parent=1 // pred_check
      _
    $region27: #{tpu_custom_call.1} parent=1 // pred_check_branch
      %70 = sbr.rel (0) target = $region29
    $region28: #{tpu_custom_call.1} parent=1 // pred_region
      %71 = dma.done [#allocation6], 512
    $region29: #{tpu_custom_call.1} parent=1 // pred_fallthru
      _
    // Predicated region
    $region30: #{tpu_custom_call.1} parent=1 // pred_check
      _
    $region31: #{tpu_custom_call.1} parent=1 // pred_check_branch
      %73 = sbr.rel (0) target = $region33
    $region32: #{tpu_custom_call.1} parent=1 // pred_region
      %74 = dma.done [#allocation9], 4096
    $region33: #{tpu_custom_call.1} parent=1 // pred_fallthru
      _
    // Predicated region
    $region34: #{tpu_custom_call.1} parent=1 // pred_check
      _
    $region35: #{tpu_custom_call.1} parent=1 // pred_check_branch
      %76 = sbr.rel (0) target = $region37
    $region36: #{tpu_custom_call.1} parent=1 // pred_region
      %77 = dma.done [#allocation9], 4096
    $region37: #{tpu_custom_call.1} parent=1 // pred_fallthru
      _
    // Predicated region
    $region38: #{tpu_custom_call.1} parent=1 // pred_check
      _
    $region39: #{tpu_custom_call.1} parent=1 // pred_check_branch
      %79 = sbr.rel (0) target = $region41
    $region40: #{tpu_custom_call.1} parent=1 // pred_region
      %80 = dma.done [#allocation12], 64
    $region41: #{tpu_custom_call.1} parent=1 // pred_fallthru
      _
    %p82 = scmp.eq.s32.totalorder 0, 0
    // Predicated region
    $region42: #{tpu_custom_call.1} parent=1 // pred_check
      %p83 = pneg %p82
    $region43: #{tpu_custom_call.1} parent=1 // pred_check_branch
      %85 = sbr.rel (%p83) target = $region45
    $region44: #{tpu_custom_call.1} parent=1 // pred_region
      %v86 = vld [vmem:[%s4] sm:$0xff]
      %87 = vst [vmem:[#allocation3] sm:$0xff] %v86
      %v88 = vld [vmem:[%s5] sm:$0xff]
      %89 = vst [vmem:[#allocation4] sm:$0xff] %v88
    $region45: #{tpu_custom_call.1} parent=1 // pred_fallthru
      _
    %v90 = vld [vmem:[#allocation5] sm:$0xf]
    %v91 = vld [vmem:[#allocation5 + $0x4] sm:$0xf]
    %v92 = vld [vmem:[#allocation5 + $0x8] sm:$0xf]
    %v93 = vld [vmem:[#allocation5 + $0xc] sm:$0xf]
    %v94 = vld [vmem:[#allocation5 + $0x10] sm:$0xf]
    %v95 = vld [vmem:[#allocation5 + $0x14] sm:$0xf]
    %v96 = vld [vmem:[#allocation5 + $0x18] sm:$0xf]
    %v97 = vld [vmem:[#allocation5 + $0x1c] sm:$0xf]
    %v98 = vld [vmem:[#allocation8] sm:$0xff]
    %v99 = vld [vmem:[#allocation8 + $0x8] sm:$0xff]
    %v100 = vld [vmem:[#allocation8 + $0x10] sm:$0xff]
    %v101 = vld [vmem:[#allocation8 + $0x18] sm:$0xff]
    %v102 = vld [vmem:[#allocation8 + $0x20] sm:$0xff]
    %v103 = vld [vmem:[#allocation8 + $0x28] sm:$0xff]
    %v104 = vld [vmem:[#allocation8 + $0x30] sm:$0xff]
    %v105 = vld [vmem:[#allocation8 + $0x38] sm:$0xff]
    %v106 = vld [vmem:[#allocation8 + $0x40] sm:$0xff]
    %v107 = vld [vmem:[#allocation8 + $0x48] sm:$0xff]
    %v108 = vld [vmem:[#allocation8 + $0x50] sm:$0xff]
    %v109 = vld [vmem:[#allocation8 + $0x58] sm:$0xff]
    %v110 = vld [vmem:[#allocation8 + $0x60] sm:$0xff]
    %v111 = vld [vmem:[#allocation8 + $0x68] sm:$0xff]
    %v112 = vld [vmem:[#allocation8 + $0x70] sm:$0xff]
    %v113 = vld [vmem:[#allocation8 + $0x78] sm:$0xff]
    %v114 = vld [vmem:[#allocation8 + $0x80] sm:$0xff]
    %v115 = vld [vmem:[#allocation8 + $0x88] sm:$0xff]
    %v116 = vld [vmem:[#allocation8 + $0x90] sm:$0xff]
    %v117 = vld [vmem:[#allocation8 + $0x98] sm:$0xff]
    %v118 = vld [vmem:[#allocation8 + $0xa0] sm:$0xff]
    %v119 = vld [vmem:[#allocation8 + $0xa8] sm:$0xff]
    %v120 = vld [vmem:[#allocation8 + $0xb0] sm:$0xff]
    %v121 = vld [vmem:[#allocation8 + $0xb8] sm:$0xff]
    %v122 = vld [vmem:[#allocation8 + $0xc0] sm:$0xff]
    %v123 = vld [vmem:[#allocation8 + $0xc8] sm:$0xff]
    %v124 = vld [vmem:[#allocation8 + $0xd0] sm:$0xff]
    %v125 = vld [vmem:[#allocation8 + $0xd8] sm:$0xff]
    %v126 = vld [vmem:[#allocation8 + $0xe0] sm:$0xff]
    %v127 = vld [vmem:[#allocation8 + $0xe8] sm:$0xff]
    %v128 = vld [vmem:[#allocation8 + $0xf0] sm:$0xff]
    %v129 = vld [vmem:[#allocation8 + $0xf8] sm:$0xff]
    %v130 = vld [vmem:[#allocation11] sm:$0xf]
    %v132 = vlaneseq
    %v133 = vshrl.u32 %v132, 7
    %v134 = vsub.s32 0, %v133
    %v135 = vrot.slane %v130, %v134
    %v136 = vlaneseq
    %v137 = vshrl.u32 %v136, 7
    %v138 = vsub.s32 1, %v137
    %v139 = vrot.slane %v130, %v138
    %v140 = vlaneseq
    %v141 = vshrl.u32 %v140, 7
    %v142 = vsub.s32 2, %v141
    %v143 = vrot.slane %v130, %v142
    %v144 = vlaneseq
    %v145 = vshrl.u32 %v144, 7
    %v146 = vsub.s32 3, %v145
    %v147 = vrot.slane %v130, %v146
    %v160 = vunpack.c.l.b16 %v90
    %v161 = vunpack.c.l.b16 %v91
    %v162 = vunpack.c.l.b16 %v92
    %v163 = vunpack.c.l.b16 %v93
    %v164 = vunpack.c.l.b16 %v94
    %v165 = vunpack.c.l.b16 %v95
    %v166 = vunpack.c.l.b16 %v96
    %v167 = vunpack.c.l.b16 %v97
    %v168 = vpack.c.b16 %v161, %v160
    %v169 = vpack.c.b16 %v163, %v162
    %v170 = vpack.c.b16 %v165, %v164
    %v171 = vpack.c.b16 %v167, %v166
    %v208 = vunpack.c.l.b16 %v98
    %v209 = vunpack.c.h.b16 %v98
    %v210 = vunpack.c.l.b16 %v99
    %v211 = vunpack.c.h.b16 %v99
    %v212 = vunpack.c.l.b16 %v100
    %v213 = vunpack.c.h.b16 %v100
    %v214 = vunpack.c.l.b16 %v101
    %v215 = vunpack.c.h.b16 %v101
    %v216 = vunpack.c.l.b16 %v102
    %v217 = vunpack.c.h.b16 %v102
    %v218 = vunpack.c.l.b16 %v103
    %v219 = vunpack.c.h.b16 %v103
    %v220 = vunpack.c.l.b16 %v104
    %v221 = vunpack.c.h.b16 %v104
    %v222 = vunpack.c.l.b16 %v105
    %v223 = vunpack.c.h.b16 %v105
    %v224 = vunpack.c.l.b16 %v106
    %v225 = vunpack.c.h.b16 %v106
    %v226 = vunpack.c.l.b16 %v107
    %v227 = vunpack.c.h.b16 %v107
    %v228 = vunpack.c.l.b16 %v108
    %v229 = vunpack.c.h.b16 %v108
    %v230 = vunpack.c.l.b16 %v109
    %v231 = vunpack.c.h.b16 %v109
    %v232 = vunpack.c.l.b16 %v110
    %v233 = vunpack.c.h.b16 %v110
    %v234 = vunpack.c.l.b16 %v111
    %v235 = vunpack.c.h.b16 %v111
    %v236 = vunpack.c.l.b16 %v112
    %v237 = vunpack.c.h.b16 %v112
    %v238 = vunpack.c.l.b16 %v113
    %v239 = vunpack.c.h.b16 %v113
    %v240 = vunpack.c.l.b16 %v114
    %v241 = vunpack.c.h.b16 %v114
    %v242 = vunpack.c.l.b16 %v115
    %v243 = vunpack.c.h.b16 %v115
    %v244 = vunpack.c.l.b16 %v116
    %v245 = vunpack.c.h.b16 %v116
    %v246 = vunpack.c.l.b16 %v117
    %v247 = vunpack.c.h.b16 %v117
    %v248 = vunpack.c.l.b16 %v118
    %v249 = vunpack.c.h.b16 %v118
    %v250 = vunpack.c.l.b16 %v119
    %v251 = vunpack.c.h.b16 %v119
    %v252 = vunpack.c.l.b16 %v120
    %v253 = vunpack.c.h.b16 %v120
    %v254 = vunpack.c.l.b16 %v121
    %v255 = vunpack.c.h.b16 %v121
    %v256 = vunpack.c.l.b16 %v122
    %v257 = vunpack.c.h.b16 %v122
    %v258 = vunpack.c.l.b16 %v123
    %v259 = vunpack.c.h.b16 %v123
    %v260 = vunpack.c.l.b16 %v124
    %v261 = vunpack.c.h.b16 %v124
    %v262 = vunpack.c.l.b16 %v125
    %v263 = vunpack.c.h.b16 %v125
    %v264 = vunpack.c.l.b16 %v126
    %v265 = vunpack.c.h.b16 %v126
    %v266 = vunpack.c.l.b16 %v127
    %v267 = vunpack.c.h.b16 %v127
    %v268 = vunpack.c.l.b16 %v128
    %v269 = vunpack.c.h.b16 %v128
    %v270 = vunpack.c.l.b16 %v129
    %v271 = vunpack.c.h.b16 %v129
    %v272 = vpack.c.b16 %v212, %v208
    %v273 = vpack.c.b16 %v213, %v209
    %v274 = vpack.c.b16 %v214, %v210
    %v275 = vpack.c.b16 %v215, %v211
    %v276 = vpack.c.b16 %v220, %v216
    %v277 = vpack.c.b16 %v221, %v217
    %v278 = vpack.c.b16 %v222, %v218
    %v279 = vpack.c.b16 %v223, %v219
    %v280 = vpack.c.b16 %v228, %v224
    %v281 = vpack.c.b16 %v229, %v225
    %v282 = vpack.c.b16 %v230, %v226
    %v283 = vpack.c.b16 %v231, %v227
    %v284 = vpack.c.b16 %v236, %v232
    %v285 = vpack.c.b16 %v237, %v233
    %v286 = vpack.c.b16 %v238, %v234
    %v287 = vpack.c.b16 %v239, %v235
    %v288 = vpack.c.b16 %v244, %v240
    %v289 = vpack.c.b16 %v245, %v241
    %v290 = vpack.c.b16 %v246, %v242
    %v291 = vpack.c.b16 %v247, %v243
    %v292 = vpack.c.b16 %v252, %v248
    %v293 = vpack.c.b16 %v253, %v249
    %v294 = vpack.c.b16 %v254, %v250
    %v295 = vpack.c.b16 %v255, %v251
    %v296 = vpack.c.b16 %v260, %v256
    %v297 = vpack.c.b16 %v261, %v257
    %v298 = vpack.c.b16 %v262, %v258
    %v299 = vpack.c.b16 %v263, %v259
    %v300 = vpack.c.b16 %v268, %v264
    %v301 = vpack.c.b16 %v269, %v265
    %v302 = vpack.c.b16 %v270, %v266
    %v303 = vpack.c.b16 %v271, %v267
    %336 = vmatprep.subr.bf16.mxu0 %v273
    %337 = vmatpush1.bf16.msra.mxu0 %v272
    %338 = vmatprep.subr.bf16.mxu0 %v277
    %339 = vmatpush1.bf16.msra.mxu0 %v276
    %340 = vmatprep.subr.bf16.mxu0 %v281
    %341 = vmatpush1.bf16.msra.mxu0 %v280
    %342 = vmatprep.subr.bf16.mxu0 %v285
    %343 = vmatpush1.bf16.msra.mxu0 %v284
    %344 = vmatprep.subr.bf16.mxu0 %v289
    %345 = vmatpush1.bf16.msra.mxu0 %v288
    %346 = vmatprep.subr.bf16.mxu0 %v293
    %347 = vmatpush1.bf16.msra.mxu0 %v292
    %348 = vmatprep.subr.bf16.mxu0 %v297
    %349 = vmatpush1.bf16.msra.mxu0 %v296
    %350 = vmatprep.subr.bf16.mxu0 %v301
    %351 = vmatpush1.bf16.msra.mxu0 %v300
    %352 = vmatprep.subr.bf16.mxu0 0
    %353 = vmatpush1.bf16.msra.mxu0 0
    %354 = vmatprep.subr.bf16.mxu0 0
    %355 = vmatpush1.bf16.msra.mxu0 0
    %356 = vmatprep.subr.bf16.mxu0 0
    %357 = vmatpush1.bf16.msra.mxu0 0
    %358 = vmatprep.subr.bf16.mxu0 0
    %359 = vmatpush1.bf16.msra.mxu0 0
    %360 = vmatprep.subr.bf16.mxu0 0
    %361 = vmatpush1.bf16.msra.mxu0 0
    %362 = vmatprep.subr.bf16.mxu0 0
    %363 = vmatpush1.bf16.msra.mxu0 0
    %364 = vmatprep.subr.bf16.mxu0 0
    %365 = vmatpush1.bf16.msra.mxu0 0
    %366 = vmatprep.subr.bf16.mxu0 0
    %367 = vmatpush1.bf16.msra.mxu0 0
    %368 = vmatprep.mubr.bf16.mxu0 0
    %369 = vmatmul.mubr.bf16.gmra.mrb[0].mxu0 %v168
    %v370 = vpop.f32.mrb[0].mxu0
    %v371 = vadd.f32 %v135, %v370
    %v372 = vpop.f32.mrb[0].mxu0
    %v373 = vadd.f32 %v139, %v372
    %v374 = vpop.f32.mrb[0].mxu0
    %v375 = vadd.f32 %v135, %v374
    %v376 = vpop.f32.mrb[0].mxu0
    %v377 = vadd.f32 %v139, %v376
    %378 = vmatprep.mubr.bf16.mxu0 0
    %379 = vmatmul.mubr.bf16.gmra.mrb[0].mxu0 %v169
    %v380 = vpop.f32.mrb[0].mxu0
    %v381 = vadd.f32 %v135, %v380
    %v382 = vpop.f32.mrb[0].mxu0
    %v383 = vadd.f32 %v139, %v382
    %v384 = vpop.f32.mrb[0].mxu0
    %v385 = vadd.f32 %v135, %v384
    %v386 = vpop.f32.mrb[0].mxu0
    %v387 = vadd.f32 %v139, %v386
    %388 = vmatprep.mubr.bf16.mxu0 0
    %389 = vmatmul.mubr.bf16.gmra.mrb[0].mxu0 %v170
    %v390 = vpop.f32.mrb[0].mxu0
    %v391 = vadd.f32 %v135, %v390
    %v392 = vpop.f32.mrb[0].mxu0
    %v393 = vadd.f32 %v139, %v392
    %v394 = vpop.f32.mrb[0].mxu0
    %v395 = vadd.f32 %v135, %v394
    %v396 = vpop.f32.mrb[0].mxu0
    %v397 = vadd.f32 %v139, %v396
    %398 = vmatprep.mubr.bf16.mxu0 0
    %399 = vmatmul.mubr.bf16.gmra.mrb[0].mxu0 %v171
    %v400 = vpop.f32.mrb[0].mxu0
    %v401 = vadd.f32 %v135, %v400
    %v402 = vpop.f32.mrb[0].mxu0
    %v403 = vadd.f32 %v139, %v402
    %v404 = vpop.f32.mrb[0].mxu0
    %v405 = vadd.f32 %v135, %v404
    %v406 = vpop.f32.mrb[0].mxu0
    %v407 = vadd.f32 %v139, %v406
    %408 = vdwg.mxu0
    %409 = vmatprep.subr.bf16.mxu0 %v275
    %410 = vmatpush1.bf16.msra.mxu0 %v274
    %411 = vmatprep.subr.bf16.mxu0 %v279
    %412 = vmatpush1.bf16.msra.mxu0 %v278
    %413 = vmatprep.subr.bf16.mxu0 %v283
    %414 = vmatpush1.bf16.msra.mxu0 %v282
    %415 = vmatprep.subr.bf16.mxu0 %v287
    %416 = vmatpush1.bf16.msra.mxu0 %v286
    %417 = vmatprep.subr.bf16.mxu0 %v291
    %418 = vmatpush1.bf16.msra.mxu0 %v290
    %419 = vmatprep.subr.bf16.mxu0 %v295
    %420 = vmatpush1.bf16.msra.mxu0 %v294
    %421 = vmatprep.subr.bf16.mxu0 %v299
    %422 = vmatpush1.bf16.msra.mxu0 %v298
    %423 = vmatprep.subr.bf16.mxu0 %v303
    %424 = vmatpush1.bf16.msra.mxu0 %v302
    %425 = vmatprep.subr.bf16.mxu0 0
    %426 = vmatpush1.bf16.msra.mxu0 0
    %427 = vmatprep.subr.bf16.mxu0 0
    %428 = vmatpush1.bf16.msra.mxu0 0
    %429 = vmatprep.subr.bf16.mxu0 0
    %430 = vmatpush1.bf16.msra.mxu0 0
    %431 = vmatprep.subr.bf16.mxu0 0
    %432 = vmatpush1.bf16.msra.mxu0 0
    %433 = vmatprep.subr.bf16.mxu0 0
    %434 = vmatpush1.bf16.msra.mxu0 0
    %435 = vmatprep.subr.bf16.mxu0 0
    %436 = vmatpush1.bf16.msra.mxu0 0
    %437 = vmatprep.subr.bf16.mxu0 0
    %438 = vmatpush1.bf16.msra.mxu0 0
    %439 = vmatprep.subr.bf16.mxu0 0
    %440 = vmatpush1.bf16.msra.mxu0 0
    %441 = vmatprep.mubr.bf16.mxu0 0
    %442 = vmatmul.mubr.bf16.gmra.mrb[0].mxu0 %v168
    %v443 = vpop.f32.mrb[0].mxu0
    %v444 = vadd.f32 %v143, %v443
    %v445 = vpop.f32.mrb[0].mxu0
    %v446 = vadd.f32 %v147, %v445
    %v447 = vpop.f32.mrb[0].mxu0
    %v448 = vadd.f32 %v143, %v447
    %v449 = vpop.f32.mrb[0].mxu0
    %v450 = vadd.f32 %v147, %v449
    %451 = vmatprep.mubr.bf16.mxu0 0
    %452 = vmatmul.mubr.bf16.gmra.mrb[0].mxu0 %v169
    %v453 = vpop.f32.mrb[0].mxu0
    %v454 = vadd.f32 %v143, %v453
    %v455 = vpop.f32.mrb[0].mxu0
    %v456 = vadd.f32 %v147, %v455
    %v457 = vpop.f32.mrb[0].mxu0
    %v458 = vadd.f32 %v143, %v457
    %v459 = vpop.f32.mrb[0].mxu0
    %v460 = vadd.f32 %v147, %v459
    %461 = vmatprep.mubr.bf16.mxu0 0
    %462 = vmatmul.mubr.bf16.gmra.mrb[0].mxu0 %v170
    %v463 = vpop.f32.mrb[0].mxu0
    %v464 = vadd.f32 %v143, %v463
    %v465 = vpop.f32.mrb[0].mxu0
    %v466 = vadd.f32 %v147, %v465
    %v467 = vpop.f32.mrb[0].mxu0
    %v468 = vadd.f32 %v143, %v467
    %v469 = vpop.f32.mrb[0].mxu0
    %v470 = vadd.f32 %v147, %v469
    %471 = vmatprep.mubr.bf16.mxu0 0
    %472 = vmatmul.mubr.bf16.gmra.mrb[0].mxu0 %v171
    %v473 = vpop.f32.mrb[0].mxu0
    %v474 = vadd.f32 %v143, %v473
    %v475 = vpop.f32.mrb[0].mxu0
    %v476 = vadd.f32 %v147, %v475
    %v477 = vpop.f32.mrb[0].mxu0
    %v478 = vadd.f32 %v143, %v477
    %v479 = vpop.f32.mrb[0].mxu0
    %v480 = vadd.f32 %v147, %v479
    %481 = vdwg.mxu0
    %482 = vst [vmem:[#allocation2] sm:$0xff] %v371
    %483 = vst [vmem:[#allocation2 + $0x8] sm:$0xff] %v373
    %484 = vst [vmem:[#allocation2 + $0x10] sm:$0xff] %v444
    %485 = vst [vmem:[#allocation2 + $0x18] sm:$0xff] %v446
    %486 = vst [vmem:[#allocation2 + $0x20] sm:$0xff] %v375
    %487 = vst [vmem:[#allocation2 + $0x28] sm:$0xff] %v377
    %488 = vst [vmem:[#allocation2 + $0x30] sm:$0xff] %v448
    %489 = vst [vmem:[#allocation2 + $0x38] sm:$0xff] %v450
    %490 = vst [vmem:[#allocation2 + $0x40] sm:$0xff] %v381
    %491 = vst [vmem:[#allocation2 + $0x48] sm:$0xff] %v383
    %492 = vst [vmem:[#allocation2 + $0x50] sm:$0xff] %v454
    %493 = vst [vmem:[#allocation2 + $0x58] sm:$0xff] %v456
    %494 = vst [vmem:[#allocation2 + $0x60] sm:$0xff] %v385
    %495 = vst [vmem:[#allocation2 + $0x68] sm:$0xff] %v387
    %496 = vst [vmem:[#allocation2 + $0x70] sm:$0xff] %v458
    %497 = vst [vmem:[#allocation2 + $0x78] sm:$0xff] %v460
    %498 = vst [vmem:[#allocation2 + $0x80] sm:$0xff] %v391
    %499 = vst [vmem:[#allocation2 + $0x88] sm:$0xff] %v393
    %500 = vst [vmem:[#allocation2 + $0x90] sm:$0xff] %v464
    %501 = vst [vmem:[#allocation2 + $0x98] sm:$0xff] %v466
    %502 = vst [vmem:[#allocation2 + $0xa0] sm:$0xff] %v395
    %503 = vst [vmem:[#allocation2 + $0xa8] sm:$0xff] %v397
    %504 = vst [vmem:[#allocation2 + $0xb0] sm:$0xff] %v468
    %505 = vst [vmem:[#allocation2 + $0xb8] sm:$0xff] %v470
    %506 = vst [vmem:[#allocation2 + $0xc0] sm:$0xff] %v401
    %507 = vst [vmem:[#allocation2 + $0xc8] sm:$0xff] %v403
    %508 = vst [vmem:[#allocation2 + $0xd0] sm:$0xff] %v474
    %509 = vst [vmem:[#allocation2 + $0xd8] sm:$0xff] %v476
    %510 = vst [vmem:[#allocation2 + $0xe0] sm:$0xff] %v405
    %511 = vst [vmem:[#allocation2 + $0xe8] sm:$0xff] %v407
    %512 = vst [vmem:[#allocation2 + $0xf0] sm:$0xff] %v478
    %513 = vst [vmem:[#allocation2 + $0xf8] sm:$0xff] %v480
    %v514 = vld [vmem:[#allocation3] sm:$0xff]
    %v515 = vld [vmem:[#allocation4] sm:$0xff]
    %s516 = smul.u32 0, 4
    %s517 = smul.addr %s516, 8
    %s518 = scalar_lea.vmem [#allocation2], %s517
    %v519 = vld [vmem:[%s518] sm:$0xff]
    %v520 = vld [vmem:[%s518 + $0x8] sm:$0xff]
    %v521 = vld [vmem:[%s518 + $0x10] sm:$0xff]
    %v522 = vld [vmem:[%s518 + $0x18] sm:$0xff]
    %v523 = vpack.c.bf16 %v514, %v514
    %v524 = vld [vmem:[#allocation10] sm:$0xff]
    %v525 = vld [vmem:[#allocation10 + $0x8] sm:$0xff]
    %v526 = vld [vmem:[#allocation10 + $0x10] sm:$0xff]
    %v527 = vld [vmem:[#allocation10 + $0x18] sm:$0xff]
    %v528 = vld [vmem:[#allocation10 + $0x20] sm:$0xff]
    %v529 = vld [vmem:[#allocation10 + $0x28] sm:$0xff]
    %v530 = vld [vmem:[#allocation10 + $0x30] sm:$0xff]
    %v531 = vld [vmem:[#allocation10 + $0x38] sm:$0xff]
    %v532 = vld [vmem:[#allocation10 + $0x40] sm:$0xff]
    %v533 = vld [vmem:[#allocation10 + $0x48] sm:$0xff]
    %v534 = vld [vmem:[#allocation10 + $0x50] sm:$0xff]
    %v535 = vld [vmem:[#allocation10 + $0x58] sm:$0xff]
    %v536 = vld [vmem:[#allocation10 + $0x60] sm:$0xff]
    %v537 = vld [vmem:[#allocation10 + $0x68] sm:$0xff]
    %v538 = vld [vmem:[#allocation10 + $0x70] sm:$0xff]
    %v539 = vld [vmem:[#allocation10 + $0x78] sm:$0xff]
    %v540 = vld [vmem:[#allocation10 + $0x80] sm:$0xff]
    %v541 = vld [vmem:[#allocation10 + $0x88] sm:$0xff]
    %v542 = vld [vmem:[#allocation10 + $0x90] sm:$0xff]
    %v543 = vld [vmem:[#allocation10 + $0x98] sm:$0xff]
    %v544 = vld [vmem:[#allocation10 + $0xa0] sm:$0xff]
    %v545 = vld [vmem:[#allocation10 + $0xa8] sm:$0xff]
    %v546 = vld [vmem:[#allocation10 + $0xb0] sm:$0xff]
    %v547 = vld [vmem:[#allocation10 + $0xb8] sm:$0xff]
    %v548 = vld [vmem:[#allocation10 + $0xc0] sm:$0xff]
    %v549 = vld [vmem:[#allocation10 + $0xc8] sm:$0xff]
    %v550 = vld [vmem:[#allocation10 + $0xd0] sm:$0xff]
    %v551 = vld [vmem:[#allocation10 + $0xd8] sm:$0xff]
    %v552 = vld [vmem:[#allocation10 + $0xe0] sm:$0xff]
    %v553 = vld [vmem:[#allocation10 + $0xe8] sm:$0xff]
    %v554 = vld [vmem:[#allocation10 + $0xf0] sm:$0xff]
    %v555 = vld [vmem:[#allocation10 + $0xf8] sm:$0xff]
    %v588 = vunpack.c.l.b16 %v524
    %v589 = vunpack.c.h.b16 %v524
    %v590 = vunpack.c.l.b16 %v525
    %v591 = vunpack.c.h.b16 %v525
    %v592 = vunpack.c.l.b16 %v526
    %v593 = vunpack.c.h.b16 %v526
    %v594 = vunpack.c.l.b16 %v527
    %v595 = vunpack.c.h.b16 %v527
    %v596 = vunpack.c.l.b16 %v528
    %v597 = vunpack.c.h.b16 %v528
    %v598 = vunpack.c.l.b16 %v529
    %v599 = vunpack.c.h.b16 %v529
    %v600 = vunpack.c.l.b16 %v530
    %v601 = vunpack.c.h.b16 %v530
    %v602 = vunpack.c.l.b16 %v531
    %v603 = vunpack.c.h.b16 %v531
    %v604 = vunpack.c.l.b16 %v532
    %v605 = vunpack.c.h.b16 %v532
    %v606 = vunpack.c.l.b16 %v533
    %v607 = vunpack.c.h.b16 %v533
    %v608 = vunpack.c.l.b16 %v534
    %v609 = vunpack.c.h.b16 %v534
    %v610 = vunpack.c.l.b16 %v535
    %v611 = vunpack.c.h.b16 %v535
    %v612 = vunpack.c.l.b16 %v536
    %v613 = vunpack.c.h.b16 %v536
    %v614 = vunpack.c.l.b16 %v537
    %v615 = vunpack.c.h.b16 %v537
    %v616 = vunpack.c.l.b16 %v538
    %v617 = vunpack.c.h.b16 %v538
    %v618 = vunpack.c.l.b16 %v539
    %v619 = vunpack.c.h.b16 %v539
    %v620 = vunpack.c.l.b16 %v540
    %v621 = vunpack.c.h.b16 %v540
    %v622 = vunpack.c.l.b16 %v541
    %v623 = vunpack.c.h.b16 %v541
    %v624 = vunpack.c.l.b16 %v542
    %v625 = vunpack.c.h.b16 %v542
    %v626 = vunpack.c.l.b16 %v543
    %v627 = vunpack.c.h.b16 %v543
    %v628 = vunpack.c.l.b16 %v544
    %v629 = vunpack.c.h.b16 %v544
    %v630 = vunpack.c.l.b16 %v545
    %v631 = vunpack.c.h.b16 %v545
    %v632 = vunpack.c.l.b16 %v546
    %v633 = vunpack.c.h.b16 %v546
    %v634 = vunpack.c.l.b16 %v547
    %v635 = vunpack.c.h.b16 %v547
    %v636 = vunpack.c.l.b16 %v548
    %v637 = vunpack.c.h.b16 %v548
    %v638 = vunpack.c.l.b16 %v549
    %v639 = vunpack.c.h.b16 %v549
    %v640 = vunpack.c.l.b16 %v550
    %v641 = vunpack.c.h.b16 %v550
    %v642 = vunpack.c.l.b16 %v551
    %v643 = vunpack.c.h.b16 %v551
    %v644 = vunpack.c.l.b16 %v552
    %v645 = vunpack.c.h.b16 %v552
    %v646 = vunpack.c.l.b16 %v553
    %v647 = vunpack.c.h.b16 %v553
    %v648 = vunpack.c.l.b16 %v554
    %v649 = vunpack.c.h.b16 %v554
    %v650 = vunpack.c.l.b16 %v555
    %v651 = vunpack.c.h.b16 %v555
    %v652 = vpack.c.b16 %v592, %v588
    %v653 = vpack.c.b16 %v593, %v589
    %v654 = vpack.c.b16 %v594, %v590
    %v655 = vpack.c.b16 %v595, %v591
    %v656 = vpack.c.b16 %v600, %v596
    %v657 = vpack.c.b16 %v601, %v597
    %v658 = vpack.c.b16 %v602, %v598
    %v659 = vpack.c.b16 %v603, %v599
    %v660 = vpack.c.b16 %v608, %v604
    %v661 = vpack.c.b16 %v609, %v605
    %v662 = vpack.c.b16 %v610, %v606
    %v663 = vpack.c.b16 %v611, %v607
    %v664 = vpack.c.b16 %v616, %v612
    %v665 = vpack.c.b16 %v617, %v613
    %v666 = vpack.c.b16 %v618, %v614
    %v667 = vpack.c.b16 %v619, %v615
    %v668 = vpack.c.b16 %v624, %v620
    %v669 = vpack.c.b16 %v625, %v621
    %v670 = vpack.c.b16 %v626, %v622
    %v671 = vpack.c.b16 %v627, %v623
    %v672 = vpack.c.b16 %v632, %v628
    %v673 = vpack.c.b16 %v633, %v629
    %v674 = vpack.c.b16 %v634, %v630
    %v675 = vpack.c.b16 %v635, %v631
    %v676 = vpack.c.b16 %v640, %v636
    %v677 = vpack.c.b16 %v641, %v637
    %v678 = vpack.c.b16 %v642, %v638
    %v679 = vpack.c.b16 %v643, %v639
    %v680 = vpack.c.b16 %v648, %v644
    %v681 = vpack.c.b16 %v649, %v645
    %v682 = vpack.c.b16 %v650, %v646
    %v683 = vpack.c.b16 %v651, %v647
    %716 = vmatprep.subr.bf16.mxu0 %v653
    %717 = vmatpush1.bf16.msra.mxu0 %v652
    %718 = vmatprep.subr.bf16.mxu0 %v657
    %719 = vmatpush1.bf16.msra.mxu0 %v656
    %720 = vmatprep.subr.bf16.mxu0 %v661
    %721 = vmatpush1.bf16.msra.mxu0 %v660
    %722 = vmatprep.subr.bf16.mxu0 %v665
    %723 = vmatpush1.bf16.msra.mxu0 %v664
    %724 = vmatprep.subr.bf16.mxu0 %v669
    %725 = vmatpush1.bf16.msra.mxu0 %v668
    %726 = vmatprep.subr.bf16.mxu0 %v673
    %727 = vmatpush1.bf16.msra.mxu0 %v672
    %728 = vmatprep.subr.bf16.mxu0 %v677
    %729 = vmatpush1.bf16.msra.mxu0 %v676
    %730 = vmatprep.subr.bf16.mxu0 %v681
    %731 = vmatpush1.bf16.msra.mxu0 %v680
    %732 = vmatprep.subr.bf16.mxu0 0
    %733 = vmatpush1.bf16.msra.mxu0 0
    %734 = vmatprep.subr.bf16.mxu0 0
    %735 = vmatpush1.bf16.msra.mxu0 0
    %736 = vmatprep.subr.bf16.mxu0 0
    %737 = vmatpush1.bf16.msra.mxu0 0
    %738 = vmatprep.subr.bf16.mxu0 0
    %739 = vmatpush1.bf16.msra.mxu0 0
    %740 = vmatprep.subr.bf16.mxu0 0
    %741 = vmatpush1.bf16.msra.mxu0 0
    %742 = vmatprep.subr.bf16.mxu0 0
    %743 = vmatpush1.bf16.msra.mxu0 0
    %744 = vmatprep.subr.bf16.mxu0 0
    %745 = vmatpush1.bf16.msra.mxu0 0
    %746 = vmatprep.subr.bf16.mxu0 0
    %747 = vmatpush1.bf16.msra.mxu0 0
    %748 = vmatprep.mubr.bf16.mxu0 0
    %749 = vmatmul.mubr.bf16.gmra.mrb[0].mxu0 %v523
    %v750 = vpop.f32.mrb[0].mxu0
    %v751 = vadd.f32 0.0, %v750
    %v752 = vpop.f32.mrb[0].mxu0
    %v753 = vadd.f32 0.0, %v752
    %v754 = vpop.f32.mrb[0].mxu0
    %v755 = vpop.f32.mrb[0].mxu0
    %756 = vdwg.mxu0
    %757 = vmatprep.subr.bf16.mxu0 %v655
    %758 = vmatpush1.bf16.msra.mxu0 %v654
    %759 = vmatprep.subr.bf16.mxu0 %v659
    %760 = vmatpush1.bf16.msra.mxu0 %v658
    %761 = vmatprep.subr.bf16.mxu0 %v663
    %762 = vmatpush1.bf16.msra.mxu0 %v662
    %763 = vmatprep.subr.bf16.mxu0 %v667
    %764 = vmatpush1.bf16.msra.mxu0 %v666
    %765 = vmatprep.subr.bf16.mxu0 %v671
    %766 = vmatpush1.bf16.msra.mxu0 %v670
    %767 = vmatprep.subr.bf16.mxu0 %v675
    %768 = vmatpush1.bf16.msra.mxu0 %v674
    %769 = vmatprep.subr.bf16.mxu0 %v679
    %770 = vmatpush1.bf16.msra.mxu0 %v678
    %771 = vmatprep.subr.bf16.mxu0 %v683
    %772 = vmatpush1.bf16.msra.mxu0 %v682
    %773 = vmatprep.subr.bf16.mxu0 0
    %774 = vmatpush1.bf16.msra.mxu0 0
    %775 = vmatprep.subr.bf16.mxu0 0
    %776 = vmatpush1.bf16.msra.mxu0 0
    %777 = vmatprep.subr.bf16.mxu0 0
    %778 = vmatpush1.bf16.msra.mxu0 0
    %779 = vmatprep.subr.bf16.mxu0 0
    %780 = vmatpush1.bf16.msra.mxu0 0
    %781 = vmatprep.subr.bf16.mxu0 0
    %782 = vmatpush1.bf16.msra.mxu0 0
    %783 = vmatprep.subr.bf16.mxu0 0
    %784 = vmatpush1.bf16.msra.mxu0 0
    %785 = vmatprep.subr.bf16.mxu0 0
    %786 = vmatpush1.bf16.msra.mxu0 0
    %787 = vmatprep.subr.bf16.mxu0 0
    %788 = vmatpush1.bf16.msra.mxu0 0
    %789 = vmatprep.mubr.bf16.mxu0 0
    %790 = vmatmul.mubr.bf16.gmra.mrb[0].mxu0 %v523
    %v791 = vpop.f32.mrb[0].mxu0
    %v792 = vadd.f32 0.0, %v791
    %v793 = vpop.f32.mrb[0].mxu0
    %v794 = vadd.f32 0.0, %v793
    %v795 = vpop.f32.mrb[0].mxu0
    %v796 = vpop.f32.mrb[0].mxu0
    %797 = vdwg.mxu0
    %v798 = vadd.f32 %v519, %v751
    %v799 = vadd.f32 %v520, %v753
    %v800 = vadd.f32 %v521, %v792
    %v801 = vadd.f32 %v522, %v794
    %v802 = vxor.u32 %v798, 2147483648
    %v803 = vmul.f32 %v802, 1.442695
    %v804 = vpow.pop %v803
    %v805 = vadd.f32 %v804, 1.0
    %v806 = vrcp.pop %v805
    %v807 = vmul.f32 1.0, %v806
    %v808 = vxor.u32 %v799, 2147483648
    %v809 = vmul.f32 %v808, 1.442695
    %v810 = vpow.pop %v809
    %v811 = vadd.f32 %v810, 1.0
    %v812 = vrcp.pop %v811
    %v813 = vmul.f32 1.0, %v812
    %v814 = vtanh.pop %v800
    %v815 = vxor.u32 %v801, 2147483648
    %v816 = vmul.f32 %v815, 1.442695
    %v817 = vpow.pop %v816
    %v818 = vadd.f32 %v817, 1.0
    %v819 = vrcp.pop %v818
    %v820 = vmul.f32 1.0, %v819
    %v821 = vmul.f32 %v813, %v515
    %v822 = vmul.f32 %v807, %v814
    %v823 = vadd.f32 %v821, %v822
    %v824 = vtanh.pop %v823
    %v825 = vmul.f32 %v820, %v824
    %v826 = vpack.c.bf16 %v825, %v825
    %827 = vst [vmem:[#allocation13] sm:$0xf] %v826
    %s828 = smul.u32 1, 4
    %s829 = smul.addr %s828, 8
    %s830 = scalar_lea.vmem [#allocation2], %s829
    %v831 = vld [vmem:[%s830] sm:$0xff]
    %v832 = vld [vmem:[%s830 + $0x8] sm:$0xff]
    %v833 = vld [vmem:[%s830 + $0x10] sm:$0xff]
    %v834 = vld [vmem:[%s830 + $0x18] sm:$0xff]
    %v835 = vld [vmem:[#allocation10] sm:$0xff]
    %v836 = vld [vmem:[#allocation10 + $0x8] sm:$0xff]
    %v837 = vld [vmem:[#allocation10 + $0x10] sm:$0xff]
    %v838 = vld [vmem:[#allocation10 + $0x18] sm:$0xff]
    %v839 = vld [vmem:[#allocation10 + $0x20] sm:$0xff]
    %v840 = vld [vmem:[#allocation10 + $0x28] sm:$0xff]
    %v841 = vld [vmem:[#allocation10 + $0x30] sm:$0xff]
    %v842 = vld [vmem:[#allocation10 + $0x38] sm:$0xff]
    %v843 = vld [vmem:[#allocation10 + $0x40] sm:$0xff]
    %v844 = vld [vmem:[#allocation10 + $0x48] sm:$0xff]
    %v845 = vld [vmem:[#allocation10 + $0x50] sm:$0xff]
    %v846 = vld [vmem:[#allocation10 + $0x58] sm:$0xff]
    %v847 = vld [vmem:[#allocation10 + $0x60] sm:$0xff]
    %v848 = vld [vmem:[#allocation10 + $0x68] sm:$0xff]
    %v849 = vld [vmem:[#allocation10 + $0x70] sm:$0xff]
    %v850 = vld [vmem:[#allocation10 + $0x78] sm:$0xff]
    %v851 = vld [vmem:[#allocation10 + $0x80] sm:$0xff]
    %v852 = vld [vmem:[#allocation10 + $0x88] sm:$0xff]
    %v853 = vld [vmem:[#allocation10 + $0x90] sm:$0xff]
    %v854 = vld [vmem:[#allocation10 + $0x98] sm:$0xff]
    %v855 = vld [vmem:[#allocation10 + $0xa0] sm:$0xff]
    %v856 = vld [vmem:[#allocation10 + $0xa8] sm:$0xff]
    %v857 = vld [vmem:[#allocation10 + $0xb0] sm:$0xff]
    %v858 = vld [vmem:[#allocation10 + $0xb8] sm:$0xff]
    %v859 = vld [vmem:[#allocation10 + $0xc0] sm:$0xff]
    %v860 = vld [vmem:[#allocation10 + $0xc8] sm:$0xff]
    %v861 = vld [vmem:[#allocation10 + $0xd0] sm:$0xff]
    %v862 = vld [vmem:[#allocation10 + $0xd8] sm:$0xff]
    %v863 = vld [vmem:[#allocation10 + $0xe0] sm:$0xff]
    %v864 = vld [vmem:[#allocation10 + $0xe8] sm:$0xff]
    %v865 = vld [vmem:[#allocation10 + $0xf0] sm:$0xff]
    %v866 = vld [vmem:[#allocation10 + $0xf8] sm:$0xff]
    %v899 = vunpack.c.l.b16 %v835
    %v900 = vunpack.c.h.b16 %v835
    %v901 = vunpack.c.l.b16 %v836
    %v902 = vunpack.c.h.b16 %v836
    %v903 = vunpack.c.l.b16 %v837
    %v904 = vunpack.c.h.b16 %v837
    %v905 = vunpack.c.l.b16 %v838
    %v906 = vunpack.c.h.b16 %v838
    %v907 = vunpack.c.l.b16 %v839
    %v908 = vunpack.c.h.b16 %v839
    %v909 = vunpack.c.l.b16 %v840
    %v910 = vunpack.c.h.b16 %v840
    %v911 = vunpack.c.l.b16 %v841
    %v912 = vunpack.c.h.b16 %v841
    %v913 = vunpack.c.l.b16 %v842
    %v914 = vunpack.c.h.b16 %v842
    %v915 = vunpack.c.l.b16 %v843
    %v916 = vunpack.c.h.b16 %v843
    %v917 = vunpack.c.l.b16 %v844
    %v918 = vunpack.c.h.b16 %v844
    %v919 = vunpack.c.l.b16 %v845
    %v920 = vunpack.c.h.b16 %v845
    %v921 = vunpack.c.l.b16 %v846
    %v922 = vunpack.c.h.b16 %v846
    %v923 = vunpack.c.l.b16 %v847
    %v924 = vunpack.c.h.b16 %v847
    %v925 = vunpack.c.l.b16 %v848
    %v926 = vunpack.c.h.b16 %v848
    %v927 = vunpack.c.l.b16 %v849
    %v928 = vunpack.c.h.b16 %v849
    %v929 = vunpack.c.l.b16 %v850
    %v930 = vunpack.c.h.b16 %v850
    %v931 = vunpack.c.l.b16 %v851
    %v932 = vunpack.c.h.b16 %v851
    %v933 = vunpack.c.l.b16 %v852
    %v934 = vunpack.c.h.b16 %v852
    %v935 = vunpack.c.l.b16 %v853
    %v936 = vunpack.c.h.b16 %v853
    %v937 = vunpack.c.l.b16 %v854
    %v938 = vunpack.c.h.b16 %v854
    %v939 = vunpack.c.l.b16 %v855
    %v940 = vunpack.c.h.b16 %v855
    %v941 = vunpack.c.l.b16 %v856
    %v942 = vunpack.c.h.b16 %v856
    %v943 = vunpack.c.l.b16 %v857
    %v944 = vunpack.c.h.b16 %v857
    %v945 = vunpack.c.l.b16 %v858
    %v946 = vunpack.c.h.b16 %v858
    %v947 = vunpack.c.l.b16 %v859
    %v948 = vunpack.c.h.b16 %v859
    %v949 = vunpack.c.l.b16 %v860
    %v950 = vunpack.c.h.b16 %v860
    %v951 = vunpack.c.l.b16 %v861
    %v952 = vunpack.c.h.b16 %v861
    %v953 = vunpack.c.l.b16 %v862
    %v954 = vunpack.c.h.b16 %v862
    %v955 = vunpack.c.l.b16 %v863
    %v956 = vunpack.c.h.b16 %v863
    %v957 = vunpack.c.l.b16 %v864
    %v958 = vunpack.c.h.b16 %v864
    %v959 = vunpack.c.l.b16 %v865
    %v960 = vunpack.c.h.b16 %v865
    %v961 = vunpack.c.l.b16 %v866
    %v962 = vunpack.c.h.b16 %v866
    %v963 = vpack.c.b16 %v903, %v899
    %v964 = vpack.c.b16 %v904, %v900
    %v965 = vpack.c.b16 %v905, %v901
    %v966 = vpack.c.b16 %v906, %v902
    %v967 = vpack.c.b16 %v911, %v907
    %v968 = vpack.c.b16 %v912, %v908
    %v969 = vpack.c.b16 %v913, %v909
    %v970 = vpack.c.b16 %v914, %v910
    %v971 = vpack.c.b16 %v919, %v915
    %v972 = vpack.c.b16 %v920, %v916
    %v973 = vpack.c.b16 %v921, %v917
    %v974 = vpack.c.b16 %v922, %v918
    %v975 = vpack.c.b16 %v927, %v923
    %v976 = vpack.c.b16 %v928, %v924
    %v977 = vpack.c.b16 %v929, %v925
    %v978 = vpack.c.b16 %v930, %v926
    %v979 = vpack.c.b16 %v935, %v931
    %v980 = vpack.c.b16 %v936, %v932
    %v981 = vpack.c.b16 %v937, %v933
    %v982 = vpack.c.b16 %v938, %v934
    %v983 = vpack.c.b16 %v943, %v939
    %v984 = vpack.c.b16 %v944, %v940
    %v985 = vpack.c.b16 %v945, %v941
    %v986 = vpack.c.b16 %v946, %v942
    %v987 = vpack.c.b16 %v951, %v947
    %v988 = vpack.c.b16 %v952, %v948
    %v989 = vpack.c.b16 %v953, %v949
    %v990 = vpack.c.b16 %v954, %v950
    %v991 = vpack.c.b16 %v959, %v955
    %v992 = vpack.c.b16 %v960, %v956
    %v993 = vpack.c.b16 %v961, %v957
    %v994 = vpack.c.b16 %v962, %v958
    %1027 = vmatprep.subr.bf16.mxu0 %v964
    %1028 = vmatpush1.bf16.msra.mxu0 %v963
    %1029 = vmatprep.subr.bf16.mxu0 %v968
    %1030 = vmatpush1.bf16.msra.mxu0 %v967
    %1031 = vmatprep.subr.bf16.mxu0 %v972
    %1032 = vmatpush1.bf16.msra.mxu0 %v971
    %1033 = vmatprep.subr.bf16.mxu0 %v976
    %1034 = vmatpush1.bf16.msra.mxu0 %v975
    %1035 = vmatprep.subr.bf16.mxu0 %v980
    %1036 = vmatpush1.bf16.msra.mxu0 %v979
    %1037 = vmatprep.subr.bf16.mxu0 %v984
    %1038 = vmatpush1.bf16.msra.mxu0 %v983
    %1039 = vmatprep.subr.bf16.mxu0 %v988
    %1040 = vmatpush1.bf16.msra.mxu0 %v987
    %1041 = vmatprep.subr.bf16.mxu0 %v992
    %1042 = vmatpush1.bf16.msra.mxu0 %v991
    %1043 = vmatprep.subr.bf16.mxu0 0
    %1044 = vmatpush1.bf16.msra.mxu0 0
    %1045 = vmatprep.subr.bf16.mxu0 0
    %1046 = vmatpush1.bf16.msra.mxu0 0
    %1047 = vmatprep.subr.bf16.mxu0 0
    %1048 = vmatpush1.bf16.msra.mxu0 0
    %1049 = vmatprep.subr.bf16.mxu0 0
    %1050 = vmatpush1.bf16.msra.mxu0 0
    %1051 = vmatprep.subr.bf16.mxu0 0
    %1052 = vmatpush1.bf16.msra.mxu0 0
    %1053 = vmatprep.subr.bf16.mxu0 0
    %1054 = vmatpush1.bf16.msra.mxu0 0
    %1055 = vmatprep.subr.bf16.mxu0 0
    %1056 = vmatpush1.bf16.msra.mxu0 0
    %1057 = vmatprep.subr.bf16.mxu0 0
    %1058 = vmatpush1.bf16.msra.mxu0 0
    %1059 = vmatprep.mubr.bf16.mxu0 0
    %1060 = vmatmul.mubr.bf16.gmra.mrb[0].mxu0 %v826
    %v1061 = vpop.f32.mrb[0].mxu0
    %v1062 = vadd.f32 0.0, %v1061
    %v1063 = vpop.f32.mrb[0].mxu0
    %v1064 = vadd.f32 0.0, %v1063
    %v1065 = vpop.f32.mrb[0].mxu0
    %v1066 = vpop.f32.mrb[0].mxu0
    %1067 = vdwg.mxu0
    %1068 = vmatprep.subr.bf16.mxu0 %v966
    %1069 = vmatpush1.bf16.msra.mxu0 %v965
    %1070 = vmatprep.subr.bf16.mxu0 %v970
    %1071 = vmatpush1.bf16.msra.mxu0 %v969
    %1072 = vmatprep.subr.bf16.mxu0 %v974
    %1073 = vmatpush1.bf16.msra.mxu0 %v973
    %1074 = vmatprep.subr.bf16.mxu0 %v978
    %1075 = vmatpush1.bf16.msra.mxu0 %v977
    %1076 = vmatprep.subr.bf16.mxu0 %v982
    %1077 = vmatpush1.bf16.msra.mxu0 %v981
    %1078 = vmatprep.subr.bf16.mxu0 %v986
    %1079 = vmatpush1.bf16.msra.mxu0 %v985
    %1080 = vmatprep.subr.bf16.mxu0 %v990
    %1081 = vmatpush1.bf16.msra.mxu0 %v989
    %1082 = vmatprep.subr.bf16.mxu0 %v994
    %1083 = vmatpush1.bf16.msra.mxu0 %v993
    %1084 = vmatprep.subr.bf16.mxu0 0
    %1085 = vmatpush1.bf16.msra.mxu0 0
    %1086 = vmatprep.subr.bf16.mxu0 0
    %1087 = vmatpush1.bf16.msra.mxu0 0
    %1088 = vmatprep.subr.bf16.mxu0 0
    %1089 = vmatpush1.bf16.msra.mxu0 0
    %1090 = vmatprep.subr.bf16.mxu0 0
    %1091 = vmatpush1.bf16.msra.mxu0 0
    %1092 = vmatprep.subr.bf16.mxu0 0
    %1093 = vmatpush1.bf16.msra.mxu0 0
    %1094 = vmatprep.subr.bf16.mxu0 0
    %1095 = vmatpush1.bf16.msra.mxu0 0
    %1096 = vmatprep.subr.bf16.mxu0 0
    %1097 = vmatpush1.bf16.msra.mxu0 0
    %1098 = vmatprep.subr.bf16.mxu0 0
    %1099 = vmatpush1.bf16.msra.mxu0 0
    %1100 = vmatprep.mubr.bf16.mxu0 0
    %1101 = vmatmul.mubr.bf16.gmra.mrb[0].mxu0 %v826
    %v1102 = vpop.f32.mrb[0].mxu0
    %v1103 = vadd.f32 0.0, %v1102
    %v1104 = vpop.f32.mrb[0].mxu0
    %v1105 = vadd.f32 0.0, %v1104
    %v1106 = vpop.f32.mrb[0].mxu0
    %v1107 = vpop.f32.mrb[0].mxu0
    %1108 = vdwg.mxu0
    %v1109 = vadd.f32 %v831, %v1062
    %v1110 = vadd.f32 %v832, %v1064
    %v1111 = vadd.f32 %v833, %v1103
    %v1112 = vadd.f32 %v834, %v1105
    %v1113 = vxor.u32 %v1109, 2147483648
    %v1114 = vmul.f32 %v1113, 1.442695
    %v1115 = vpow.pop %v1114
    %v1116 = vadd.f32 %v1115, 1.0
    %v1117 = vrcp.pop %v1116
    %v1118 = vmul.f32 1.0, %v1117
    %v1119 = vxor.u32 %v1110, 2147483648
    %v1120 = vmul.f32 %v1119, 1.442695
    %v1121 = vpow.pop %v1120
    %v1122 = vadd.f32 %v1121, 1.0
    %v1123 = vrcp.pop %v1122
    %v1124 = vmul.f32 1.0, %v1123
    %v1125 = vtanh.pop %v1111
    %v1126 = vxor.u32 %v1112, 2147483648
    %v1127 = vmul.f32 %v1126, 1.442695
    %v1128 = vpow.pop %v1127
    %v1129 = vadd.f32 %v1128, 1.0
    %v1130 = vrcp.pop %v1129
    %v1131 = vmul.f32 1.0, %v1130
    %v1132 = vmul.f32 %v1124, %v823
    %v1133 = vmul.f32 %v1118, %v1125
    %v1134 = vadd.f32 %v1132, %v1133
    %v1135 = vtanh.pop %v1134
    %v1136 = vmul.f32 %v1131, %v1135
    %v1137 = vpack.c.bf16 %v1136, %v1136
    %s1138 = scalar_lea.vmem [#allocation13], 4
    %1139 = vst [vmem:[%s1138] sm:$0xf] %v1137
    %s1140 = smul.u32 2, 4
    %s1141 = smul.addr %s1140, 8
    %s1142 = scalar_lea.vmem [#allocation2], %s1141
    %v1143 = vld [vmem:[%s1142] sm:$0xff]
    %v1144 = vld [vmem:[%s1142 + $0x8] sm:$0xff]
    %v1145 = vld [vmem:[%s1142 + $0x10] sm:$0xff]
    %v1146 = vld [vmem:[%s1142 + $0x18] sm:$0xff]
    %v1147 = vld [vmem:[#allocation10] sm:$0xff]
    %v1148 = vld [vmem:[#allocation10 + $0x8] sm:$0xff]
    %v1149 = vld [vmem:[#allocation10 + $0x10] sm:$0xff]
    %v1150 = vld [vmem:[#allocation10 + $0x18] sm:$0xff]
    %v1151 = vld [vmem:[#allocation10 + $0x20] sm:$0xff]
    %v1152 = vld [vmem:[#allocation10 + $0x28] sm:$0xff]
    %v1153 = vld [vmem:[#allocation10 + $0x30] sm:$0xff]
    %v1154 = vld [vmem:[#allocation10 + $0x38] sm:$0xff]
    %v1155 = vld [vmem:[#allocation10 + $0x40] sm:$0xff]
    %v1156 = vld [vmem:[#allocation10 + $0x48] sm:$0xff]
    %v1157 = vld [vmem:[#allocation10 + $0x50] sm:$0xff]
    %v1158 = vld [vmem:[#allocation10 + $0x58] sm:$0xff]
    %v1159 = vld [vmem:[#allocation10 + $0x60] sm:$0xff]
    %v1160 = vld [vmem:[#allocation10 + $0x68] sm:$0xff]
    %v1161 = vld [vmem:[#allocation10 + $0x70] sm:$0xff]
    %v1162 = vld [vmem:[#allocation10 + $0x78] sm:$0xff]
    %v1163 = vld [vmem:[#allocation10 + $0x80] sm:$0xff]
    %v1164 = vld [vmem:[#allocation10 + $0x88] sm:$0xff]
    %v1165 = vld [vmem:[#allocation10 + $0x90] sm:$0xff]
    %v1166 = vld [vmem:[#allocation10 + $0x98] sm:$0xff]
    %v1167 = vld [vmem:[#allocation10 + $0xa0] sm:$0xff]
    %v1168 = vld [vmem:[#allocation10 + $0xa8] sm:$0xff]
    %v1169 = vld [vmem:[#allocation10 + $0xb0] sm:$0xff]
    %v1170 = vld [vmem:[#allocation10 + $0xb8] sm:$0xff]
    %v1171 = vld [vmem:[#allocation10 + $0xc0] sm:$0xff]
    %v1172 = vld [vmem:[#allocation10 + $0xc8] sm:$0xff]
    %v1173 = vld [vmem:[#allocation10 + $0xd0] sm:$0xff]
    %v1174 = vld [vmem:[#allocation10 + $0xd8] sm:$0xff]
    %v1175 = vld [vmem:[#allocation10 + $0xe0] sm:$0xff]
    %v1176 = vld [vmem:[#allocation10 + $0xe8] sm:$0xff]
    %v1177 = vld [vmem:[#allocation10 + $0xf0] sm:$0xff]
    %v1178 = vld [vmem:[#allocation10 + $0xf8] sm:$0xff]
    %v1211 = vunpack.c.l.b16 %v1147
    %v1212 = vunpack.c.h.b16 %v1147
    %v1213 = vunpack.c.l.b16 %v1148
    %v1214 = vunpack.c.h.b16 %v1148
    %v1215 = vunpack.c.l.b16 %v1149
    %v1216 = vunpack.c.h.b16 %v1149
    %v1217 = vunpack.c.l.b16 %v1150
    %v1218 = vunpack.c.h.b16 %v1150
    %v1219 = vunpack.c.l.b16 %v1151
    %v1220 = vunpack.c.h.b16 %v1151
    %v1221 = vunpack.c.l.b16 %v1152
    %v1222 = vunpack.c.h.b16 %v1152
    %v1223 = vunpack.c.l.b16 %v1153
    %v1224 = vunpack.c.h.b16 %v1153
    %v1225 = vunpack.c.l.b16 %v1154
    %v1226 = vunpack.c.h.b16 %v1154
    %v1227 = vunpack.c.l.b16 %v1155
    %v1228 = vunpack.c.h.b16 %v1155
    %v1229 = vunpack.c.l.b16 %v1156
    %v1230 = vunpack.c.h.b16 %v1156
    %v1231 = vunpack.c.l.b16 %v1157
    %v1232 = vunpack.c.h.b16 %v1157
    %v1233 = vunpack.c.l.b16 %v1158
    %v1234 = vunpack.c.h.b16 %v1158
    %v1235 = vunpack.c.l.b16 %v1159
    %v1236 = vunpack.c.h.b16 %v1159
    %v1237 = vunpack.c.l.b16 %v1160
    %v1238 = vunpack.c.h.b16 %v1160
    %v1239 = vunpack.c.l.b16 %v1161
    %v1240 = vunpack.c.h.b16 %v1161
    %v1241 = vunpack.c.l.b16 %v1162
    %v1242 = vunpack.c.h.b16 %v1162
    %v1243 = vunpack.c.l.b16 %v1163
    %v1244 = vunpack.c.h.b16 %v1163
    %v1245 = vunpack.c.l.b16 %v1164
    %v1246 = vunpack.c.h.b16 %v1164
    %v1247 = vunpack.c.l.b16 %v1165
    %v1248 = vunpack.c.h.b16 %v1165
    %v1249 = vunpack.c.l.b16 %v1166
    %v1250 = vunpack.c.h.b16 %v1166
    %v1251 = vunpack.c.l.b16 %v1167
    %v1252 = vunpack.c.h.b16 %v1167
    %v1253 = vunpack.c.l.b16 %v1168
    %v1254 = vunpack.c.h.b16 %v1168
    %v1255 = vunpack.c.l.b16 %v1169
    %v1256 = vunpack.c.h.b16 %v1169
    %v1257 = vunpack.c.l.b16 %v1170
    %v1258 = vunpack.c.h.b16 %v1170
    %v1259 = vunpack.c.l.b16 %v1171
    %v1260 = vunpack.c.h.b16 %v1171
    %v1261 = vunpack.c.l.b16 %v1172
    %v1262 = vunpack.c.h.b16 %v1172
    %v1263 = vunpack.c.l.b16 %v1173
    %v1264 = vunpack.c.h.b16 %v1173
    %v1265 = vunpack.c.l.b16 %v1174
    %v1266 = vunpack.c.h.b16 %v1174
    %v1267 = vunpack.c.l.b16 %v1175
    %v1268 = vunpack.c.h.b16 %v1175
    %v1269 = vunpack.c.l.b16 %v1176
    %v1270 = vunpack.c.h.b16 %v1176
    %v1271 = vunpack.c.l.b16 %v1177
    %v1272 = vunpack.c.h.b16 %v1177
    %v1273 = vunpack.c.l.b16 %v1178
    %v1274 = vunpack.c.h.b16 %v1178
    %v1275 = vpack.c.b16 %v1215, %v1211
    %v1276 = vpack.c.b16 %v1216, %v1212
    %v1277 = vpack.c.b16 %v1217, %v1213
    %v1278 = vpack.c.b16 %v1218, %v1214
    %v1279 = vpack.c.b16 %v1223, %v1219
    %v1280 = vpack.c.b16 %v1224, %v1220
    %v1281 = vpack.c.b16 %v1225, %v1221
    %v1282 = vpack.c.b16 %v1226, %v1222
    %v1283 = vpack.c.b16 %v1231, %v1227
    %v1284 = vpack.c.b16 %v1232, %v1228
    %v1285 = vpack.c.b16 %v1233, %v1229
    %v1286 = vpack.c.b16 %v1234, %v1230
    %v1287 = vpack.c.b16 %v1239, %v1235
    %v1288 = vpack.c.b16 %v1240, %v1236
    %v1289 = vpack.c.b16 %v1241, %v1237
    %v1290 = vpack.c.b16 %v1242, %v1238
    %v1291 = vpack.c.b16 %v1247, %v1243
    %v1292 = vpack.c.b16 %v1248, %v1244
    %v1293 = vpack.c.b16 %v1249, %v1245
    %v1294 = vpack.c.b16 %v1250, %v1246
    %v1295 = vpack.c.b16 %v1255, %v1251
    %v1296 = vpack.c.b16 %v1256, %v1252
    %v1297 = vpack.c.b16 %v1257, %v1253
    %v1298 = vpack.c.b16 %v1258, %v1254
    %v1299 = vpack.c.b16 %v1263, %v1259
    %v1300 = vpack.c.b16 %v1264, %v1260
    %v1301 = vpack.c.b16 %v1265, %v1261
    %v1302 = vpack.c.b16 %v1266, %v1262
    %v1303 = vpack.c.b16 %v1271, %v1267
    %v1304 = vpack.c.b16 %v1272, %v1268
    %v1305 = vpack.c.b16 %v1273, %v1269
    %v1306 = vpack.c.b16 %v1274, %v1270
    %1339 = vmatprep.subr.bf16.mxu0 %v1276
    %1340 = vmatpush1.bf16.msra.mxu0 %v1275
    %1341 = vmatprep.subr.bf16.mxu0 %v1280
    %1342 = vmatpush1.bf16.msra.mxu0 %v1279
    %1343 = vmatprep.subr.bf16.mxu0 %v1284
    %1344 = vmatpush1.bf16.msra.mxu0 %v1283
    %1345 = vmatprep.subr.bf16.mxu0 %v1288
    %1346 = vmatpush1.bf16.msra.mxu0 %v1287
    %1347 = vmatprep.subr.bf16.mxu0 %v1292
    %1348 = vmatpush1.bf16.msra.mxu0 %v1291
    %1349 = vmatprep.subr.bf16.mxu0 %v1296
    %1350 = vmatpush1.bf16.msra.mxu0 %v1295
    %1351 = vmatprep.subr.bf16.mxu0 %v1300
    %1352 = vmatpush1.bf16.msra.mxu0 %v1299
    %1353 = vmatprep.subr.bf16.mxu0 %v1304
    %1354 = vmatpush1.bf16.msra.mxu0 %v1303
    %1355 = vmatprep.subr.bf16.mxu0 0
    %1356 = vmatpush1.bf16.msra.mxu0 0
    %1357 = vmatprep.subr.bf16.mxu0 0
    %1358 = vmatpush1.bf16.msra.mxu0 0
    %1359 = vmatprep.subr.bf16.mxu0 0
    %1360 = vmatpush1.bf16.msra.mxu0 0
    %1361 = vmatprep.subr.bf16.mxu0 0
    %1362 = vmatpush1.bf16.msra.mxu0 0
    %1363 = vmatprep.subr.bf16.mxu0 0
    %1364 = vmatpush1.bf16.msra.mxu0 0
    %1365 = vmatprep.subr.bf16.mxu0 0
    %1366 = vmatpush1.bf16.msra.mxu0 0
    %1367 = vmatprep.subr.bf16.mxu0 0
    %1368 = vmatpush1.bf16.msra.mxu0 0
    %1369 = vmatprep.subr.bf16.mxu0 0
    %1370 = vmatpush1.bf16.msra.mxu0 0
    %1371 = vmatprep.mubr.bf16.mxu0 0
    %1372 = vmatmul.mubr.bf16.gmra.mrb[0].mxu0 %v1137
    %v1373 = vpop.f32.mrb[0].mxu0
    %v1374 = vadd.f32 0.0, %v1373
    %v1375 = vpop.f32.mrb[0].mxu0
    %v1376 = vadd.f32 0.0, %v1375
    %v1377 = vpop.f32.mrb[0].mxu0
    %v1378 = vpop.f32.mrb[0].mxu0
    %1379 = vdwg.mxu0
    %1380 = vmatprep.subr.bf16.mxu0 %v1278
    %1381 = vmatpush1.bf16.msra.mxu0 %v1277
    %1382 = vmatprep.subr.bf16.mxu0 %v1282
    %1383 = vmatpush1.bf16.msra.mxu0 %v1281
    %1384 = vmatprep.subr.bf16.mxu0 %v1286
    %1385 = vmatpush1.bf16.msra.mxu0 %v1285
    %1386 = vmatprep.subr.bf16.mxu0 %v1290
    %1387 = vmatpush1.bf16.msra.mxu0 %v1289
    %1388 = vmatprep.subr.bf16.mxu0 %v1294
    %1389 = vmatpush1.bf16.msra.mxu0 %v1293
    %1390 = vmatprep.subr.bf16.mxu0 %v1298
    %1391 = vmatpush1.bf16.msra.mxu0 %v1297
    %1392 = vmatprep.subr.bf16.mxu0 %v1302
    %1393 = vmatpush1.bf16.msra.mxu0 %v1301
    %1394 = vmatprep.subr.bf16.mxu0 %v1306
    %1395 = vmatpush1.bf16.msra.mxu0 %v1305
    %1396 = vmatprep.subr.bf16.mxu0 0
    %1397 = vmatpush1.bf16.msra.mxu0 0
    %1398 = vmatprep.subr.bf16.mxu0 0
    %1399 = vmatpush1.bf16.msra.mxu0 0
    %1400 = vmatprep.subr.bf16.mxu0 0
    %1401 = vmatpush1.bf16.msra.mxu0 0
    %1402 = vmatprep.subr.bf16.mxu0 0
    %1403 = vmatpush1.bf16.msra.mxu0 0
    %1404 = vmatprep.subr.bf16.mxu0 0
    %1405 = vmatpush1.bf16.msra.mxu0 0
    %1406 = vmatprep.subr.bf16.mxu0 0
    %1407 = vmatpush1.bf16.msra.mxu0 0
    %1408 = vmatprep.subr.bf16.mxu0 0
    %1409 = vmatpush1.bf16.msra.mxu0 0
    %1410 = vmatprep.subr.bf16.mxu0 0
    %1411 = vmatpush1.bf16.msra.mxu0 0
    %1412 = vmatprep.mubr.bf16.mxu0 0
    %1413 = vmatmul.mubr.bf16.gmra.mrb[0].mxu0 %v1137
    %v1414 = vpop.f32.mrb[0].mxu0
    %v1415 = vadd.f32 0.0, %v1414
    %v1416 = vpop.f32.mrb[0].mxu0
    %v1417 = vadd.f32 0.0, %v1416
    %v1418 = vpop.f32.mrb[0].mxu0
    %v1419 = vpop.f32.mrb[0].mxu0
    %1420 = vdwg.mxu0
    %v1421 = vadd.f32 %v1143, %v1374
    %v1422 = vadd.f32 %v1144, %v1376
    %v1423 = vadd.f32 %v1145, %v1415
    %v1424 = vadd.f32 %v1146, %v1417
    %v1425 = vxor.u32 %v1421, 2147483648
    %v1426 = vmul.f32 %v1425, 1.442695
    %v1427 = vpow.pop %v1426
    %v1428 = vadd.f32 %v1427, 1.0
    %v1429 = vrcp.pop %v1428
    %v1430 = vmul.f32 1.0, %v1429
    %v1431 = vxor.u32 %v1422, 2147483648
    %v1432 = vmul.f32 %v1431, 1.442695
    %v1433 = vpow.pop %v1432
    %v1434 = vadd.f32 %v1433, 1.0
    %v1435 = vrcp.pop %v1434
    %v1436 = vmul.f32 1.0, %v1435
    %v1437 = vtanh.pop %v1423
    %v1438 = vxor.u32 %v1424, 2147483648
    %v1439 = vmul.f32 %v1438, 1.442695
    %v1440 = vpow.pop %v1439
    %v1441 = vadd.f32 %v1440, 1.0
    %v1442 = vrcp.pop %v1441
    %v1443 = vmul.f32 1.0, %v1442
    %v1444 = vmul.f32 %v1436, %v1134
    %v1445 = vmul.f32 %v1430, %v1437
    %v1446 = vadd.f32 %v1444, %v1445
    %v1447 = vtanh.pop %v1446
    %v1448 = vmul.f32 %v1443, %v1447
    %v1449 = vpack.c.bf16 %v1448, %v1448
    %s1450 = scalar_lea.vmem [#allocation13], 8
    %1451 = vst [vmem:[%s1450] sm:$0xf] %v1449
    %s1452 = smul.u32 3, 4
    %s1453 = smul.addr %s1452, 8
    %s1454 = scalar_lea.vmem [#allocation2], %s1453
    %v1455 = vld [vmem:[%s1454] sm:$0xff]
    %v1456 = vld [vmem:[%s1454 + $0x8] sm:$0xff]
    %v1457 = vld [vmem:[%s1454 + $0x10] sm:$0xff]
    %v1458 = vld [vmem:[%s1454 + $0x18] sm:$0xff]
    %v1459 = vld [vmem:[#allocation10] sm:$0xff]
    %v1460 = vld [vmem:[#allocation10 + $0x8] sm:$0xff]
    %v1461 = vld [vmem:[#allocation10 + $0x10] sm:$0xff]
    %v1462 = vld [vmem:[#allocation10 + $0x18] sm:$0xff]
    %v1463 = vld [vmem:[#allocation10 + $0x20] sm:$0xff]
    %v1464 = vld [vmem:[#allocation10 + $0x28] sm:$0xff]
    %v1465 = vld [vmem:[#allocation10 + $0x30] sm:$0xff]
    %v1466 = vld [vmem:[#allocation10 + $0x38] sm:$0xff]
    %v1467 = vld [vmem:[#allocation10 + $0x40] sm:$0xff]
    %v1468 = vld [vmem:[#allocation10 + $0x48] sm:$0xff]
    %v1469 = vld [vmem:[#allocation10 + $0x50] sm:$0xff]
    %v1470 = vld [vmem:[#allocation10 + $0x58] sm:$0xff]
    %v1471 = vld [vmem:[#allocation10 + $0x60] sm:$0xff]
    %v1472 = vld [vmem:[#allocation10 + $0x68] sm:$0xff]
    %v1473 = vld [vmem:[#allocation10 + $0x70] sm:$0xff]
    %v1474 = vld [vmem:[#allocation10 + $0x78] sm:$0xff]
    %v1475 = vld [vmem:[#allocation10 + $0x80] sm:$0xff]
    %v1476 = vld [vmem:[#allocation10 + $0x88] sm:$0xff]
    %v1477 = vld [vmem:[#allocation10 + $0x90] sm:$0xff]
    %v1478 = vld [vmem:[#allocation10 + $0x98] sm:$0xff]
    %v1479 = vld [vmem:[#allocation10 + $0xa0] sm:$0xff]
    %v1480 = vld [vmem:[#allocation10 + $0xa8] sm:$0xff]
    %v1481 = vld [vmem:[#allocation10 + $0xb0] sm:$0xff]
    %v1482 = vld [vmem:[#allocation10 + $0xb8] sm:$0xff]
    %v1483 = vld [vmem:[#allocation10 + $0xc0] sm:$0xff]
    %v1484 = vld [vmem:[#allocation10 + $0xc8] sm:$0xff]
    %v1485 = vld [vmem:[#allocation10 + $0xd0] sm:$0xff]
    %v1486 = vld [vmem:[#allocation10 + $0xd8] sm:$0xff]
    %v1487 = vld [vmem:[#allocation10 + $0xe0] sm:$0xff]
    %v1488 = vld [vmem:[#allocation10 + $0xe8] sm:$0xff]
    %v1489 = vld [vmem:[#allocation10 + $0xf0] sm:$0xff]
    %v1490 = vld [vmem:[#allocation10 + $0xf8] sm:$0xff]
    %v1523 = vunpack.c.l.b16 %v1459
    %v1524 = vunpack.c.h.b16 %v1459
    %v1525 = vunpack.c.l.b16 %v1460
    %v1526 = vunpack.c.h.b16 %v1460
    %v1527 = vunpack.c.l.b16 %v1461
    %v1528 = vunpack.c.h.b16 %v1461
    %v1529 = vunpack.c.l.b16 %v1462
    %v1530 = vunpack.c.h.b16 %v1462
    %v1531 = vunpack.c.l.b16 %v1463
    %v1532 = vunpack.c.h.b16 %v1463
    %v1533 = vunpack.c.l.b16 %v1464
    %v1534 = vunpack.c.h.b16 %v1464
    %v1535 = vunpack.c.l.b16 %v1465
    %v1536 = vunpack.c.h.b16 %v1465
    %v1537 = vunpack.c.l.b16 %v1466
    %v1538 = vunpack.c.h.b16 %v1466
    %v1539 = vunpack.c.l.b16 %v1467
    %v1540 = vunpack.c.h.b16 %v1467
    %v1541 = vunpack.c.l.b16 %v1468
    %v1542 = vunpack.c.h.b16 %v1468
    %v1543 = vunpack.c.l.b16 %v1469
    %v1544 = vunpack.c.h.b16 %v1469
    %v1545 = vunpack.c.l.b16 %v1470
    %v1546 = vunpack.c.h.b16 %v1470
    %v1547 = vunpack.c.l.b16 %v1471
    %v1548 = vunpack.c.h.b16 %v1471
    %v1549 = vunpack.c.l.b16 %v1472
    %v1550 = vunpack.c.h.b16 %v1472
    %v1551 = vunpack.c.l.b16 %v1473
    %v1552 = vunpack.c.h.b16 %v1473
    %v1553 = vunpack.c.l.b16 %v1474
    %v1554 = vunpack.c.h.b16 %v1474
    %v1555 = vunpack.c.l.b16 %v1475
    %v1556 = vunpack.c.h.b16 %v1475
    %v1557 = vunpack.c.l.b16 %v1476
    %v1558 = vunpack.c.h.b16 %v1476
    %v1559 = vunpack.c.l.b16 %v1477
    %v1560 = vunpack.c.h.b16 %v1477
    %v1561 = vunpack.c.l.b16 %v1478
    %v1562 = vunpack.c.h.b16 %v1478
    %v1563 = vunpack.c.l.b16 %v1479
    %v1564 = vunpack.c.h.b16 %v1479
    %v1565 = vunpack.c.l.b16 %v1480
    %v1566 = vunpack.c.h.b16 %v1480
    %v1567 = vunpack.c.l.b16 %v1481
    %v1568 = vunpack.c.h.b16 %v1481
    %v1569 = vunpack.c.l.b16 %v1482
    %v1570 = vunpack.c.h.b16 %v1482
    %v1571 = vunpack.c.l.b16 %v1483
    %v1572 = vunpack.c.h.b16 %v1483
    %v1573 = vunpack.c.l.b16 %v1484
    %v1574 = vunpack.c.h.b16 %v1484
    %v1575 = vunpack.c.l.b16 %v1485
    %v1576 = vunpack.c.h.b16 %v1485
    %v1577 = vunpack.c.l.b16 %v1486
    %v1578 = vunpack.c.h.b16 %v1486
    %v1579 = vunpack.c.l.b16 %v1487
    %v1580 = vunpack.c.h.b16 %v1487
    %v1581 = vunpack.c.l.b16 %v1488
    %v1582 = vunpack.c.h.b16 %v1488
    %v1583 = vunpack.c.l.b16 %v1489
    %v1584 = vunpack.c.h.b16 %v1489
    %v1585 = vunpack.c.l.b16 %v1490
    %v1586 = vunpack.c.h.b16 %v1490
    %v1587 = vpack.c.b16 %v1527, %v1523
    %v1588 = vpack.c.b16 %v1528, %v1524
    %v1589 = vpack.c.b16 %v1529, %v1525
    %v1590 = vpack.c.b16 %v1530, %v1526
    %v1591 = vpack.c.b16 %v1535, %v1531
    %v1592 = vpack.c.b16 %v1536, %v1532
    %v1593 = vpack.c.b16 %v1537, %v1533
    %v1594 = vpack.c.b16 %v1538, %v1534
    %v1595 = vpack.c.b16 %v1543, %v1539
    %v1596 = vpack.c.b16 %v1544, %v1540
    %v1597 = vpack.c.b16 %v1545, %v1541
    %v1598 = vpack.c.b16 %v1546, %v1542
    %v1599 = vpack.c.b16 %v1551, %v1547
    %v1600 = vpack.c.b16 %v1552, %v1548
    %v1601 = vpack.c.b16 %v1553, %v1549
    %v1602 = vpack.c.b16 %v1554, %v1550
    %v1603 = vpack.c.b16 %v1559, %v1555
    %v1604 = vpack.c.b16 %v1560, %v1556
    %v1605 = vpack.c.b16 %v1561, %v1557
    %v1606 = vpack.c.b16 %v1562, %v1558
    %v1607 = vpack.c.b16 %v1567, %v1563
    %v1608 = vpack.c.b16 %v1568, %v1564
    %v1609 = vpack.c.b16 %v1569, %v1565
    %v1610 = vpack.c.b16 %v1570, %v1566
    %v1611 = vpack.c.b16 %v1575, %v1571
    %v1612 = vpack.c.b16 %v1576, %v1572
    %v1613 = vpack.c.b16 %v1577, %v1573
    %v1614 = vpack.c.b16 %v1578, %v1574
    %v1615 = vpack.c.b16 %v1583, %v1579
    %v1616 = vpack.c.b16 %v1584, %v1580
    %v1617 = vpack.c.b16 %v1585, %v1581
    %v1618 = vpack.c.b16 %v1586, %v1582
    %1651 = vmatprep.subr.bf16.mxu0 %v1588
    %1652 = vmatpush1.bf16.msra.mxu0 %v1587
    %1653 = vmatprep.subr.bf16.mxu0 %v1592
    %1654 = vmatpush1.bf16.msra.mxu0 %v1591
    %1655 = vmatprep.subr.bf16.mxu0 %v1596
    %1656 = vmatpush1.bf16.msra.mxu0 %v1595
    %1657 = vmatprep.subr.bf16.mxu0 %v1600
    %1658 = vmatpush1.bf16.msra.mxu0 %v1599
    %1659 = vmatprep.subr.bf16.mxu0 %v1604
    %1660 = vmatpush1.bf16.msra.mxu0 %v1603
    %1661 = vmatprep.subr.bf16.mxu0 %v1608
    %1662 = vmatpush1.bf16.msra.mxu0 %v1607
    %1663 = vmatprep.subr.bf16.mxu0 %v1612
    %1664 = vmatpush1.bf16.msra.mxu0 %v1611
    %1665 = vmatprep.subr.bf16.mxu0 %v1616
    %1666 = vmatpush1.bf16.msra.mxu0 %v1615
    %1667 = vmatprep.subr.bf16.mxu0 0
    %1668 = vmatpush1.bf16.msra.mxu0 0
    %1669 = vmatprep.subr.bf16.mxu0 0
    %1670 = vmatpush1.bf16.msra.mxu0 0
    %1671 = vmatprep.subr.bf16.mxu0 0
    %1672 = vmatpush1.bf16.msra.mxu0 0
    %1673 = vmatprep.subr.bf16.mxu0 0
    %1674 = vmatpush1.bf16.msra.mxu0 0
    %1675 = vmatprep.subr.bf16.mxu0 0
    %1676 = vmatpush1.bf16.msra.mxu0 0
    %1677 = vmatprep.subr.bf16.mxu0 0
    %1678 = vmatpush1.bf16.msra.mxu0 0
    %1679 = vmatprep.subr.bf16.mxu0 0
    %1680 = vmatpush1.bf16.msra.mxu0 0
    %1681 = vmatprep.subr.bf16.mxu0 0
    %1682 = vmatpush1.bf16.msra.mxu0 0
    %1683 = vmatprep.mubr.bf16.mxu0 0
    %1684 = vmatmul.mubr.bf16.gmra.mrb[0].mxu0 %v1449
    %v1685 = vpop.f32.mrb[0].mxu0
    %v1686 = vadd.f32 0.0, %v1685
    %v1687 = vpop.f32.mrb[0].mxu0
    %v1688 = vadd.f32 0.0, %v1687
    %v1689 = vpop.f32.mrb[0].mxu0
    %v1690 = vpop.f32.mrb[0].mxu0
    %1691 = vdwg.mxu0
    %1692 = vmatprep.subr.bf16.mxu0 %v1590
    %1693 = vmatpush1.bf16.msra.mxu0 %v1589
    %1694 = vmatprep.subr.bf16.mxu0 %v1594
    %1695 = vmatpush1.bf16.msra.mxu0 %v1593
    %1696 = vmatprep.subr.bf16.mxu0 %v1598
    %1697 = vmatpush1.bf16.msra.mxu0 %v1597
    %1698 = vmatprep.subr.bf16.mxu0 %v1602
    %1699 = vmatpush1.bf16.msra.mxu0 %v1601
    %1700 = vmatprep.subr.bf16.mxu0 %v1606
    %1701 = vmatpush1.bf16.msra.mxu0 %v1605
    %1702 = vmatprep.subr.bf16.mxu0 %v1610
    %1703 = vmatpush1.bf16.msra.mxu0 %v1609
    %1704 = vmatprep.subr.bf16.mxu0 %v1614
    %1705 = vmatpush1.bf16.msra.mxu0 %v1613
    %1706 = vmatprep.subr.bf16.mxu0 %v1618
    %1707 = vmatpush1.bf16.msra.mxu0 %v1617
    %1708 = vmatprep.subr.bf16.mxu0 0
    %1709 = vmatpush1.bf16.msra.mxu0 0
    %1710 = vmatprep.subr.bf16.mxu0 0
    %1711 = vmatpush1.bf16.msra.mxu0 0
    %1712 = vmatprep.subr.bf16.mxu0 0
    %1713 = vmatpush1.bf16.msra.mxu0 0
    %1714 = vmatprep.subr.bf16.mxu0 0
    %1715 = vmatpush1.bf16.msra.mxu0 0
    %1716 = vmatprep.subr.bf16.mxu0 0
    %1717 = vmatpush1.bf16.msra.mxu0 0
    %1718 = vmatprep.subr.bf16.mxu0 0
    %1719 = vmatpush1.bf16.msra.mxu0 0
    %1720 = vmatprep.subr.bf16.mxu0 0
    %1721 = vmatpush1.bf16.msra.mxu0 0
    %1722 = vmatprep.subr.bf16.mxu0 0
    %1723 = vmatpush1.bf16.msra.mxu0 0
    %1724 = vmatprep.mubr.bf16.mxu0 0
    %1725 = vmatmul.mubr.bf16.gmra.mrb[0].mxu0 %v1449
    %v1726 = vpop.f32.mrb[0].mxu0
    %v1727 = vadd.f32 0.0, %v1726
    %v1728 = vpop.f32.mrb[0].mxu0
    %v1729 = vadd.f32 0.0, %v1728
    %v1730 = vpop.f32.mrb[0].mxu0
    %v1731 = vpop.f32.mrb[0].mxu0
    %1732 = vdwg.mxu0
    %v1733 = vadd.f32 %v1455, %v1686
    %v1734 = vadd.f32 %v1456, %v1688
    %v1735 = vadd.f32 %v1457, %v1727
    %v1736 = vadd.f32 %v1458, %v1729
    %v1737 = vxor.u32 %v1733, 2147483648
    %v1738 = vmul.f32 %v1737, 1.442695
    %v1739 = vpow.pop %v1738
    %v1740 = vadd.f32 %v1739, 1.0
    %v1741 = vrcp.pop %v1740
    %v1742 = vmul.f32 1.0, %v1741
    %v1743 = vxor.u32 %v1734, 2147483648
    %v1744 = vmul.f32 %v1743, 1.442695
    %v1745 = vpow.pop %v1744
    %v1746 = vadd.f32 %v1745, 1.0
    %v1747 = vrcp.pop %v1746
    %v1748 = vmul.f32 1.0, %v1747
    %v1749 = vtanh.pop %v1735
    %v1750 = vxor.u32 %v1736, 2147483648
    %v1751 = vmul.f32 %v1750, 1.442695
    %v1752 = vpow.pop %v1751
    %v1753 = vadd.f32 %v1752, 1.0
    %v1754 = vrcp.pop %v1753
    %v1755 = vmul.f32 1.0, %v1754
    %v1756 = vmul.f32 %v1748, %v1446
    %v1757 = vmul.f32 %v1742, %v1749
    %v1758 = vadd.f32 %v1756, %v1757
    %v1759 = vtanh.pop %v1758
    %v1760 = vmul.f32 %v1755, %v1759
    %v1761 = vpack.c.bf16 %v1760, %v1760
    %s1762 = scalar_lea.vmem [#allocation13], 12
    %1763 = vst [vmem:[%s1762] sm:$0xf] %v1761
    %s1764 = smul.u32 4, 4
    %s1765 = smul.addr %s1764, 8
    %s1766 = scalar_lea.vmem [#allocation2], %s1765
    %v1767 = vld [vmem:[%s1766] sm:$0xff]
    %v1768 = vld [vmem:[%s1766 + $0x8] sm:$0xff]
    %v1769 = vld [vmem:[%s1766 + $0x10] sm:$0xff]
    %v1770 = vld [vmem:[%s1766 + $0x18] sm:$0xff]
    %v1771 = vld [vmem:[#allocation10] sm:$0xff]
    %v1772 = vld [vmem:[#allocation10 + $0x8] sm:$0xff]
    %v1773 = vld [vmem:[#allocation10 + $0x10] sm:$0xff]
    %v1774 = vld [vmem:[#allocation10 + $0x18] sm:$0xff]
    %v1775 = vld [vmem:[#allocation10 + $0x20] sm:$0xff]
    %v1776 = vld [vmem:[#allocation10 + $0x28] sm:$0xff]
    %v1777 = vld [vmem:[#allocation10 + $0x30] sm:$0xff]
    %v1778 = vld [vmem:[#allocation10 + $0x38] sm:$0xff]
    %v1779 = vld [vmem:[#allocation10 + $0x40] sm:$0xff]
    %v1780 = vld [vmem:[#allocation10 + $0x48] sm:$0xff]
    %v1781 = vld [vmem:[#allocation10 + $0x50] sm:$0xff]
    %v1782 = vld [vmem:[#allocation10 + $0x58] sm:$0xff]
    %v1783 = vld [vmem:[#allocation10 + $0x60] sm:$0xff]
    %v1784 = vld [vmem:[#allocation10 + $0x68] sm:$0xff]
    %v1785 = vld [vmem:[#allocation10 + $0x70] sm:$0xff]
    %v1786 = vld [vmem:[#allocation10 + $0x78] sm:$0xff]
    %v1787 = vld [vmem:[#allocation10 + $0x80] sm:$0xff]
    %v1788 = vld [vmem:[#allocation10 + $0x88] sm:$0xff]
    %v1789 = vld [vmem:[#allocation10 + $0x90] sm:$0xff]
    %v1790 = vld [vmem:[#allocation10 + $0x98] sm:$0xff]
    %v1791 = vld [vmem:[#allocation10 + $0xa0] sm:$0xff]
    %v1792 = vld [vmem:[#allocation10 + $0xa8] sm:$0xff]
    %v1793 = vld [vmem:[#allocation10 + $0xb0] sm:$0xff]
    %v1794 = vld [vmem:[#allocation10 + $0xb8] sm:$0xff]
    %v1795 = vld [vmem:[#allocation10 + $0xc0] sm:$0xff]
    %v1796 = vld [vmem:[#allocation10 + $0xc8] sm:$0xff]
    %v1797 = vld [vmem:[#allocation10 + $0xd0] sm:$0xff]
    %v1798 = vld [vmem:[#allocation10 + $0xd8] sm:$0xff]
    %v1799 = vld [vmem:[#allocation10 + $0xe0] sm:$0xff]
    %v1800 = vld [vmem:[#allocation10 + $0xe8] sm:$0xff]
    %v1801 = vld [vmem:[#allocation10 + $0xf0] sm:$0xff]
    %v1802 = vld [vmem:[#allocation10 + $0xf8] sm:$0xff]
    %v1835 = vunpack.c.l.b16 %v1771
    %v1836 = vunpack.c.h.b16 %v1771
    %v1837 = vunpack.c.l.b16 %v1772
    %v1838 = vunpack.c.h.b16 %v1772
    %v1839 = vunpack.c.l.b16 %v1773
    %v1840 = vunpack.c.h.b16 %v1773
    %v1841 = vunpack.c.l.b16 %v1774
    %v1842 = vunpack.c.h.b16 %v1774
    %v1843 = vunpack.c.l.b16 %v1775
    %v1844 = vunpack.c.h.b16 %v1775
    %v1845 = vunpack.c.l.b16 %v1776
    %v1846 = vunpack.c.h.b16 %v1776
    %v1847 = vunpack.c.l.b16 %v1777
    %v1848 = vunpack.c.h.b16 %v1777
    %v1849 = vunpack.c.l.b16 %v1778
    %v1850 = vunpack.c.h.b16 %v1778
    %v1851 = vunpack.c.l.b16 %v1779
    %v1852 = vunpack.c.h.b16 %v1779
    %v1853 = vunpack.c.l.b16 %v1780
    %v1854 = vunpack.c.h.b16 %v1780
    %v1855 = vunpack.c.l.b16 %v1781
    %v1856 = vunpack.c.h.b16 %v1781
    %v1857 = vunpack.c.l.b16 %v1782
    %v1858 = vunpack.c.h.b16 %v1782
    %v1859 = vunpack.c.l.b16 %v1783
    %v1860 = vunpack.c.h.b16 %v1783
    %v1861 = vunpack.c.l.b16 %v1784
    %v1862 = vunpack.c.h.b16 %v1784
    %v1863 = vunpack.c.l.b16 %v1785
    %v1864 = vunpack.c.h.b16 %v1785
    %v1865 = vunpack.c.l.b16 %v1786
    %v1866 = vunpack.c.h.b16 %v1786
    %v1867 = vunpack.c.l.b16 %v1787
    %v1868 = vunpack.c.h.b16 %v1787
    %v1869 = vunpack.c.l.b16 %v1788
    %v1870 = vunpack.c.h.b16 %v1788
    %v1871 = vunpack.c.l.b16 %v1789
    %v1872 = vunpack.c.h.b16 %v1789
    %v1873 = vunpack.c.l.b16 %v1790
    %v1874 = vunpack.c.h.b16 %v1790
    %v1875 = vunpack.c.l.b16 %v1791
    %v1876 = vunpack.c.h.b16 %v1791
    %v1877 = vunpack.c.l.b16 %v1792
    %v1878 = vunpack.c.h.b16 %v1792
    %v1879 = vunpack.c.l.b16 %v1793
    %v1880 = vunpack.c.h.b16 %v1793
    %v1881 = vunpack.c.l.b16 %v1794
    %v1882 = vunpack.c.h.b16 %v1794
    %v1883 = vunpack.c.l.b16 %v1795
    %v1884 = vunpack.c.h.b16 %v1795
    %v1885 = vunpack.c.l.b16 %v1796
    %v1886 = vunpack.c.h.b16 %v1796
    %v1887 = vunpack.c.l.b16 %v1797
    %v1888 = vunpack.c.h.b16 %v1797
    %v1889 = vunpack.c.l.b16 %v1798
    %v1890 = vunpack.c.h.b16 %v1798
    %v1891 = vunpack.c.l.b16 %v1799
    %v1892 = vunpack.c.h.b16 %v1799
    %v1893 = vunpack.c.l.b16 %v1800
    %v1894 = vunpack.c.h.b16 %v1800
    %v1895 = vunpack.c.l.b16 %v1801
    %v1896 = vunpack.c.h.b16 %v1801
    %v1897 = vunpack.c.l.b16 %v1802
    %v1898 = vunpack.c.h.b16 %v1802
    %v1899 = vpack.c.b16 %v1839, %v1835
    %v1900 = vpack.c.b16 %v1840, %v1836
    %v1901 = vpack.c.b16 %v1841, %v1837
    %v1902 = vpack.c.b16 %v1842, %v1838
    %v1903 = vpack.c.b16 %v1847, %v1843
    %v1904 = vpack.c.b16 %v1848, %v1844
    %v1905 = vpack.c.b16 %v1849, %v1845
    %v1906 = vpack.c.b16 %v1850, %v1846
    %v1907 = vpack.c.b16 %v1855, %v1851
    %v1908 = vpack.c.b16 %v1856, %v1852
    %v1909 = vpack.c.b16 %v1857, %v1853
    %v1910 = vpack.c.b16 %v1858, %v1854
    %v1911 = vpack.c.b16 %v1863, %v1859
    %v1912 = vpack.c.b16 %v1864, %v1860
    %v1913 = vpack.c.b16 %v1865, %v1861
    %v1914 = vpack.c.b16 %v1866, %v1862
    %v1915 = vpack.c.b16 %v1871, %v1867
    %v1916 = vpack.c.b16 %v1872, %v1868
    %v1917 = vpack.c.b16 %v1873, %v1869
    %v1918 = vpack.c.b16 %v1874, %v1870
    %v1919 = vpack.c.b16 %v1879, %v1875
    %v1920 = vpack.c.b16 %v1880, %v1876
    %v1921 = vpack.c.b16 %v1881, %v1877
    %v1922 = vpack.c.b16 %v1882, %v1878
    %v1923 = vpack.c.b16 %v1887, %v1883
    %v1924 = vpack.c.b16 %v1888, %v1884
    %v1925 = vpack.c.b16 %v1889, %v1885
    %v1926 = vpack.c.b16 %v1890, %v1886
    %v1927 = vpack.c.b16 %v1895, %v1891
    %v1928 = vpack.c.b16 %v1896, %v1892
    %v1929 = vpack.c.b16 %v1897, %v1893
    %v1930 = vpack.c.b16 %v1898, %v1894
    %1963 = vmatprep.subr.bf16.mxu0 %v1900
    %1964 = vmatpush1.bf16.msra.mxu0 %v1899
    %1965 = vmatprep.subr.bf16.mxu0 %v1904
    %1966 = vmatpush1.bf16.msra.mxu0 %v1903
    %1967 = vmatprep.subr.bf16.mxu0 %v1908
    %1968 = vmatpush1.bf16.msra.mxu0 %v1907
    %1969 = vmatprep.subr.bf16.mxu0 %v1912
    %1970 = vmatpush1.bf16.msra.mxu0 %v1911
    %1971 = vmatprep.subr.bf16.mxu0 %v1916
    %1972 = vmatpush1.bf16.msra.mxu0 %v1915
    %1973 = vmatprep.subr.bf16.mxu0 %v1920
    %1974 = vmatpush1.bf16.msra.mxu0 %v1919
    %1975 = vmatprep.subr.bf16.mxu0 %v1924
    %1976 = vmatpush1.bf16.msra.mxu0 %v1923
    %1977 = vmatprep.subr.bf16.mxu0 %v1928
    %1978 = vmatpush1.bf16.msra.mxu0 %v1927
    %1979 = vmatprep.subr.bf16.mxu0 0
    %1980 = vmatpush1.bf16.msra.mxu0 0
    %1981 = vmatprep.subr.bf16.mxu0 0
    %1982 = vmatpush1.bf16.msra.mxu0 0
    %1983 = vmatprep.subr.bf16.mxu0 0
    %1984 = vmatpush1.bf16.msra.mxu0 0
    %1985 = vmatprep.subr.bf16.mxu0 0
    %1986 = vmatpush1.bf16.msra.mxu0 0
    %1987 = vmatprep.subr.bf16.mxu0 0
    %1988 = vmatpush1.bf16.msra.mxu0 0
    %1989 = vmatprep.subr.bf16.mxu0 0
    %1990 = vmatpush1.bf16.msra.mxu0 0
    %1991 = vmatprep.subr.bf16.mxu0 0
    %1992 = vmatpush1.bf16.msra.mxu0 0
    %1993 = vmatprep.subr.bf16.mxu0 0
    %1994 = vmatpush1.bf16.msra.mxu0 0
    %1995 = vmatprep.mubr.bf16.mxu0 0
    %1996 = vmatmul.mubr.bf16.gmra.mrb[0].mxu0 %v1761
    %v1997 = vpop.f32.mrb[0].mxu0
    %v1998 = vadd.f32 0.0, %v1997
    %v1999 = vpop.f32.mrb[0].mxu0
    %v2000 = vadd.f32 0.0, %v1999
    %v2001 = vpop.f32.mrb[0].mxu0
    %v2002 = vpop.f32.mrb[0].mxu0
    %2003 = vdwg.mxu0
    %2004 = vmatprep.subr.bf16.mxu0 %v1902
    %2005 = vmatpush1.bf16.msra.mxu0 %v1901
    %2006 = vmatprep.subr.bf16.mxu0 %v1906
    %2007 = vmatpush1.bf16.msra.mxu0 %v1905
    %2008 = vmatprep.subr.bf16.mxu0 %v1910
    %2009 = vmatpush1.bf16.msra.mxu0 %v1909
    %2010 = vmatprep.subr.bf16.mxu0 %v1914
    %2011 = vmatpush1.bf16.msra.mxu0 %v1913
    %2012 = vmatprep.subr.bf16.mxu0 %v1918
    %2013 = vmatpush1.bf16.msra.mxu0 %v1917
    %2014 = vmatprep.subr.bf16.mxu0 %v1922
    %2015 = vmatpush1.bf16.msra.mxu0 %v1921
    %2016 = vmatprep.subr.bf16.mxu0 %v1926
    %2017 = vmatpush1.bf16.msra.mxu0 %v1925
    %2018 = vmatprep.subr.bf16.mxu0 %v1930
    %2019 = vmatpush1.bf16.msra.mxu0 %v1929
    %2020 = vmatprep.subr.bf16.mxu0 0
    %2021 = vmatpush1.bf16.msra.mxu0 0
    %2022 = vmatprep.subr.bf16.mxu0 0
    %2023 = vmatpush1.bf16.msra.mxu0 0
    %2024 = vmatprep.subr.bf16.mxu0 0
    %2025 = vmatpush1.bf16.msra.mxu0 0
    %2026 = vmatprep.subr.bf16.mxu0 0
    %2027 = vmatpush1.bf16.msra.mxu0 0
    %2028 = vmatprep.subr.bf16.mxu0 0
    %2029 = vmatpush1.bf16.msra.mxu0 0
    %2030 = vmatprep.subr.bf16.mxu0 0
    %2031 = vmatpush1.bf16.msra.mxu0 0
    %2032 = vmatprep.subr.bf16.mxu0 0
    %2033 = vmatpush1.bf16.msra.mxu0 0
    %2034 = vmatprep.subr.bf16.mxu0 0
    %2035 = vmatpush1.bf16.msra.mxu0 0
    %2036 = vmatprep.mubr.bf16.mxu0 0
    %2037 = vmatmul.mubr.bf16.gmra.mrb[0].mxu0 %v1761
    %v2038 = vpop.f32.mrb[0].mxu0
    %v2039 = vadd.f32 0.0, %v2038
    %v2040 = vpop.f32.mrb[0].mxu0
    %v2041 = vadd.f32 0.0, %v2040
    %v2042 = vpop.f32.mrb[0].mxu0
    %v2043 = vpop.f32.mrb[0].mxu0
    %2044 = vdwg.mxu0
    %v2045 = vadd.f32 %v1767, %v1998
    %v2046 = vadd.f32 %v1768, %v2000
    %v2047 = vadd.f32 %v1769, %v2039
    %v2048 = vadd.f32 %v1770, %v2041
    %v2049 = vxor.u32 %v2045, 2147483648
    %v2050 = vmul.f32 %v2049, 1.442695
    %v2051 = vpow.pop %v2050
    %v2052 = vadd.f32 %v2051, 1.0
    %v2053 = vrcp.pop %v2052
    %v2054 = vmul.f32 1.0, %v2053
    %v2055 = vxor.u32 %v2046, 2147483648
    %v2056 = vmul.f32 %v2055, 1.442695
    %v2057 = vpow.pop %v2056
    %v2058 = vadd.f32 %v2057, 1.0
    %v2059 = vrcp.pop %v2058
    %v2060 = vmul.f32 1.0, %v2059
    %v2061 = vtanh.pop %v2047
    %v2062 = vxor.u32 %v2048, 2147483648
    %v2063 = vmul.f32 %v2062, 1.442695
    %v2064 = vpow.pop %v2063
    %v2065 = vadd.f32 %v2064, 1.0
    %v2066 = vrcp.pop %v2065
    %v2067 = vmul.f32 1.0, %v2066
    %v2068 = vmul.f32 %v2060, %v1758
    %v2069 = vmul.f32 %v2054, %v2061
    %v2070 = vadd.f32 %v2068, %v2069
    %v2071 = vtanh.pop %v2070
    %v2072 = vmul.f32 %v2067, %v2071
    %v2073 = vpack.c.bf16 %v2072, %v2072
    %s2074 = scalar_lea.vmem [#allocation13], 16
    %2075 = vst [vmem:[%s2074] sm:$0xf] %v2073
    %s2076 = smul.u32 5, 4
    %s2077 = smul.addr %s2076, 8
    %s2078 = scalar_lea.vmem [#allocation2], %s2077
    %v2079 = vld [vmem:[%s2078] sm:$0xff]
    %v2080 = vld [vmem:[%s2078 + $0x8] sm:$0xff]
    %v2081 = vld [vmem:[%s2078 + $0x10] sm:$0xff]
    %v2082 = vld [vmem:[%s2078 + $0x18] sm:$0xff]
    %v2083 = vld [vmem:[#allocation10] sm:$0xff]
    %v2084 = vld [vmem:[#allocation10 + $0x8] sm:$0xff]
    %v2085 = vld [vmem:[#allocation10 + $0x10] sm:$0xff]
    %v2086 = vld [vmem:[#allocation10 + $0x18] sm:$0xff]
    %v2087 = vld [vmem:[#allocation10 + $0x20] sm:$0xff]
    %v2088 = vld [vmem:[#allocation10 + $0x28] sm:$0xff]
    %v2089 = vld [vmem:[#allocation10 + $0x30] sm:$0xff]
    %v2090 = vld [vmem:[#allocation10 + $0x38] sm:$0xff]
    %v2091 = vld [vmem:[#allocation10 + $0x40] sm:$0xff]
    %v2092 = vld [vmem:[#allocation10 + $0x48] sm:$0xff]
    %v2093 = vld [vmem:[#allocation10 + $0x50] sm:$0xff]
    %v2094 = vld [vmem:[#allocation10 + $0x58] sm:$0xff]
    %v2095 = vld [vmem:[#allocation10 + $0x60] sm:$0xff]
    %v2096 = vld [vmem:[#allocation10 + $0x68] sm:$0xff]
    %v2097 = vld [vmem:[#allocation10 + $0x70] sm:$0xff]
    %v2098 = vld [vmem:[#allocation10 + $0x78] sm:$0xff]
    %v2099 = vld [vmem:[#allocation10 + $0x80] sm:$0xff]
    %v2100 = vld [vmem:[#allocation10 + $0x88] sm:$0xff]
    %v2101 = vld [vmem:[#allocation10 + $0x90] sm:$0xff]
    %v2102 = vld [vmem:[#allocation10 + $0x98] sm:$0xff]
    %v2103 = vld [vmem:[#allocation10 + $0xa0] sm:$0xff]
    %v2104 = vld [vmem:[#allocation10 + $0xa8] sm:$0xff]
    %v2105 = vld [vmem:[#allocation10 + $0xb0] sm:$0xff]
    %v2106 = vld [vmem:[#allocation10 + $0xb8] sm:$0xff]
    %v2107 = vld [vmem:[#allocation10 + $0xc0] sm:$0xff]
    %v2108 = vld [vmem:[#allocation10 + $0xc8] sm:$0xff]
    %v2109 = vld [vmem:[#allocation10 + $0xd0] sm:$0xff]
    %v2110 = vld [vmem:[#allocation10 + $0xd8] sm:$0xff]
    %v2111 = vld [vmem:[#allocation10 + $0xe0] sm:$0xff]
    %v2112 = vld [vmem:[#allocation10 + $0xe8] sm:$0xff]
    %v2113 = vld [vmem:[#allocation10 + $0xf0] sm:$0xff]
    %v2114 = vld [vmem:[#allocation10 + $0xf8] sm:$0xff]
    %v2147 = vunpack.c.l.b16 %v2083
    %v2148 = vunpack.c.h.b16 %v2083
    %v2149 = vunpack.c.l.b16 %v2084
    %v2150 = vunpack.c.h.b16 %v2084
    %v2151 = vunpack.c.l.b16 %v2085
    %v2152 = vunpack.c.h.b16 %v2085
    %v2153 = vunpack.c.l.b16 %v2086
    %v2154 = vunpack.c.h.b16 %v2086
    %v2155 = vunpack.c.l.b16 %v2087
    %v2156 = vunpack.c.h.b16 %v2087
    %v2157 = vunpack.c.l.b16 %v2088
    %v2158 = vunpack.c.h.b16 %v2088
    %v2159 = vunpack.c.l.b16 %v2089
    %v2160 = vunpack.c.h.b16 %v2089
    %v2161 = vunpack.c.l.b16 %v2090
    %v2162 = vunpack.c.h.b16 %v2090
    %v2163 = vunpack.c.l.b16 %v2091
    %v2164 = vunpack.c.h.b16 %v2091
    %v2165 = vunpack.c.l.b16 %v2092
    %v2166 = vunpack.c.h.b16 %v2092
    %v2167 = vunpack.c.l.b16 %v2093
    %v2168 = vunpack.c.h.b16 %v2093
    %v2169 = vunpack.c.l.b16 %v2094
    %v2170 = vunpack.c.h.b16 %v2094
    %v2171 = vunpack.c.l.b16 %v2095
    %v2172 = vunpack.c.h.b16 %v2095
    %v2173 = vunpack.c.l.b16 %v2096
    %v2174 = vunpack.c.h.b16 %v2096
    %v2175 = vunpack.c.l.b16 %v2097
    %v2176 = vunpack.c.h.b16 %v2097
    %v2177 = vunpack.c.l.b16 %v2098
    %v2178 = vunpack.c.h.b16 %v2098
    %v2179 = vunpack.c.l.b16 %v2099
    %v2180 = vunpack.c.h.b16 %v2099
    %v2181 = vunpack.c.l.b16 %v2100
    %v2182 = vunpack.c.h.b16 %v2100
    %v2183 = vunpack.c.l.b16 %v2101
    %v2184 = vunpack.c.h.b16 %v2101
    %v2185 = vunpack.c.l.b16 %v2102
    %v2186 = vunpack.c.h.b16 %v2102
    %v2187 = vunpack.c.l.b16 %v2103
    %v2188 = vunpack.c.h.b16 %v2103
    %v2189 = vunpack.c.l.b16 %v2104
    %v2190 = vunpack.c.h.b16 %v2104
    %v2191 = vunpack.c.l.b16 %v2105
    %v2192 = vunpack.c.h.b16 %v2105
    %v2193 = vunpack.c.l.b16 %v2106
    %v2194 = vunpack.c.h.b16 %v2106
    %v2195 = vunpack.c.l.b16 %v2107
    %v2196 = vunpack.c.h.b16 %v2107
    %v2197 = vunpack.c.l.b16 %v2108
    %v2198 = vunpack.c.h.b16 %v2108
    %v2199 = vunpack.c.l.b16 %v2109
    %v2200 = vunpack.c.h.b16 %v2109
    %v2201 = vunpack.c.l.b16 %v2110
    %v2202 = vunpack.c.h.b16 %v2110
    %v2203 = vunpack.c.l.b16 %v2111
    %v2204 = vunpack.c.h.b16 %v2111
    %v2205 = vunpack.c.l.b16 %v2112
    %v2206 = vunpack.c.h.b16 %v2112
    %v2207 = vunpack.c.l.b16 %v2113
    %v2208 = vunpack.c.h.b16 %v2113
    %v2209 = vunpack.c.l.b16 %v2114
    %v2210 = vunpack.c.h.b16 %v2114
    %v2211 = vpack.c.b16 %v2151, %v2147
    %v2212 = vpack.c.b16 %v2152, %v2148
    %v2213 = vpack.c.b16 %v2153, %v2149
    %v2214 = vpack.c.b16 %v2154, %v2150
    %v2215 = vpack.c.b16 %v2159, %v2155
    %v2216 = vpack.c.b16 %v2160, %v2156
    %v2217 = vpack.c.b16 %v2161, %v2157
    %v2218 = vpack.c.b16 %v2162, %v2158
    %v2219 = vpack.c.b16 %v2167, %v2163
    %v2220 = vpack.c.b16 %v2168, %v2164
    %v2221 = vpack.c.b16 %v2169, %v2165
    %v2222 = vpack.c.b16 %v2170, %v2166
    %v2223 = vpack.c.b16 %v2175, %v2171
    %v2224 = vpack.c.b16 %v2176, %v2172
    %v2225 = vpack.c.b16 %v2177, %v2173
    %v2226 = vpack.c.b16 %v2178, %v2174
    %v2227 = vpack.c.b16 %v2183, %v2179
    %v2228 = vpack.c.b16 %v2184, %v2180
    %v2229 = vpack.c.b16 %v2185, %v2181
    %v2230 = vpack.c.b16 %v2186, %v2182
    %v2231 = vpack.c.b16 %v2191, %v2187
    %v2232 = vpack.c.b16 %v2192, %v2188
    %v2233 = vpack.c.b16 %v2193, %v2189
    %v2234 = vpack.c.b16 %v2194, %v2190
    %v2235 = vpack.c.b16 %v2199, %v2195
    %v2236 = vpack.c.b16 %v2200, %v2196
    %v2237 = vpack.c.b16 %v2201, %v2197
    %v2238 = vpack.c.b16 %v2202, %v2198
    %v2239 = vpack.c.b16 %v2207, %v2203
    %v2240 = vpack.c.b16 %v2208, %v2204
    %v2241 = vpack.c.b16 %v2209, %v2205
    %v2242 = vpack.c.b16 %v2210, %v2206
    %2275 = vmatprep.subr.bf16.mxu0 %v2212
    %2276 = vmatpush1.bf16.msra.mxu0 %v2211
    %2277 = vmatprep.subr.bf16.mxu0 %v2216
    %2278 = vmatpush1.bf16.msra.mxu0 %v2215
    %2279 = vmatprep.subr.bf16.mxu0 %v2220
    %2280 = vmatpush1.bf16.msra.mxu0 %v2219
    %2281 = vmatprep.subr.bf16.mxu0 %v2224
    %2282 = vmatpush1.bf16.msra.mxu0 %v2223
    %2283 = vmatprep.subr.bf16.mxu0 %v2228
    %2284 = vmatpush1.bf16.msra.mxu0 %v2227
    %2285 = vmatprep.subr.bf16.mxu0 %v2232
    %2286 = vmatpush1.bf16.msra.mxu0 %v2231
    %2287 = vmatprep.subr.bf16.mxu0 %v2236
    %2288 = vmatpush1.bf16.msra.mxu0 %v2235
    %2289 = vmatprep.subr.bf16.mxu0 %v2240
    %2290 = vmatpush1.bf16.msra.mxu0 %v2239
    %2291 = vmatprep.subr.bf16.mxu0 0
    %2292 = vmatpush1.bf16.msra.mxu0 0
    %2293 = vmatprep.subr.bf16.mxu0 0
    %2294 = vmatpush1.bf16.msra.mxu0 0
    %2295 = vmatprep.subr.bf16.mxu0 0
    %2296 = vmatpush1.bf16.msra.mxu0 0
    %2297 = vmatprep.subr.bf16.mxu0 0
    %2298 = vmatpush1.bf16.msra.mxu0 0
    %2299 = vmatprep.subr.bf16.mxu0 0
    %2300 = vmatpush1.bf16.msra.mxu0 0
    %2301 = vmatprep.subr.bf16.mxu0 0
    %2302 = vmatpush1.bf16.msra.mxu0 0
    %2303 = vmatprep.subr.bf16.mxu0 0
    %2304 = vmatpush1.bf16.msra.mxu0 0
    %2305 = vmatprep.subr.bf16.mxu0 0
    %2306 = vmatpush1.bf16.msra.mxu0 0
    %2307 = vmatprep.mubr.bf16.mxu0 0
    %2308 = vmatmul.mubr.bf16.gmra.mrb[0].mxu0 %v2073
    %v2309 = vpop.f32.mrb[0].mxu0
    %v2310 = vadd.f32 0.0, %v2309
    %v2311 = vpop.f32.mrb[0].mxu0
    %v2312 = vadd.f32 0.0, %v2311
    %v2313 = vpop.f32.mrb[0].mxu0
    %v2314 = vpop.f32.mrb[0].mxu0
    %2315 = vdwg.mxu0
    %2316 = vmatprep.subr.bf16.mxu0 %v2214
    %2317 = vmatpush1.bf16.msra.mxu0 %v2213
    %2318 = vmatprep.subr.bf16.mxu0 %v2218
    %2319 = vmatpush1.bf16.msra.mxu0 %v2217
    %2320 = vmatprep.subr.bf16.mxu0 %v2222
    %2321 = vmatpush1.bf16.msra.mxu0 %v2221
    %2322 = vmatprep.subr.bf16.mxu0 %v2226
    %2323 = vmatpush1.bf16.msra.mxu0 %v2225
    %2324 = vmatprep.subr.bf16.mxu0 %v2230
    %2325 = vmatpush1.bf16.msra.mxu0 %v2229
    %2326 = vmatprep.subr.bf16.mxu0 %v2234
    %2327 = vmatpush1.bf16.msra.mxu0 %v2233
    %2328 = vmatprep.subr.bf16.mxu0 %v2238
    %2329 = vmatpush1.bf16.msra.mxu0 %v2237
    %2330 = vmatprep.subr.bf16.mxu0 %v2242
    %2331 = vmatpush1.bf16.msra.mxu0 %v2241
    %2332 = vmatprep.subr.bf16.mxu0 0
    %2333 = vmatpush1.bf16.msra.mxu0 0
    %2334 = vmatprep.subr.bf16.mxu0 0
    %2335 = vmatpush1.bf16.msra.mxu0 0
    %2336 = vmatprep.subr.bf16.mxu0 0
    %2337 = vmatpush1.bf16.msra.mxu0 0
    %2338 = vmatprep.subr.bf16.mxu0 0
    %2339 = vmatpush1.bf16.msra.mxu0 0
    %2340 = vmatprep.subr.bf16.mxu0 0
    %2341 = vmatpush1.bf16.msra.mxu0 0
    %2342 = vmatprep.subr.bf16.mxu0 0
    %2343 = vmatpush1.bf16.msra.mxu0 0
    %2344 = vmatprep.subr.bf16.mxu0 0
    %2345 = vmatpush1.bf16.msra.mxu0 0
    %2346 = vmatprep.subr.bf16.mxu0 0
    %2347 = vmatpush1.bf16.msra.mxu0 0
    %2348 = vmatprep.mubr.bf16.mxu0 0
    %2349 = vmatmul.mubr.bf16.gmra.mrb[0].mxu0 %v2073
    %v2350 = vpop.f32.mrb[0].mxu0
    %v2351 = vadd.f32 0.0, %v2350
    %v2352 = vpop.f32.mrb[0].mxu0
    %v2353 = vadd.f32 0.0, %v2352
    %v2354 = vpop.f32.mrb[0].mxu0
    %v2355 = vpop.f32.mrb[0].mxu0
    %2356 = vdwg.mxu0
    %v2357 = vadd.f32 %v2079, %v2310
    %v2358 = vadd.f32 %v2080, %v2312
    %v2359 = vadd.f32 %v2081, %v2351
    %v2360 = vadd.f32 %v2082, %v2353
    %v2361 = vxor.u32 %v2357, 2147483648
    %v2362 = vmul.f32 %v2361, 1.442695
    %v2363 = vpow.pop %v2362
    %v2364 = vadd.f32 %v2363, 1.0
    %v2365 = vrcp.pop %v2364
    %v2366 = vmul.f32 1.0, %v2365
    %v2367 = vxor.u32 %v2358, 2147483648
    %v2368 = vmul.f32 %v2367, 1.442695
    %v2369 = vpow.pop %v2368
    %v2370 = vadd.f32 %v2369, 1.0
    %v2371 = vrcp.pop %v2370
    %v2372 = vmul.f32 1.0, %v2371
    %v2373 = vtanh.pop %v2359
    %v2374 = vxor.u32 %v2360, 2147483648
    %v2375 = vmul.f32 %v2374, 1.442695
    %v2376 = vpow.pop %v2375
    %v2377 = vadd.f32 %v2376, 1.0
    %v2378 = vrcp.pop %v2377
    %v2379 = vmul.f32 1.0, %v2378
    %v2380 = vmul.f32 %v2372, %v2070
    %v2381 = vmul.f32 %v2366, %v2373
    %v2382 = vadd.f32 %v2380, %v2381
    %v2383 = vtanh.pop %v2382
    %v2384 = vmul.f32 %v2379, %v2383
    %v2385 = vpack.c.bf16 %v2384, %v2384
    %s2386 = scalar_lea.vmem [#allocation13], 20
    %2387 = vst [vmem:[%s2386] sm:$0xf] %v2385
    %s2388 = smul.u32 6, 4
    %s2389 = smul.addr %s2388, 8
    %s2390 = scalar_lea.vmem [#allocation2], %s2389
    %v2391 = vld [vmem:[%s2390] sm:$0xff]
    %v2392 = vld [vmem:[%s2390 + $0x8] sm:$0xff]
    %v2393 = vld [vmem:[%s2390 + $0x10] sm:$0xff]
    %v2394 = vld [vmem:[%s2390 + $0x18] sm:$0xff]
    %v2395 = vld [vmem:[#allocation10] sm:$0xff]
    %v2396 = vld [vmem:[#allocation10 + $0x8] sm:$0xff]
    %v2397 = vld [vmem:[#allocation10 + $0x10] sm:$0xff]
    %v2398 = vld [vmem:[#allocation10 + $0x18] sm:$0xff]
    %v2399 = vld [vmem:[#allocation10 + $0x20] sm:$0xff]
    %v2400 = vld [vmem:[#allocation10 + $0x28] sm:$0xff]
    %v2401 = vld [vmem:[#allocation10 + $0x30] sm:$0xff]
    %v2402 = vld [vmem:[#allocation10 + $0x38] sm:$0xff]
    %v2403 = vld [vmem:[#allocation10 + $0x40] sm:$0xff]
    %v2404 = vld [vmem:[#allocation10 + $0x48] sm:$0xff]
    %v2405 = vld [vmem:[#allocation10 + $0x50] sm:$0xff]
    %v2406 = vld [vmem:[#allocation10 + $0x58] sm:$0xff]
    %v2407 = vld [vmem:[#allocation10 + $0x60] sm:$0xff]
    %v2408 = vld [vmem:[#allocation10 + $0x68] sm:$0xff]
    %v2409 = vld [vmem:[#allocation10 + $0x70] sm:$0xff]
    %v2410 = vld [vmem:[#allocation10 + $0x78] sm:$0xff]
    %v2411 = vld [vmem:[#allocation10 + $0x80] sm:$0xff]
    %v2412 = vld [vmem:[#allocation10 + $0x88] sm:$0xff]
    %v2413 = vld [vmem:[#allocation10 + $0x90] sm:$0xff]
    %v2414 = vld [vmem:[#allocation10 + $0x98] sm:$0xff]
    %v2415 = vld [vmem:[#allocation10 + $0xa0] sm:$0xff]
    %v2416 = vld [vmem:[#allocation10 + $0xa8] sm:$0xff]
    %v2417 = vld [vmem:[#allocation10 + $0xb0] sm:$0xff]
    %v2418 = vld [vmem:[#allocation10 + $0xb8] sm:$0xff]
    %v2419 = vld [vmem:[#allocation10 + $0xc0] sm:$0xff]
    %v2420 = vld [vmem:[#allocation10 + $0xc8] sm:$0xff]
    %v2421 = vld [vmem:[#allocation10 + $0xd0] sm:$0xff]
    %v2422 = vld [vmem:[#allocation10 + $0xd8] sm:$0xff]
    %v2423 = vld [vmem:[#allocation10 + $0xe0] sm:$0xff]
    %v2424 = vld [vmem:[#allocation10 + $0xe8] sm:$0xff]
    %v2425 = vld [vmem:[#allocation10 + $0xf0] sm:$0xff]
    %v2426 = vld [vmem:[#allocation10 + $0xf8] sm:$0xff]
    %v2459 = vunpack.c.l.b16 %v2395
    %v2460 = vunpack.c.h.b16 %v2395
    %v2461 = vunpack.c.l.b16 %v2396
    %v2462 = vunpack.c.h.b16 %v2396
    %v2463 = vunpack.c.l.b16 %v2397
    %v2464 = vunpack.c.h.b16 %v2397
    %v2465 = vunpack.c.l.b16 %v2398
    %v2466 = vunpack.c.h.b16 %v2398
    %v2467 = vunpack.c.l.b16 %v2399
    %v2468 = vunpack.c.h.b16 %v2399
    %v2469 = vunpack.c.l.b16 %v2400
    %v2470 = vunpack.c.h.b16 %v2400
    %v2471 = vunpack.c.l.b16 %v2401
    %v2472 = vunpack.c.h.b16 %v2401
    %v2473 = vunpack.c.l.b16 %v2402
    %v2474 = vunpack.c.h.b16 %v2402
    %v2475 = vunpack.c.l.b16 %v2403
    %v2476 = vunpack.c.h.b16 %v2403
    %v2477 = vunpack.c.l.b16 %v2404
    %v2478 = vunpack.c.h.b16 %v2404
    %v2479 = vunpack.c.l.b16 %v2405
    %v2480 = vunpack.c.h.b16 %v2405
    %v2481 = vunpack.c.l.b16 %v2406
    %v2482 = vunpack.c.h.b16 %v2406
    %v2483 = vunpack.c.l.b16 %v2407
    %v2484 = vunpack.c.h.b16 %v2407
    %v2485 = vunpack.c.l.b16 %v2408
    %v2486 = vunpack.c.h.b16 %v2408
    %v2487 = vunpack.c.l.b16 %v2409
    %v2488 = vunpack.c.h.b16 %v2409
    %v2489 = vunpack.c.l.b16 %v2410
    %v2490 = vunpack.c.h.b16 %v2410
    %v2491 = vunpack.c.l.b16 %v2411
    %v2492 = vunpack.c.h.b16 %v2411
    %v2493 = vunpack.c.l.b16 %v2412
    %v2494 = vunpack.c.h.b16 %v2412
    %v2495 = vunpack.c.l.b16 %v2413
    %v2496 = vunpack.c.h.b16 %v2413
    %v2497 = vunpack.c.l.b16 %v2414
    %v2498 = vunpack.c.h.b16 %v2414
    %v2499 = vunpack.c.l.b16 %v2415
    %v2500 = vunpack.c.h.b16 %v2415
    %v2501 = vunpack.c.l.b16 %v2416
    %v2502 = vunpack.c.h.b16 %v2416
    %v2503 = vunpack.c.l.b16 %v2417
    %v2504 = vunpack.c.h.b16 %v2417
    %v2505 = vunpack.c.l.b16 %v2418
    %v2506 = vunpack.c.h.b16 %v2418
    %v2507 = vunpack.c.l.b16 %v2419
    %v2508 = vunpack.c.h.b16 %v2419
    %v2509 = vunpack.c.l.b16 %v2420
    %v2510 = vunpack.c.h.b16 %v2420
    %v2511 = vunpack.c.l.b16 %v2421
    %v2512 = vunpack.c.h.b16 %v2421
    %v2513 = vunpack.c.l.b16 %v2422
    %v2514 = vunpack.c.h.b16 %v2422
    %v2515 = vunpack.c.l.b16 %v2423
    %v2516 = vunpack.c.h.b16 %v2423
    %v2517 = vunpack.c.l.b16 %v2424
    %v2518 = vunpack.c.h.b16 %v2424
    %v2519 = vunpack.c.l.b16 %v2425
    %v2520 = vunpack.c.h.b16 %v2425
    %v2521 = vunpack.c.l.b16 %v2426
    %v2522 = vunpack.c.h.b16 %v2426
    %v2523 = vpack.c.b16 %v2463, %v2459
    %v2524 = vpack.c.b16 %v2464, %v2460
    %v2525 = vpack.c.b16 %v2465, %v2461
    %v2526 = vpack.c.b16 %v2466, %v2462
    %v2527 = vpack.c.b16 %v2471, %v2467
    %v2528 = vpack.c.b16 %v2472, %v2468
    %v2529 = vpack.c.b16 %v2473, %v2469
    %v2530 = vpack.c.b16 %v2474, %v2470
    %v2531 = vpack.c.b16 %v2479, %v2475
    %v2532 = vpack.c.b16 %v2480, %v2476
    %v2533 = vpack.c.b16 %v2481, %v2477
    %v2534 = vpack.c.b16 %v2482, %v2478
    %v2535 = vpack.c.b16 %v2487, %v2483
    %v2536 = vpack.c.b16 %v2488, %v2484
    %v2537 = vpack.c.b16 %v2489, %v2485
    %v2538 = vpack.c.b16 %v2490, %v2486
    %v2539 = vpack.c.b16 %v2495, %v2491
    %v2540 = vpack.c.b16 %v2496, %v2492
    %v2541 = vpack.c.b16 %v2497, %v2493
    %v2542 = vpack.c.b16 %v2498, %v2494
    %v2543 = vpack.c.b16 %v2503, %v2499
    %v2544 = vpack.c.b16 %v2504, %v2500
    %v2545 = vpack.c.b16 %v2505, %v2501
    %v2546 = vpack.c.b16 %v2506, %v2502
    %v2547 = vpack.c.b16 %v2511, %v2507
    %v2548 = vpack.c.b16 %v2512, %v2508
    %v2549 = vpack.c.b16 %v2513, %v2509
    %v2550 = vpack.c.b16 %v2514, %v2510
    %v2551 = vpack.c.b16 %v2519, %v2515
    %v2552 = vpack.c.b16 %v2520, %v2516
    %v2553 = vpack.c.b16 %v2521, %v2517
    %v2554 = vpack.c.b16 %v2522, %v2518
    %2587 = vmatprep.subr.bf16.mxu0 %v2524
    %2588 = vmatpush1.bf16.msra.mxu0 %v2523
    %2589 = vmatprep.subr.bf16.mxu0 %v2528
    %2590 = vmatpush1.bf16.msra.mxu0 %v2527
    %2591 = vmatprep.subr.bf16.mxu0 %v2532
    %2592 = vmatpush1.bf16.msra.mxu0 %v2531
    %2593 = vmatprep.subr.bf16.mxu0 %v2536
    %2594 = vmatpush1.bf16.msra.mxu0 %v2535
    %2595 = vmatprep.subr.bf16.mxu0 %v2540
    %2596 = vmatpush1.bf16.msra.mxu0 %v2539
    %2597 = vmatprep.subr.bf16.mxu0 %v2544
    %2598 = vmatpush1.bf16.msra.mxu0 %v2543
    %2599 = vmatprep.subr.bf16.mxu0 %v2548
    %2600 = vmatpush1.bf16.msra.mxu0 %v2547
    %2601 = vmatprep.subr.bf16.mxu0 %v2552
    %2602 = vmatpush1.bf16.msra.mxu0 %v2551
    %2603 = vmatprep.subr.bf16.mxu0 0
    %2604 = vmatpush1.bf16.msra.mxu0 0
    %2605 = vmatprep.subr.bf16.mxu0 0
    %2606 = vmatpush1.bf16.msra.mxu0 0
    %2607 = vmatprep.subr.bf16.mxu0 0
    %2608 = vmatpush1.bf16.msra.mxu0 0
    %2609 = vmatprep.subr.bf16.mxu0 0
    %2610 = vmatpush1.bf16.msra.mxu0 0
    %2611 = vmatprep.subr.bf16.mxu0 0
    %2612 = vmatpush1.bf16.msra.mxu0 0
    %2613 = vmatprep.subr.bf16.mxu0 0
    %2614 = vmatpush1.bf16.msra.mxu0 0
    %2615 = vmatprep.subr.bf16.mxu0 0
    %2616 = vmatpush1.bf16.msra.mxu0 0
    %2617 = vmatprep.subr.bf16.mxu0 0
    %2618 = vmatpush1.bf16.msra.mxu0 0
    %2619 = vmatprep.mubr.bf16.mxu0 0
    %2620 = vmatmul.mubr.bf16.gmra.mrb[0].mxu0 %v2385
    %v2621 = vpop.f32.mrb[0].mxu0
    %v2622 = vadd.f32 0.0, %v2621
    %v2623 = vpop.f32.mrb[0].mxu0
    %v2624 = vadd.f32 0.0, %v2623
    %v2625 = vpop.f32.mrb[0].mxu0
    %v2626 = vpop.f32.mrb[0].mxu0
    %2627 = vdwg.mxu0
    %2628 = vmatprep.subr.bf16.mxu0 %v2526
    %2629 = vmatpush1.bf16.msra.mxu0 %v2525
    %2630 = vmatprep.subr.bf16.mxu0 %v2530
    %2631 = vmatpush1.bf16.msra.mxu0 %v2529
    %2632 = vmatprep.subr.bf16.mxu0 %v2534
    %2633 = vmatpush1.bf16.msra.mxu0 %v2533
    %2634 = vmatprep.subr.bf16.mxu0 %v2538
    %2635 = vmatpush1.bf16.msra.mxu0 %v2537
    %2636 = vmatprep.subr.bf16.mxu0 %v2542
    %2637 = vmatpush1.bf16.msra.mxu0 %v2541
    %2638 = vmatprep.subr.bf16.mxu0 %v2546
    %2639 = vmatpush1.bf16.msra.mxu0 %v2545
    %2640 = vmatprep.subr.bf16.mxu0 %v2550
    %2641 = vmatpush1.bf16.msra.mxu0 %v2549
    %2642 = vmatprep.subr.bf16.mxu0 %v2554
    %2643 = vmatpush1.bf16.msra.mxu0 %v2553
    %2644 = vmatprep.subr.bf16.mxu0 0
    %2645 = vmatpush1.bf16.msra.mxu0 0
    %2646 = vmatprep.subr.bf16.mxu0 0
    %2647 = vmatpush1.bf16.msra.mxu0 0
    %2648 = vmatprep.subr.bf16.mxu0 0
    %2649 = vmatpush1.bf16.msra.mxu0 0
    %2650 = vmatprep.subr.bf16.mxu0 0
    %2651 = vmatpush1.bf16.msra.mxu0 0
    %2652 = vmatprep.subr.bf16.mxu0 0
    %2653 = vmatpush1.bf16.msra.mxu0 0
    %2654 = vmatprep.subr.bf16.mxu0 0
    %2655 = vmatpush1.bf16.msra.mxu0 0
    %2656 = vmatprep.subr.bf16.mxu0 0
    %2657 = vmatpush1.bf16.msra.mxu0 0
    %2658 = vmatprep.subr.bf16.mxu0 0
    %2659 = vmatpush1.bf16.msra.mxu0 0
    %2660 = vmatprep.mubr.bf16.mxu0 0
    %2661 = vmatmul.mubr.bf16.gmra.mrb[0].mxu0 %v2385
    %v2662 = vpop.f32.mrb[0].mxu0
    %v2663 = vadd.f32 0.0, %v2662
    %v2664 = vpop.f32.mrb[0].mxu0
    %v2665 = vadd.f32 0.0, %v2664
    %v2666 = vpop.f32.mrb[0].mxu0
    %v2667 = vpop.f32.mrb[0].mxu0
    %2668 = vdwg.mxu0
    %v2669 = vadd.f32 %v2391, %v2622
    %v2670 = vadd.f32 %v2392, %v2624
    %v2671 = vadd.f32 %v2393, %v2663
    %v2672 = vadd.f32 %v2394, %v2665
    %v2673 = vxor.u32 %v2669, 2147483648
    %v2674 = vmul.f32 %v2673, 1.442695
    %v2675 = vpow.pop %v2674
    %v2676 = vadd.f32 %v2675, 1.0
    %v2677 = vrcp.pop %v2676
    %v2678 = vmul.f32 1.0, %v2677
    %v2679 = vxor.u32 %v2670, 2147483648
    %v2680 = vmul.f32 %v2679, 1.442695
    %v2681 = vpow.pop %v2680
    %v2682 = vadd.f32 %v2681, 1.0
    %v2683 = vrcp.pop %v2682
    %v2684 = vmul.f32 1.0, %v2683
    %v2685 = vtanh.pop %v2671
    %v2686 = vxor.u32 %v2672, 2147483648
    %v2687 = vmul.f32 %v2686, 1.442695
    %v2688 = vpow.pop %v2687
    %v2689 = vadd.f32 %v2688, 1.0
    %v2690 = vrcp.pop %v2689
    %v2691 = vmul.f32 1.0, %v2690
    %v2692 = vmul.f32 %v2684, %v2382
    %v2693 = vmul.f32 %v2678, %v2685
    %v2694 = vadd.f32 %v2692, %v2693
    %v2695 = vtanh.pop %v2694
    %v2696 = vmul.f32 %v2691, %v2695
    %v2697 = vpack.c.bf16 %v2696, %v2696
    %s2698 = scalar_lea.vmem [#allocation13], 24
    %2699 = vst [vmem:[%s2698] sm:$0xf] %v2697
    %s2700 = smul.u32 7, 4
    %s2701 = smul.addr %s2700, 8
    %s2702 = scalar_lea.vmem [#allocation2], %s2701
    %v2703 = vld [vmem:[%s2702] sm:$0xff]
    %v2704 = vld [vmem:[%s2702 + $0x8] sm:$0xff]
    %v2705 = vld [vmem:[%s2702 + $0x10] sm:$0xff]
    %v2706 = vld [vmem:[%s2702 + $0x18] sm:$0xff]
    %v2707 = vld [vmem:[#allocation10] sm:$0xff]
    %v2708 = vld [vmem:[#allocation10 + $0x8] sm:$0xff]
    %v2709 = vld [vmem:[#allocation10 + $0x10] sm:$0xff]
    %v2710 = vld [vmem:[#allocation10 + $0x18] sm:$0xff]
    %v2711 = vld [vmem:[#allocation10 + $0x20] sm:$0xff]
    %v2712 = vld [vmem:[#allocation10 + $0x28] sm:$0xff]
    %v2713 = vld [vmem:[#allocation10 + $0x30] sm:$0xff]
    %v2714 = vld [vmem:[#allocation10 + $0x38] sm:$0xff]
    %v2715 = vld [vmem:[#allocation10 + $0x40] sm:$0xff]
    %v2716 = vld [vmem:[#allocation10 + $0x48] sm:$0xff]
    %v2717 = vld [vmem:[#allocation10 + $0x50] sm:$0xff]
    %v2718 = vld [vmem:[#allocation10 + $0x58] sm:$0xff]
    %v2719 = vld [vmem:[#allocation10 + $0x60] sm:$0xff]
    %v2720 = vld [vmem:[#allocation10 + $0x68] sm:$0xff]
    %v2721 = vld [vmem:[#allocation10 + $0x70] sm:$0xff]
    %v2722 = vld [vmem:[#allocation10 + $0x78] sm:$0xff]
    %v2723 = vld [vmem:[#allocation10 + $0x80] sm:$0xff]
    %v2724 = vld [vmem:[#allocation10 + $0x88] sm:$0xff]
    %v2725 = vld [vmem:[#allocation10 + $0x90] sm:$0xff]
    %v2726 = vld [vmem:[#allocation10 + $0x98] sm:$0xff]
    %v2727 = vld [vmem:[#allocation10 + $0xa0] sm:$0xff]
    %v2728 = vld [vmem:[#allocation10 + $0xa8] sm:$0xff]
    %v2729 = vld [vmem:[#allocation10 + $0xb0] sm:$0xff]
    %v2730 = vld [vmem:[#allocation10 + $0xb8] sm:$0xff]
    %v2731 = vld [vmem:[#allocation10 + $0xc0] sm:$0xff]
    %v2732 = vld [vmem:[#allocation10 + $0xc8] sm:$0xff]
    %v2733 = vld [vmem:[#allocation10 + $0xd0] sm:$0xff]
    %v2734 = vld [vmem:[#allocation10 + $0xd8] sm:$0xff]
    %v2735 = vld [vmem:[#allocation10 + $0xe0] sm:$0xff]
    %v2736 = vld [vmem:[#allocation10 + $0xe8] sm:$0xff]
    %v2737 = vld [vmem:[#allocation10 + $0xf0] sm:$0xff]
    %v2738 = vld [vmem:[#allocation10 + $0xf8] sm:$0xff]
    %v2771 = vunpack.c.l.b16 %v2707
    %v2772 = vunpack.c.h.b16 %v2707
    %v2773 = vunpack.c.l.b16 %v2708
    %v2774 = vunpack.c.h.b16 %v2708
    %v2775 = vunpack.c.l.b16 %v2709
    %v2776 = vunpack.c.h.b16 %v2709
    %v2777 = vunpack.c.l.b16 %v2710
    %v2778 = vunpack.c.h.b16 %v2710
    %v2779 = vunpack.c.l.b16 %v2711
    %v2780 = vunpack.c.h.b16 %v2711
    %v2781 = vunpack.c.l.b16 %v2712
    %v2782 = vunpack.c.h.b16 %v2712
    %v2783 = vunpack.c.l.b16 %v2713
    %v2784 = vunpack.c.h.b16 %v2713
    %v2785 = vunpack.c.l.b16 %v2714
    %v2786 = vunpack.c.h.b16 %v2714
    %v2787 = vunpack.c.l.b16 %v2715
    %v2788 = vunpack.c.h.b16 %v2715
    %v2789 = vunpack.c.l.b16 %v2716
    %v2790 = vunpack.c.h.b16 %v2716
    %v2791 = vunpack.c.l.b16 %v2717
    %v2792 = vunpack.c.h.b16 %v2717
    %v2793 = vunpack.c.l.b16 %v2718
    %v2794 = vunpack.c.h.b16 %v2718
    %v2795 = vunpack.c.l.b16 %v2719
    %v2796 = vunpack.c.h.b16 %v2719
    %v2797 = vunpack.c.l.b16 %v2720
    %v2798 = vunpack.c.h.b16 %v2720
    %v2799 = vunpack.c.l.b16 %v2721
    %v2800 = vunpack.c.h.b16 %v2721
    %v2801 = vunpack.c.l.b16 %v2722
    %v2802 = vunpack.c.h.b16 %v2722
    %v2803 = vunpack.c.l.b16 %v2723
    %v2804 = vunpack.c.h.b16 %v2723
    %v2805 = vunpack.c.l.b16 %v2724
    %v2806 = vunpack.c.h.b16 %v2724
    %v2807 = vunpack.c.l.b16 %v2725
    %v2808 = vunpack.c.h.b16 %v2725
    %v2809 = vunpack.c.l.b16 %v2726
    %v2810 = vunpack.c.h.b16 %v2726
    %v2811 = vunpack.c.l.b16 %v2727
    %v2812 = vunpack.c.h.b16 %v2727
    %v2813 = vunpack.c.l.b16 %v2728
    %v2814 = vunpack.c.h.b16 %v2728
    %v2815 = vunpack.c.l.b16 %v2729
    %v2816 = vunpack.c.h.b16 %v2729
    %v2817 = vunpack.c.l.b16 %v2730
    %v2818 = vunpack.c.h.b16 %v2730
    %v2819 = vunpack.c.l.b16 %v2731
    %v2820 = vunpack.c.h.b16 %v2731
    %v2821 = vunpack.c.l.b16 %v2732
    %v2822 = vunpack.c.h.b16 %v2732
    %v2823 = vunpack.c.l.b16 %v2733
    %v2824 = vunpack.c.h.b16 %v2733
    %v2825 = vunpack.c.l.b16 %v2734
    %v2826 = vunpack.c.h.b16 %v2734
    %v2827 = vunpack.c.l.b16 %v2735
    %v2828 = vunpack.c.h.b16 %v2735
    %v2829 = vunpack.c.l.b16 %v2736
    %v2830 = vunpack.c.h.b16 %v2736
    %v2831 = vunpack.c.l.b16 %v2737
    %v2832 = vunpack.c.h.b16 %v2737
    %v2833 = vunpack.c.l.b16 %v2738
    %v2834 = vunpack.c.h.b16 %v2738
    %v2835 = vpack.c.b16 %v2775, %v2771
    %v2836 = vpack.c.b16 %v2776, %v2772
    %v2837 = vpack.c.b16 %v2777, %v2773
    %v2838 = vpack.c.b16 %v2778, %v2774
    %v2839 = vpack.c.b16 %v2783, %v2779
    %v2840 = vpack.c.b16 %v2784, %v2780
    %v2841 = vpack.c.b16 %v2785, %v2781
    %v2842 = vpack.c.b16 %v2786, %v2782
    %v2843 = vpack.c.b16 %v2791, %v2787
    %v2844 = vpack.c.b16 %v2792, %v2788
    %v2845 = vpack.c.b16 %v2793, %v2789
    %v2846 = vpack.c.b16 %v2794, %v2790
    %v2847 = vpack.c.b16 %v2799, %v2795
    %v2848 = vpack.c.b16 %v2800, %v2796
    %v2849 = vpack.c.b16 %v2801, %v2797
    %v2850 = vpack.c.b16 %v2802, %v2798
    %v2851 = vpack.c.b16 %v2807, %v2803
    %v2852 = vpack.c.b16 %v2808, %v2804
    %v2853 = vpack.c.b16 %v2809, %v2805
    %v2854 = vpack.c.b16 %v2810, %v2806
    %v2855 = vpack.c.b16 %v2815, %v2811
    %v2856 = vpack.c.b16 %v2816, %v2812
    %v2857 = vpack.c.b16 %v2817, %v2813
    %v2858 = vpack.c.b16 %v2818, %v2814
    %v2859 = vpack.c.b16 %v2823, %v2819
    %v2860 = vpack.c.b16 %v2824, %v2820
    %v2861 = vpack.c.b16 %v2825, %v2821
    %v2862 = vpack.c.b16 %v2826, %v2822
    %v2863 = vpack.c.b16 %v2831, %v2827
    %v2864 = vpack.c.b16 %v2832, %v2828
    %v2865 = vpack.c.b16 %v2833, %v2829
    %v2866 = vpack.c.b16 %v2834, %v2830
    %2899 = vmatprep.subr.bf16.mxu0 %v2836
    %2900 = vmatpush1.bf16.msra.mxu0 %v2835
    %2901 = vmatprep.subr.bf16.mxu0 %v2840
    %2902 = vmatpush1.bf16.msra.mxu0 %v2839
    %2903 = vmatprep.subr.bf16.mxu0 %v2844
    %2904 = vmatpush1.bf16.msra.mxu0 %v2843
    %2905 = vmatprep.subr.bf16.mxu0 %v2848
    %2906 = vmatpush1.bf16.msra.mxu0 %v2847
    %2907 = vmatprep.subr.bf16.mxu0 %v2852
    %2908 = vmatpush1.bf16.msra.mxu0 %v2851
    %2909 = vmatprep.subr.bf16.mxu0 %v2856
    %2910 = vmatpush1.bf16.msra.mxu0 %v2855
    %2911 = vmatprep.subr.bf16.mxu0 %v2860
    %2912 = vmatpush1.bf16.msra.mxu0 %v2859
    %2913 = vmatprep.subr.bf16.mxu0 %v2864
    %2914 = vmatpush1.bf16.msra.mxu0 %v2863
    %2915 = vmatprep.subr.bf16.mxu0 0
    %2916 = vmatpush1.bf16.msra.mxu0 0
    %2917 = vmatprep.subr.bf16.mxu0 0
    %2918 = vmatpush1.bf16.msra.mxu0 0
    %2919 = vmatprep.subr.bf16.mxu0 0
    %2920 = vmatpush1.bf16.msra.mxu0 0
    %2921 = vmatprep.subr.bf16.mxu0 0
    %2922 = vmatpush1.bf16.msra.mxu0 0
    %2923 = vmatprep.subr.bf16.mxu0 0
    %2924 = vmatpush1.bf16.msra.mxu0 0
    %2925 = vmatprep.subr.bf16.mxu0 0
    %2926 = vmatpush1.bf16.msra.mxu0 0
    %2927 = vmatprep.subr.bf16.mxu0 0
    %2928 = vmatpush1.bf16.msra.mxu0 0
    %2929 = vmatprep.subr.bf16.mxu0 0
    %2930 = vmatpush1.bf16.msra.mxu0 0
    %2931 = vmatprep.mubr.bf16.mxu0 0
    %2932 = vmatmul.mubr.bf16.gmra.mrb[0].mxu0 %v2697
    %v2933 = vpop.f32.mrb[0].mxu0
    %v2934 = vadd.f32 0.0, %v2933
    %v2935 = vpop.f32.mrb[0].mxu0
    %v2936 = vadd.f32 0.0, %v2935
    %v2937 = vpop.f32.mrb[0].mxu0
    %v2938 = vpop.f32.mrb[0].mxu0
    %2939 = vdwg.mxu0
    %2940 = vmatprep.subr.bf16.mxu0 %v2838
    %2941 = vmatpush1.bf16.msra.mxu0 %v2837
    %2942 = vmatprep.subr.bf16.mxu0 %v2842
    %2943 = vmatpush1.bf16.msra.mxu0 %v2841
    %2944 = vmatprep.subr.bf16.mxu0 %v2846
    %2945 = vmatpush1.bf16.msra.mxu0 %v2845
    %2946 = vmatprep.subr.bf16.mxu0 %v2850
    %2947 = vmatpush1.bf16.msra.mxu0 %v2849
    %2948 = vmatprep.subr.bf16.mxu0 %v2854
    %2949 = vmatpush1.bf16.msra.mxu0 %v2853
    %2950 = vmatprep.subr.bf16.mxu0 %v2858
    %2951 = vmatpush1.bf16.msra.mxu0 %v2857
    %2952 = vmatprep.subr.bf16.mxu0 %v2862
    %2953 = vmatpush1.bf16.msra.mxu0 %v2861
    %2954 = vmatprep.subr.bf16.mxu0 %v2866
    %2955 = vmatpush1.bf16.msra.mxu0 %v2865
    %2956 = vmatprep.subr.bf16.mxu0 0
    %2957 = vmatpush1.bf16.msra.mxu0 0
    %2958 = vmatprep.subr.bf16.mxu0 0
    %2959 = vmatpush1.bf16.msra.mxu0 0
    %2960 = vmatprep.subr.bf16.mxu0 0
    %2961 = vmatpush1.bf16.msra.mxu0 0
    %2962 = vmatprep.subr.bf16.mxu0 0
    %2963 = vmatpush1.bf16.msra.mxu0 0
    %2964 = vmatprep.subr.bf16.mxu0 0
    %2965 = vmatpush1.bf16.msra.mxu0 0
    %2966 = vmatprep.subr.bf16.mxu0 0
    %2967 = vmatpush1.bf16.msra.mxu0 0
    %2968 = vmatprep.subr.bf16.mxu0 0
    %2969 = vmatpush1.bf16.msra.mxu0 0
    %2970 = vmatprep.subr.bf16.mxu0 0
    %2971 = vmatpush1.bf16.msra.mxu0 0
    %2972 = vmatprep.mubr.bf16.mxu0 0
    %2973 = vmatmul.mubr.bf16.gmra.mrb[0].mxu0 %v2697
    %v2974 = vpop.f32.mrb[0].mxu0
    %v2975 = vadd.f32 0.0, %v2974
    %v2976 = vpop.f32.mrb[0].mxu0
    %v2977 = vadd.f32 0.0, %v2976
    %v2978 = vpop.f32.mrb[0].mxu0
    %v2979 = vpop.f32.mrb[0].mxu0
    %2980 = vdwg.mxu0
    %v2981 = vadd.f32 %v2703, %v2934
    %v2982 = vadd.f32 %v2704, %v2936
    %v2983 = vadd.f32 %v2705, %v2975
    %v2984 = vadd.f32 %v2706, %v2977
    %v2985 = vxor.u32 %v2981, 2147483648
    %v2986 = vmul.f32 %v2985, 1.442695
    %v2987 = vpow.pop %v2986
    %v2988 = vadd.f32 %v2987, 1.0
    %v2989 = vrcp.pop %v2988
    %v2990 = vmul.f32 1.0, %v2989
    %v2991 = vxor.u32 %v2982, 2147483648
    %v2992 = vmul.f32 %v2991, 1.442695
    %v2993 = vpow.pop %v2992
    %v2994 = vadd.f32 %v2993, 1.0
    %v2995 = vrcp.pop %v2994
    %v2996 = vmul.f32 1.0, %v2995
    %v2997 = vtanh.pop %v2983
    %v2998 = vxor.u32 %v2984, 2147483648
    %v2999 = vmul.f32 %v2998, 1.442695
    %v3000 = vpow.pop %v2999
    %v3001 = vadd.f32 %v3000, 1.0
    %v3002 = vrcp.pop %v3001
    %v3003 = vmul.f32 1.0, %v3002
    %v3004 = vmul.f32 %v2996, %v2694
    %v3005 = vmul.f32 %v2990, %v2997
    %v3006 = vadd.f32 %v3004, %v3005
    %v3007 = vtanh.pop %v3006
    %v3008 = vmul.f32 %v3003, %v3007
    %v3009 = vpack.c.bf16 %v3008, %v3008
    %s3010 = scalar_lea.vmem [#allocation13], 28
    %3011 = vst [vmem:[%s3010] sm:$0xf] %v3009
    %3012 = vst [vmem:[#allocation3] sm:$0xff] %v3008
    %3013 = vst [vmem:[#allocation4] sm:$0xff] %v3006
    // Predicated region
    $region46: #{tpu_custom_call.1} parent=1 // pred_check
      %p3014 = pneg %p82
    $region47: #{tpu_custom_call.1} parent=1 // pred_check_branch
      %3016 = sbr.rel (%p3014) target = $region49
    $region48: #{tpu_custom_call.1} parent=1 // pred_region
      %3017 = vst [vmem:[#allocation14] sm:$0xff] %v3008
      %3018 = vst [vmem:[#allocation16] sm:$0xff] %v3006
    $region49: #{tpu_custom_call.1} parent=1 // pred_fallthru
      _
    // Predicated region
    $region50: #{tpu_custom_call.1} parent=1 // pred_check
      _
    $region51: #{tpu_custom_call.1} parent=1 // pred_check_branch
      %3020 = sbr.rel (0) target = $region53
    $region52: #{tpu_custom_call.1} parent=1 // pred_region
      %s3022 = ssub.s32 512, 512
      %3023 = vsyncadd [#allocation7], %s3022
      %s3024 = sshll.u32 [#allocation13], 4
      %s3025 = int_to_ptr.vmem [resolvable:$true] %s3024
      %3030 = dma.vmem_to_hbm [thread:$0]  %s3025, 512, %s6, [#allocation7], 64, 64, 4
    $region53: #{tpu_custom_call.1} parent=1 // pred_fallthru
      _
    // Predicated region
    $region54: #{tpu_custom_call.1} parent=1 // pred_check
      _
    $region55: #{tpu_custom_call.1} parent=1 // pred_check_branch
      %3032 = sbr.rel (0) target = $region57
    $region56: #{tpu_custom_call.1} parent=1 // pred_region
      %s3034 = ssub.s32 128, 128
      %3035 = vsyncadd [#allocation15], %s3034
      %s3037 = sshll.u32 [#allocation14], 4
      %s3038 = int_to_ptr.vmem [resolvable:$true] %s3037
      %3040 = dma.vmem_to_hbm [thread:$0]  %s3038, 128, %s7, [#allocation15]
    $region57: #{tpu_custom_call.1} parent=1 // pred_fallthru
      _
    // Predicated region
    $region58: #{tpu_custom_call.1} parent=1 // pred_check
      _
    $region59: #{tpu_custom_call.1} parent=1 // pred_check_branch
      %3042 = sbr.rel (0) target = $region61
    $region60: #{tpu_custom_call.1} parent=1 // pred_region
      %s3044 = ssub.s32 128, 128
      %3045 = vsyncadd [#allocation15], %s3044
      %s3047 = sshll.u32 [#allocation16], 4
      %s3048 = int_to_ptr.vmem [resolvable:$true] %s3047
      %3050 = dma.vmem_to_hbm [thread:$0]  %s3048, 128, %s8, [#allocation15]
    $region61: #{tpu_custom_call.1} parent=1 // pred_fallthru
      _
    // Predicated region
    $region62: #{tpu_custom_call.1} parent=1 // pred_check
      _
    $region63: #{tpu_custom_call.1} parent=1 // pred_check_branch
      %3052 = sbr.rel (0) target = $region65
    $region64: #{tpu_custom_call.1} parent=1 // pred_region
      %3053 = dma.done [#allocation7], 512
    $region65: #{tpu_custom_call.1} parent=1 // pred_fallthru
      _
    // Predicated region
    $region66: #{tpu_custom_call.1} parent=1 // pred_check
      _
    $region67: #{tpu_custom_call.1} parent=1 // pred_check_branch
      %3055 = sbr.rel (0) target = $region69
    $region68: #{tpu_custom_call.1} parent=1 // pred_region
      %3056 = dma.done [#allocation15], 128
    $region69: #{tpu_custom_call.1} parent=1 // pred_fallthru
      _
    // Predicated region
    $region70: #{tpu_custom_call.1} parent=1 // pred_check
      _
    $region71: #{tpu_custom_call.1} parent=1 // pred_check_branch
      %3058 = sbr.rel (0) target = $region73
    $region72: #{tpu_custom_call.1} parent=1 // pred_region
      %3059 = dma.done [#allocation15], 128
    $region73: #{tpu_custom_call.1} parent=1 // pred_fallthru
      _
    %3060 = vsyncpa [#allocation6], 1
    %3061 = vsyncpa [#allocation9], 1
    %3062 = vsyncpa [#allocation12], 1
    %3063 = vsyncpa [#allocation7], 1
    %3064 = vsyncpa [#allocation15], 1

</llo_original>
